<compile_context>
chip_gen: v7x
topology: tpu7x:2x2x1
jax: 0.10.0
libtpu: 0.0.40
codegen_flags: <defaults>
</compile_context>

<pallas_src>
import math
import functools

import jax
import jax.numpy as jnp
from jax import lax
from jax.experimental import pallas as pl
from jax.experimental.pallas import tpu as pltpu

MXU_DTYPE = jnp.bfloat16      # MXU operand dtype (accumulation stays f32)
BN_EPS = 1e-5


# ----------------------------------------------------------------------------
# Kernel 1: full ExpressionEncoder (called for source & driving via grid=(2,))
# ----------------------------------------------------------------------------

def _encoder_kernel(x_ref, wproj_ref, bproj_ref, wc1_ref, wc2_ref,
                    wq_ref, bq_ref, wkv_ref, bkv_ref,
                    o_ref, pad_ref, *, B, H, W, DM):
    """One ExpressionEncoder forward for one stacked input (source OR driving).

    x_ref   : (1, B*H*W, IC)   flattened NHWC input rows
    w*_ref  : shared weights (bf16) / biases (f32); 3x3 weights in im2col
              layout (9*Cin, Cout) with row = (ky*3+kx)*Cin + ci
    o_ref   : (1, B*H*W, DM)   encoder output rows (f32)
    pad_ref : (B, H+2, W+2, DM) VMEM scratch with a zero halo for 3x3 convs
    """
    S = H * W
    BS = B * S
    f32 = jnp.float32

    x = x_ref[0]                                                     # (BS, IC)

    # --- 1x1 projection: IC -> DM ---------------------------------------
    xp = (jnp.dot(x.astype(MXU_DTYPE), wproj_ref[...],
                  preferred_element_type=f32) + bproj_ref[...])      # (BS, DM)

    # Zero the halo once; only the interior gets rewritten per conv.
    pad_ref[...] = jnp.zeros_like(pad_ref)

    def conv3x3(v, w_flat_ref):
        # v: (BS, DM) f32  ->  (BS, Cout) f32  via in-kernel im2col matmul.
        pad_ref[:, 1:H + 1, 1:W + 1, :] = v.reshape(B, H, W, DM)
        cols = [pad_ref[:, dy:dy + H, dx:dx + W, :].reshape(BS, DM)
                for dy in range(3) for dx in range(3)]
        patch = jnp.concatenate(cols, axis=-1)                       # (BS, 9*DM)
        return jnp.dot(patch.astype(MXU_DTYPE), w_flat_ref[...],
                       preferred_element_type=f32)

    def bnorm(v, relu):
        # BatchNorm2d training-mode forward; gamma=1, beta=0, biased variance.
        mean = jnp.sum(v, axis=0, keepdims=True) * (1.0 / BS)
        c = v - mean
        var = jnp.sum(c * c, axis=0, keepdims=True) * (1.0 / BS)
        y = c * lax.rsqrt(var + BN_EPS)
        return jnp.maximum(y, 0.0) if relu else y

    # --- BasicBlock: relu(bn2(conv2(relu(bn1(conv1(x))))) + x) ----------
    out = bnorm(conv3x3(xp, wc1_ref), relu=True)
    out = bnorm(conv3x3(out, wc2_ref), relu=False)
    xb = jnp.maximum(out + xp, 0.0)                                  # (BS, DM)

    # --- q / k / v --------------------------------------------------------
    q = jnp.maximum(jnp.dot(xb.astype(MXU_DTYPE), wq_ref[...],
                            preferred_element_type=f32) + bq_ref[...], 0.0)
    kv = jnp.maximum(conv3x3(xb, wkv_ref) + bkv_ref[...], 0.0)       # (BS, 2*DM)
    k = kv[:, :DM]
    v = kv[:, DM:]

    # --- per-batch self attention (softmax over keys) ---------------------
    scale = 1.0 / math.sqrt(DM)
    q3 = (q * scale).reshape(B, S, DM).astype(MXU_DTYPE)
    k3 = k.reshape(B, S, DM).astype(MXU_DTYPE)
    v3 = v.reshape(B, S, DM).astype(MXU_DTYPE)
    sim = jnp.einsum('bqd,bkd->bqk', q3, k3, preferred_element_type=f32)
    sim = sim - jnp.max(sim, axis=-1, keepdims=True)
    p = jnp.exp(sim)
    p = p * pl.reciprocal(jnp.sum(p, axis=-1, keepdims=True), approx=True)
    att = jnp.einsum('bqk,bkd->bqd', p.astype(MXU_DTYPE), v3,
                     preferred_element_type=f32)                     # (B, S, DM)

    res = att.reshape(BS, DM) + xb                                   # residual + x
    o_ref[0] = bnorm(res, relu=False).astype(o_ref.dtype)            # norm(...)


def encoder_forward(x_pair, p, *, B, H, W, IC, DM):
    """x_pair: (2, B*H*W, IC) stacked {source, driving} rows -> (2, B*H*W, DM)."""
    BS = B * H * W
    wproj, bproj = p['proj']
    wq, bq = p['convq']
    wkv, bkv = p['convkv']
    const2 = lambda e: (0, 0)
    return pl.pallas_call(
        functools.partial(_encoder_kernel, B=B, H=H, W=W, DM=DM),
        out_shape=jax.ShapeDtypeStruct((2, BS, DM), jnp.float32),
        grid_spec=pltpu.PrefetchScalarGridSpec(
            num_scalar_prefetch=0, grid=(2,),
            in_specs=[
                pl.BlockSpec((1, BS, IC), lambda e: (e, 0, 0)),
                pl.BlockSpec((IC, DM), const2),
                pl.BlockSpec((1, DM), const2),
                pl.BlockSpec((9 * DM, DM), const2),
                pl.BlockSpec((9 * DM, DM), const2),
                pl.BlockSpec((DM, DM), const2),
                pl.BlockSpec((1, DM), const2),
                pl.BlockSpec((9 * DM, 2 * DM), const2),
                pl.BlockSpec((1, 2 * DM), const2),
            ],
            out_specs=pl.BlockSpec((1, BS, DM), lambda e: (e, 0, 0)),
            scratch_shapes=[pltpu.VMEM((B, H + 2, W + 2, DM), jnp.float32)]),
        compiler_params=pltpu.CompilerParams(dimension_semantics=("parallel",)),
    )(x_pair, wproj, bproj, p['blk_conv1'], p['blk_conv2'], wq, bq, wkv, bkv)


# ----------------------------------------------------------------------------
# Kernel 2: cross attention head (q/k/v projections, attention, project_back,
#           diff_conv) -- one pallas_call, grid over batch.
# ----------------------------------------------------------------------------

def _cross_kernel(rs_ref, rd_ref, wq_ref, bq_ref, wkv_ref, bkv_ref,
                  wpb_ref, bpb_ref, wdf_ref, bdf_ref,
                  res_ref, fr_ref, *, PD):
    f32 = jnp.float32
    rs = rs_ref[0]                                                   # (S, DM)
    rd = rd_ref[0]                                                   # (S, DM)

    q = (jnp.dot(rs.astype(MXU_DTYPE), wq_ref[...],
                 preferred_element_type=f32) + bq_ref[...])          # (S, PD)
    kv = (jnp.dot(rd.astype(MXU_DTYPE), wkv_ref[...],
                  preferred_element_type=f32) + bkv_ref[...])        # (S, 2*PD)
    k = kv[:, :PD]
    v = kv[:, PD:]

    scale = 1.0 / math.sqrt(PD)
    qb = (q * scale).astype(MXU_DTYPE)
    sim = jnp.einsum('qd,kd->qk', qb, k.astype(MXU_DTYPE),
                     preferred_element_type=f32)                     # (S, S)
    sim = sim - jnp.max(sim, axis=-1, keepdims=True)
    p = jnp.exp(sim)
    p = p * pl.reciprocal(jnp.sum(p, axis=-1, keepdims=True), approx=True)
    res = jnp.dot(p.astype(MXU_DTYPE), v.astype(MXU_DTYPE),
                  preferred_element_type=f32)                        # (S, PD)
    res_ref[0] = res.astype(res_ref.dtype)

    pb = jnp.maximum(jnp.dot(res.astype(MXU_DTYPE), wpb_ref[...],
                             preferred_element_type=f32) + bpb_ref[...], 0.0)
    fr = jnp.maximum(jnp.dot(pb.astype(MXU_DTYPE), wdf_ref[...],
                             preferred_element_type=f32) + bdf_ref[...], 0.0)
    fr_ref[0] = fr.astype(fr_ref.dtype)


def cross_forward(enc, p, *, B, S, DM, PD, IC):
    """enc: (2, B*S, DM) encoder outputs -> (residual (B,S,PD), refined (B,S,IC))."""
    wq, bq = p['conv_query']
    wkv, bkv = p['conv_kv']
    wpb, bpb = p['project_back']
    wdf, bdf = p['diff_conv']
    const2 = lambda b: (0, 0)
    return pl.pallas_call(
        functools.partial(_cross_kernel, PD=PD),
        out_shape=(jax.ShapeDtypeStruct((B, S, PD), jnp.float32),
                   jax.ShapeDtypeStruct((B, S, IC), jnp.float32)),
        grid_spec=pltpu.PrefetchScalarGridSpec(
            num_scalar_prefetch=0, grid=(B,),
            in_specs=[
                pl.BlockSpec((1, S, DM), lambda b: (0, b, 0)),   # source rows
                pl.BlockSpec((1, S, DM), lambda b: (1, b, 0)),   # driving rows
                pl.BlockSpec((DM, PD), const2),
                pl.BlockSpec((1, PD), const2),
                pl.BlockSpec((DM, 2 * PD), const2),
                pl.BlockSpec((1, 2 * PD), const2),
                pl.BlockSpec((PD, IC), const2),
                pl.BlockSpec((1, IC), const2),
                pl.BlockSpec((IC, IC), const2),
                pl.BlockSpec((1, IC), const2),
            ],
            out_specs=(pl.BlockSpec((1, S, PD), lambda b: (b, 0, 0)),
                       pl.BlockSpec((1, S, IC), lambda b: (b, 0, 0)))),
        compiler_params=pltpu.CompilerParams(dimension_semantics=("parallel",)),
    )(enc, enc, wq, bq, wkv, bkv, wpb, bpb, wdf, bdf)


# ----------------------------------------------------------------------------
# Parameter init (deterministic, synthetic)
# ----------------------------------------------------------------------------

def init_params(key, in_channel, d_model, proj_dim):
    keys = iter(jax.random.split(key, 24))

    def mat(cin, cout):
        w = jax.random.normal(next(keys), (cin, cout), jnp.float32) / math.sqrt(cin)
        return w.astype(MXU_DTYPE)

    def mat3x3(cin, cout):
        # im2col layout: row = (ky*3+kx)*cin + ci
        w = (jax.random.normal(next(keys), (9 * cin, cout), jnp.float32)
             / math.sqrt(9 * cin))
        return w.astype(MXU_DTYPE)

    def bias(cout):
        return jax.random.normal(next(keys), (1, cout), jnp.float32) * 0.01

    p = {}
    # ExpressionEncoder (shared for source & driving, as in the torch module)
    p['proj'] = (mat(in_channel, d_model), bias(d_model))      # projection 1x1
    p['blk_conv1'] = mat3x3(d_model, d_model)                  # BasicBlock.conv1 (no bias)
    p['blk_conv2'] = mat3x3(d_model, d_model)                  # BasicBlock.conv2 (no bias)
    p['convq'] = (mat(d_model, d_model), bias(d_model))        # convq 1x1
    p['convkv'] = (mat3x3(d_model, 2 * d_model), bias(2 * d_model))  # convkv 3x3
    # CrossConvAttention head: conv_key & conv_value fused into one wide matmul
    p['conv_query'] = (mat(d_model, proj_dim), bias(proj_dim))
    p['conv_kv'] = (mat(d_model, 2 * proj_dim), bias(2 * proj_dim))
    # project_back: Conv2d(d_model -> in_channel) applied to the proj_dim-channel
    # residual (the torch module implicitly requires proj_dim == d_model).
    p['project_back'] = (mat(proj_dim, in_channel), bias(in_channel))
    p['diff_conv'] = (mat(in_channel, in_channel), bias(in_channel))
    return p


# ----------------------------------------------------------------------------
# Forward pass
# ----------------------------------------------------------------------------

def cross_conv_attention(p, features_deformed, features_driving, d_model, proj_dim):
    """Inputs: (B, c, d, h, w) like the PyTorch module. Outputs are NHWC."""
    B, c, d, h, w = features_deformed.shape
    IC = c * d
    S = h * w

    def to_rows(f):
        # (b, c, d, h, w) -> (b, c*d, h, w) -> NHWC -> (b*h*w, c*d)
        nhwc = jnp.transpose(f.reshape(B, IC, h, w), (0, 2, 3, 1))
        return nhwc.reshape(B * S, IC)

    x_pair = jnp.stack([to_rows(features_deformed),
                        to_rows(features_driving)])              # (2, B*S, IC)

    enc = encoder_forward(x_pair, p, B=B, H=h, W=w, IC=IC, DM=d_model)  # (2, B*S, DM)

    out = {}
    out['expr_source'] = enc[0].reshape(B, h, w, d_model)
    out['expr_driving'] = enc[1].reshape(B, h, w, d_model)

    res, fr = cross_forward(enc, p, B=B, S=S, DM=d_model, PD=proj_dim, IC=IC)
    out['residual'] = res.reshape(B, h, w, proj_dim)
    out['features_refined'] = fr.reshape(B, h, w, IC)
    return out


# ----------------------------------------------------------------------------
# Demo
# ----------------------------------------------------------------------------

if __name__ == "__main__":
    key = jax.random.PRNGKey(0)
    # Small shapes: b=2, c=4, d=8, h=w=8  ->  in_channel = c*d = 32
    B, c, d, h, w = 2, 4, 8, 8, 8
    IN_CHANNEL = c * d      # 32
    D_MODEL = 32
    PROJ_DIM = 32

    kp, k1, k2 = jax.random.split(key, 3)
    params = init_params(kp, IN_CHANNEL, D_MODEL, PROJ_DIM)
    features_deformed = jax.random.normal(k1, (B, c, d, h, w), jnp.float32)
    features_driving = jax.random.normal(k2, (B, c, d, h, w), jnp.float32)

    fwd = jax.jit(functools.partial(cross_conv_attention,
                                    d_model=D_MODEL, proj_dim=PROJ_DIM))
    out = fwd(params, features_deformed, features_driving)
    jax.block_until_ready(out)

    assert out['expr_source'].shape == (B, h, w, D_MODEL)
    assert out['expr_driving'].shape == (B, h, w, D_MODEL)
    assert out['residual'].shape == (B, h, w, PROJ_DIM)
    assert out['features_refined'].shape == (B, h, w, IN_CHANNEL)
    print("KERNEL_OK")
</pallas_src>

<mosaic_0001>
module attributes {stable_mosaic.version = 11 : i64} {
  func.func @_cross_kernel(%arg0: i32, %arg1: memref<1x64x32xf32, #tpu.memory_space<vmem>>, %arg2: memref<1x64x32xf32, #tpu.memory_space<vmem>>, %arg3: memref<32x32xbf16, #tpu.memory_space<vmem>>, %arg4: memref<1x32xf32, #tpu.memory_space<vmem>>, %arg5: memref<32x64xbf16, #tpu.memory_space<vmem>>, %arg6: memref<1x64xf32, #tpu.memory_space<vmem>>, %arg7: memref<32x32xbf16, #tpu.memory_space<vmem>>, %arg8: memref<1x32xf32, #tpu.memory_space<vmem>>, %arg9: memref<32x32xbf16, #tpu.memory_space<vmem>>, %arg10: memref<1x32xf32, #tpu.memory_space<vmem>>, %arg11: memref<1x64x32xf32, #tpu.memory_space<vmem>>, %arg12: memref<1x64x32xf32, #tpu.memory_space<vmem>>) attributes {dimension_semantics = [#tpu.dimension_semantics<parallel>], iteration_bounds = array<i64: 2>, scalar_prefetch = 0 : i64, scratch_operands = 0 : i64, tpu.core_type = #tpu.core_type<tc>, window_params = [{transform_indices = @transform_0, window_bounds = array<i64: 1, 64, 32>}, {transform_indices = @transform_1, window_bounds = array<i64: 1, 64, 32>}, {pipeline_mode = #tpu.pipeline_mode<synchronous>, transform_indices = @transform_2, window_bounds = array<i64: 32, 32>}, {pipeline_mode = #tpu.pipeline_mode<synchronous>, transform_indices = @transform_3, window_bounds = array<i64: 1, 32>}, {pipeline_mode = #tpu.pipeline_mode<synchronous>, transform_indices = @transform_4, window_bounds = array<i64: 32, 64>}, {pipeline_mode = #tpu.pipeline_mode<synchronous>, transform_indices = @transform_5, window_bounds = array<i64: 1, 64>}, {pipeline_mode = #tpu.pipeline_mode<synchronous>, transform_indices = @transform_6, window_bounds = array<i64: 32, 32>}, {pipeline_mode = #tpu.pipeline_mode<synchronous>, transform_indices = @transform_7, window_bounds = array<i64: 1, 32>}, {pipeline_mode = #tpu.pipeline_mode<synchronous>, transform_indices = @transform_8, window_bounds = array<i64: 32, 32>}, {pipeline_mode = #tpu.pipeline_mode<synchronous>, transform_indices = @transform_9, window_bounds = array<i64: 1, 32>}, {transform_indices = @transform_10, window_bounds = array<i64: 1, 64, 32>}, {transform_indices = @transform_11, window_bounds = array<i64: 1, 64, 32>}]} {
    %c0 = arith.constant 0 : index
    %c0_0 = arith.constant 0 : index
    %c0_1 = arith.constant 0 : index
    %0 = vector.load %arg1[%c0, %c0_0, %c0_1] : memref<1x64x32xf32, #tpu.memory_space<vmem>>, vector<1x64x32xf32>
    %1 = vector.shape_cast %0 : vector<1x64x32xf32> to vector<64x32xf32>
    %c0_2 = arith.constant 0 : index
    %c0_3 = arith.constant 0 : index
    %c0_4 = arith.constant 0 : index
    %2 = vector.load %arg2[%c0_2, %c0_3, %c0_4] : memref<1x64x32xf32, #tpu.memory_space<vmem>>, vector<1x64x32xf32>
    %3 = vector.shape_cast %2 : vector<1x64x32xf32> to vector<64x32xf32>
    %4 = arith.truncf %1 : vector<64x32xf32> to vector<64x32xbf16>
    %c0_5 = arith.constant 0 : index
    %c0_6 = arith.constant 0 : index
    %5 = vector.load %arg3[%c0_5, %c0_6] : memref<32x32xbf16, #tpu.memory_space<vmem>>, vector<32x32xbf16>
    %cst = arith.constant dense<0.000000e+00> : vector<64x32xf32>
    %6 = tpu.matmul %4, %5, %cst {dimension_numbers = #tpu.dot_dimension_numbers<[1], [0], [0], [1], [0, 0, 1, 1], [], []>} : vector<64x32xbf16>, vector<32x32xbf16>, vector<64x32xf32> -> vector<64x32xf32>
    %c0_7 = arith.constant 0 : index
    %c0_8 = arith.constant 0 : index
    %7 = vector.load %arg4[%c0_7, %c0_8] : memref<1x32xf32, #tpu.memory_space<vmem>>, vector<1x32xf32>
    %8 = vector.broadcast %7 : vector<1x32xf32> to vector<64x32xf32>
    %9 = arith.addf %6, %8 : vector<64x32xf32>
    %10 = arith.truncf %3 : vector<64x32xf32> to vector<64x32xbf16>
    %c0_9 = arith.constant 0 : index
    %c0_10 = arith.constant 0 : index
    %11 = vector.load %arg5[%c0_9, %c0_10] : memref<32x64xbf16, #tpu.memory_space<vmem>>, vector<32x64xbf16>
    %cst_11 = arith.constant dense<0.000000e+00> : vector<64x64xf32>
    %12 = tpu.matmul %10, %11, %cst_11 {dimension_numbers = #tpu.dot_dimension_numbers<[1], [0], [0], [1], [0, 0, 1, 1], [], []>} : vector<64x32xbf16>, vector<32x64xbf16>, vector<64x64xf32> -> vector<64x64xf32>
    %c0_12 = arith.constant 0 : index
    %c0_13 = arith.constant 0 : index
    %13 = vector.load %arg6[%c0_12, %c0_13] : memref<1x64xf32, #tpu.memory_space<vmem>>, vector<1x64xf32>
    %14 = vector.broadcast %13 : vector<1x64xf32> to vector<64x64xf32>
    %15 = arith.addf %12, %14 : vector<64x64xf32>
    %16 = vector.extract_strided_slice %15 {offsets = [0, 0], sizes = [64, 32], strides = [1, 1]} : vector<64x64xf32> to vector<64x32xf32>
    %17 = vector.extract_strided_slice %15 {offsets = [0, 32], sizes = [64, 32], strides = [1, 1]} : vector<64x64xf32> to vector<64x32xf32>
    %cst_14 = arith.constant 0.176776692 : f32
    %18 = vector.broadcast %cst_14 : f32 to vector<64x32xf32>
    %19 = arith.mulf %9, %18 : vector<64x32xf32>
    %20 = arith.truncf %19 : vector<64x32xf32> to vector<64x32xbf16>
    %21 = arith.truncf %16 : vector<64x32xf32> to vector<64x32xbf16>
    "tpu.trace_start"() <{level = 10 : i32, message = "qd,kd->qk"}> : () -> ()
    %cst_15 = arith.constant dense<0.000000e+00> : vector<64x64xf32>
    %22 = tpu.matmul %20, %21, %cst_15 {dimension_numbers = #tpu.dot_dimension_numbers<[1], [1], [0], [0], [0, 0, 1, 0], [], []>} : vector<64x32xbf16>, vector<64x32xbf16>, vector<64x64xf32> -> vector<64x64xf32>
    "tpu.trace_stop"() : () -> ()
    %cst_16 = arith.constant dense<0xFF800000> : vector<64xf32>
    %23 = vector.multi_reduction <maximumf>, %22, %cst_16 [1] : vector<64x64xf32> to vector<64xf32>
    %24 = vector.shape_cast %23 : vector<64xf32> to vector<64x1xf32>
    %25 = vector.broadcast %24 : vector<64x1xf32> to vector<64x64xf32>
    %26 = arith.subf %22, %25 : vector<64x64xf32>
    %27 = math.exp %26 : vector<64x64xf32>
    %cst_17 = arith.constant dense<0.000000e+00> : vector<64xf32>
    %28 = vector.multi_reduction <add>, %27, %cst_17 [1] : vector<64x64xf32> to vector<64xf32>
    %29 = vector.shape_cast %28 : vector<64xf32> to vector<64x1xf32>
    %30 = tpu.reciprocal %29 {approx = true} : vector<64x1xf32> -> vector<64x1xf32>
    %31 = vector.broadcast %30 : vector<64x1xf32> to vector<64x64xf32>
    %32 = arith.mulf %27, %31 : vector<64x64xf32>
    %33 = arith.truncf %32 : vector<64x64xf32> to vector<64x64xbf16>
    %34 = arith.truncf %17 : vector<64x32xf32> to vector<64x32xbf16>
    %cst_18 = arith.constant dense<0.000000e+00> : vector<64x32xf32>
    %35 = tpu.matmul %33, %34, %cst_18 {dimension_numbers = #tpu.dot_dimension_numbers<[1], [0], [0], [1], [0, 0, 1, 1], [], []>} : vector<64x64xbf16>, vector<64x32xbf16>, vector<64x32xf32> -> vector<64x32xf32>
    %c0_19 = arith.constant 0 : index
    %c0_20 = arith.constant 0 : index
    %c0_21 = arith.constant 0 : index
    %36 = vector.load %arg11[%c0_19, %c0_20, %c0_21] : memref<1x64x32xf32, #tpu.memory_space<vmem>>, vector<1x64x32xf32>
    %37 = vector.shape_cast %36 : vector<1x64x32xf32> to vector<64x32xf32>
    %38 = vector.shape_cast %35 : vector<64x32xf32> to vector<1x64x32xf32>
    tpu.vector_store %arg11[%c0_19, %c0_20, %c0_21], %38 {strides = array<i32>} : memref<1x64x32xf32, #tpu.memory_space<vmem>>, vector<1x64x32xf32>,
    %39 = arith.truncf %35 : vector<64x32xf32> to vector<64x32xbf16>
    %c0_22 = arith.constant 0 : index
    %c0_23 = arith.constant 0 : index
    %40 = vector.load %arg7[%c0_22, %c0_23] : memref<32x32xbf16, #tpu.memory_space<vmem>>, vector<32x32xbf16>
    %cst_24 = arith.constant dense<0.000000e+00> : vector<64x32xf32>
    %41 = tpu.matmul %39, %40, %cst_24 {dimension_numbers = #tpu.dot_dimension_numbers<[1], [0], [0], [1], [0, 0, 1, 1], [], []>} : vector<64x32xbf16>, vector<32x32xbf16>, vector<64x32xf32> -> vector<64x32xf32>
    %c0_25 = arith.constant 0 : index
    %c0_26 = arith.constant 0 : index
    %42 = vector.load %arg8[%c0_25, %c0_26] : memref<1x32xf32, #tpu.memory_space<vmem>>, vector<1x32xf32>
    %43 = vector.broadcast %42 : vector<1x32xf32> to vector<64x32xf32>
    %44 = arith.addf %41, %43 : vector<64x32xf32>
    %cst_27 = arith.constant 0.000000e+00 : f32
    %45 = vector.broadcast %cst_27 : f32 to vector<64x32xf32>
    %46 = arith.maximumf %44, %45 : vector<64x32xf32>
    %47 = arith.truncf %46 : vector<64x32xf32> to vector<64x32xbf16>
    %c0_28 = arith.constant 0 : index
    %c0_29 = arith.constant 0 : index
    %48 = vector.load %arg9[%c0_28, %c0_29] : memref<32x32xbf16, #tpu.memory_space<vmem>>, vector<32x32xbf16>
    %cst_30 = arith.constant dense<0.000000e+00> : vector<64x32xf32>
    %49 = tpu.matmul %47, %48, %cst_30 {dimension_numbers = #tpu.dot_dimension_numbers<[1], [0], [0], [1], [0, 0, 1, 1], [], []>} : vector<64x32xbf16>, vector<32x32xbf16>, vector<64x32xf32> -> vector<64x32xf32>
    %c0_31 = arith.constant 0 : index
    %c0_32 = arith.constant 0 : index
    %50 = vector.load %arg10[%c0_31, %c0_32] : memref<1x32xf32, #tpu.memory_space<vmem>>, vector<1x32xf32>
    %51 = vector.broadcast %50 : vector<1x32xf32> to vector<64x32xf32>
    %52 = arith.addf %49, %51 : vector<64x32xf32>
    %cst_33 = arith.constant 0.000000e+00 : f32
    %53 = vector.broadcast %cst_33 : f32 to vector<64x32xf32>
    %54 = arith.maximumf %52, %53 : vector<64x32xf32>
    %c0_34 = arith.constant 0 : index
    %c0_35 = arith.constant 0 : index
    %c0_36 = arith.constant 0 : index
    %55 = vector.load %arg12[%c0_34, %c0_35, %c0_36] : memref<1x64x32xf32, #tpu.memory_space<vmem>>, vector<1x64x32xf32>
    %56 = vector.shape_cast %55 : vector<1x64x32xf32> to vector<64x32xf32>
    %57 = vector.shape_cast %54 : vector<64x32xf32> to vector<1x64x32xf32>
    tpu.vector_store %arg12[%c0_34, %c0_35, %c0_36], %57 {strides = array<i32>} : memref<1x64x32xf32, #tpu.memory_space<vmem>>, vector<1x64x32xf32>,
    return
  }
  func.func @transform_0(%arg0: i32) -> (i32, i32, i32) {
    %c0_i32 = arith.constant 0 : i32
    %c0_i32_0 = arith.constant 0 : i32
    %c0_i32_1 = arith.constant 0 : i32
    return %c0_i32, %arg0, %c0_i32_0 : i32, i32, i32
  }
  func.func @transform_1(%arg0: i32) -> (i32, i32, i32) {
    %c1_i32 = arith.constant 1 : i32
    %c0_i32 = arith.constant 0 : i32
    %c0_i32_0 = arith.constant 0 : i32
    return %c1_i32, %arg0, %c0_i32 : i32, i32, i32
  }
  func.func @transform_2(%arg0: i32) -> (i32, i32) {
    %c0_i32 = arith.constant 0 : i32
    %c0_i32_0 = arith.constant 0 : i32
    %c0_i32_1 = arith.constant 0 : i32
    return %c0_i32, %c0_i32_0 : i32, i32
  }
  func.func @transform_3(%arg0: i32) -> (i32, i32) {
    %c0_i32 = arith.constant 0 : i32
    %c0_i32_0 = arith.constant 0 : i32
    %c0_i32_1 = arith.constant 0 : i32
    return %c0_i32, %c0_i32_0 : i32, i32
  }
  func.func @transform_4(%arg0: i32) -> (i32, i32) {
    %c0_i32 = arith.constant 0 : i32
    %c0_i32_0 = arith.constant 0 : i32
    %c0_i32_1 = arith.constant 0 : i32
    return %c0_i32, %c0_i32_0 : i32, i32
  }
  func.func @transform_5(%arg0: i32) -> (i32, i32) {
    %c0_i32 = arith.constant 0 : i32
    %c0_i32_0 = arith.constant 0 : i32
    %c0_i32_1 = arith.constant 0 : i32
    return %c0_i32, %c0_i32_0 : i32, i32
  }
  func.func @transform_6(%arg0: i32) -> (i32, i32) {
    %c0_i32 = arith.constant 0 : i32
    %c0_i32_0 = arith.constant 0 : i32
    %c0_i32_1 = arith.constant 0 : i32
    return %c0_i32, %c0_i32_0 : i32, i32
  }
  func.func @transform_7(%arg0: i32) -> (i32, i32) {
    %c0_i32 = arith.constant 0 : i32
    %c0_i32_0 = arith.constant 0 : i32
    %c0_i32_1 = arith.constant 0 : i32
    return %c0_i32, %c0_i32_0 : i32, i32
  }
  func.func @transform_8(%arg0: i32) -> (i32, i32) {
    %c0_i32 = arith.constant 0 : i32
    %c0_i32_0 = arith.constant 0 : i32
    %c0_i32_1 = arith.constant 0 : i32
    return %c0_i32, %c0_i32_0 : i32, i32
  }
  func.func @transform_9(%arg0: i32) -> (i32, i32) {
    %c0_i32 = arith.constant 0 : i32
    %c0_i32_0 = arith.constant 0 : i32
    %c0_i32_1 = arith.constant 0 : i32
    return %c0_i32, %c0_i32_0 : i32, i32
  }
  func.func @transform_10(%arg0: i32) -> (i32, i32, i32) {
    %c0_i32 = arith.constant 0 : i32
    %c0_i32_0 = arith.constant 0 : i32
    %c0_i32_1 = arith.constant 0 : i32
    return %arg0, %c0_i32, %c0_i32_0 : i32, i32, i32
  }
  func.func @transform_11(%arg0: i32) -> (i32, i32, i32) {
    %c0_i32 = arith.constant 0 : i32
    %c0_i32_0 = arith.constant 0 : i32
    %c0_i32_1 = arith.constant 0 : i32
    return %arg0, %c0_i32, %c0_i32_0 : i32, i32, i32
  }
}

module attributes {stable_mosaic.version = 11 : i64} {
  func.func @_encoder_kernel(%arg0: i32, %arg1: memref<1x128x32xf32, #tpu.memory_space<vmem>>, %arg2: memref<32x32xbf16, #tpu.memory_space<vmem>>, %arg3: memref<1x32xf32, #tpu.memory_space<vmem>>, %arg4: memref<288x32xbf16, #tpu.memory_space<vmem>>, %arg5: memref<288x32xbf16, #tpu.memory_space<vmem>>, %arg6: memref<32x32xbf16, #tpu.memory_space<vmem>>, %arg7: memref<1x32xf32, #tpu.memory_space<vmem>>, %arg8: memref<288x64xbf16, #tpu.memory_space<vmem>>, %arg9: memref<1x64xf32, #tpu.memory_space<vmem>>, %arg10: memref<1x128x32xf32, #tpu.memory_space<vmem>>, %arg11: memref<2x10x10x32xf32, #tpu.memory_space<vmem>>) attributes {dimension_semantics = [#tpu.dimension_semantics<parallel>], iteration_bounds = array<i64: 2>, scalar_prefetch = 0 : i64, scratch_operands = 1 : i64, tpu.core_type = #tpu.core_type<tc>, window_params = [{transform_indices = @transform_0, window_bounds = array<i64: 1, 128, 32>}, {pipeline_mode = #tpu.pipeline_mode<synchronous>, transform_indices = @transform_1, window_bounds = array<i64: 32, 32>}, {pipeline_mode = #tpu.pipeline_mode<synchronous>, transform_indices = @transform_2, window_bounds = array<i64: 1, 32>}, {pipeline_mode = #tpu.pipeline_mode<synchronous>, transform_indices = @transform_3, window_bounds = array<i64: 288, 32>}, {pipeline_mode = #tpu.pipeline_mode<synchronous>, transform_indices = @transform_4, window_bounds = array<i64: 288, 32>}, {pipeline_mode = #tpu.pipeline_mode<synchronous>, transform_indices = @transform_5, window_bounds = array<i64: 32, 32>}, {pipeline_mode = #tpu.pipeline_mode<synchronous>, transform_indices = @transform_6, window_bounds = array<i64: 1, 32>}, {pipeline_mode = #tpu.pipeline_mode<synchronous>, transform_indices = @transform_7, window_bounds = array<i64: 288, 64>}, {pipeline_mode = #tpu.pipeline_mode<synchronous>, transform_indices = @transform_8, window_bounds = array<i64: 1, 64>}, {transform_indices = @transform_9, window_bounds = array<i64: 1, 128, 32>}]} {
    %c0 = arith.constant 0 : index
    %c0_0 = arith.constant 0 : index
    %c0_1 = arith.constant 0 : index
    %0 = vector.load %arg1[%c0, %c0_0, %c0_1] : memref<1x128x32xf32, #tpu.memory_space<vmem>>, vector<1x128x32xf32>
    %1 = vector.shape_cast %0 : vector<1x128x32xf32> to vector<128x32xf32>
    %2 = arith.truncf %1 : vector<128x32xf32> to vector<128x32xbf16>
    %c0_2 = arith.constant 0 : index
    %c0_3 = arith.constant 0 : index
    %3 = vector.load %arg2[%c0_2, %c0_3] : memref<32x32xbf16, #tpu.memory_space<vmem>>, vector<32x32xbf16>
    %cst = arith.constant dense<0.000000e+00> : vector<128x32xf32>
    %4 = tpu.matmul %2, %3, %cst {dimension_numbers = #tpu.dot_dimension_numbers<[1], [0], [0], [1], [0, 0, 1, 1], [], []>} : vector<128x32xbf16>, vector<32x32xbf16>, vector<128x32xf32> -> vector<128x32xf32>
    %c0_4 = arith.constant 0 : index
    %c0_5 = arith.constant 0 : index
    %5 = vector.load %arg3[%c0_4, %c0_5] : memref<1x32xf32, #tpu.memory_space<vmem>>, vector<1x32xf32>
    %6 = vector.broadcast %5 : vector<1x32xf32> to vector<128x32xf32>
    %7 = arith.addf %4, %6 : vector<128x32xf32>
    %cst_6 = arith.constant 0.000000e+00 : f32
    %8 = vector.broadcast %cst_6 : f32 to vector<2x10x10x32xf32>
    %c0_7 = arith.constant 0 : index
    %c0_8 = arith.constant 0 : index
    %c0_9 = arith.constant 0 : index
    %c0_10 = arith.constant 0 : index
    %9 = vector.load %arg11[%c0_7, %c0_8, %c0_9, %c0_10] : memref<2x10x10x32xf32, #tpu.memory_space<vmem>>, vector<2x10x10x32xf32>
    tpu.vector_store %arg11[%c0_7, %c0_8, %c0_9, %c0_10], %8 {strides = array<i32>} : memref<2x10x10x32xf32, #tpu.memory_space<vmem>>, vector<2x10x10x32xf32>,
    %10 = vector.shape_cast %7 : vector<128x32xf32> to vector<2x8x8x32xf32>
    %c0_11 = arith.constant 0 : index
    %c1 = arith.constant 1 : index
    %c1_12 = arith.constant 1 : index
    %c0_13 = arith.constant 0 : index
    %11 = vector.load %arg11[%c0_11, %c1, %c1_12, %c0_13] : memref<2x10x10x32xf32, #tpu.memory_space<vmem>>, vector<2x8x8x32xf32>
    tpu.vector_store %arg11[%c0_11, %c1, %c1_12, %c0_13], %10 {strides = array<i32>} : memref<2x10x10x32xf32, #tpu.memory_space<vmem>>, vector<2x8x8x32xf32>,
    %c0_14 = arith.constant 0 : index
    %c0_15 = arith.constant 0 : index
    %c0_16 = arith.constant 0 : index
    %c0_17 = arith.constant 0 : index
    %12 = vector.load %arg11[%c0_14, %c0_15, %c0_16, %c0_17] : memref<2x10x10x32xf32, #tpu.memory_space<vmem>>, vector<2x8x8x32xf32>
    %13 = vector.shape_cast %12 : vector<2x8x8x32xf32> to vector<128x32xf32>
    %c0_18 = arith.constant 0 : index
    %c0_19 = arith.constant 0 : index
    %c1_20 = arith.constant 1 : index
    %c0_21 = arith.constant 0 : index
    %14 = vector.load %arg11[%c0_18, %c0_19, %c1_20, %c0_21] : memref<2x10x10x32xf32, #tpu.memory_space<vmem>>, vector<2x8x8x32xf32>
    %15 = vector.shape_cast %14 : vector<2x8x8x32xf32> to vector<128x32xf32>
    %c0_22 = arith.constant 0 : index
    %c0_23 = arith.constant 0 : index
    %c2 = arith.constant 2 : index
    %c0_24 = arith.constant 0 : index
    %16 = vector.load %arg11[%c0_22, %c0_23, %c2, %c0_24] : memref<2x10x10x32xf32, #tpu.memory_space<vmem>>, vector<2x8x8x32xf32>
    %17 = vector.shape_cast %16 : vector<2x8x8x32xf32> to vector<128x32xf32>
    %c0_25 = arith.constant 0 : index
    %c1_26 = arith.constant 1 : index
    %c0_27 = arith.constant 0 : index
    %c0_28 = arith.constant 0 : index
    %18 = vector.load %arg11[%c0_25, %c1_26, %c0_27, %c0_28] : memref<2x10x10x32xf32, #tpu.memory_space<vmem>>, vector<2x8x8x32xf32>
    %19 = vector.shape_cast %18 : vector<2x8x8x32xf32> to vector<128x32xf32>
    %c0_29 = arith.constant 0 : index
    %c1_30 = arith.constant 1 : index
    %c1_31 = arith.constant 1 : index
    %c0_32 = arith.constant 0 : index
    %20 = vector.load %arg11[%c0_29, %c1_30, %c1_31, %c0_32] : memref<2x10x10x32xf32, #tpu.memory_space<vmem>>, vector<2x8x8x32xf32>
    %21 = vector.shape_cast %20 : vector<2x8x8x32xf32> to vector<128x32xf32>
    %c0_33 = arith.constant 0 : index
    %c1_34 = arith.constant 1 : index
    %c2_35 = arith.constant 2 : index
    %c0_36 = arith.constant 0 : index
    %22 = vector.load %arg11[%c0_33, %c1_34, %c2_35, %c0_36] : memref<2x10x10x32xf32, #tpu.memory_space<vmem>>, vector<2x8x8x32xf32>
    %23 = vector.shape_cast %22 : vector<2x8x8x32xf32> to vector<128x32xf32>
    %c0_37 = arith.constant 0 : index
    %c2_38 = arith.constant 2 : index
    %c0_39 = arith.constant 0 : index
    %c0_40 = arith.constant 0 : index
    %24 = vector.load %arg11[%c0_37, %c2_38, %c0_39, %c0_40] : memref<2x10x10x32xf32, #tpu.memory_space<vmem>>, vector<2x8x8x32xf32>
    %25 = vector.shape_cast %24 : vector<2x8x8x32xf32> to vector<128x32xf32>
    %c0_41 = arith.constant 0 : index
    %c2_42 = arith.constant 2 : index
    %c1_43 = arith.constant 1 : index
    %c0_44 = arith.constant 0 : index
    %26 = vector.load %arg11[%c0_41, %c2_42, %c1_43, %c0_44] : memref<2x10x10x32xf32, #tpu.memory_space<vmem>>, vector<2x8x8x32xf32>
    %27 = vector.shape_cast %26 : vector<2x8x8x32xf32> to vector<128x32xf32>
    %c0_45 = arith.constant 0 : index
    %c2_46 = arith.constant 2 : index
    %c2_47 = arith.constant 2 : index
    %c0_48 = arith.constant 0 : index
    %28 = vector.load %arg11[%c0_45, %c2_46, %c2_47, %c0_48] : memref<2x10x10x32xf32, #tpu.memory_space<vmem>>, vector<2x8x8x32xf32>
    %29 = vector.shape_cast %28 : vector<2x8x8x32xf32> to vector<128x32xf32>
    %30 = tpu.concatenate %13, %15, %17, %19, %21, %23, %25, %27, %29 in 1 : vector<128x32xf32>, vector<128x32xf32>, vector<128x32xf32>, vector<128x32xf32>, vector<128x32xf32>, vector<128x32xf32>, vector<128x32xf32>, vector<128x32xf32>, vector<128x32xf32> -> vector<128x288xf32>
    %31 = arith.truncf %30 : vector<128x288xf32> to vector<128x288xbf16>
    %c0_49 = arith.constant 0 : index
    %c0_50 = arith.constant 0 : index
    %32 = vector.load %arg4[%c0_49, %c0_50] : memref<288x32xbf16, #tpu.memory_space<vmem>>, vector<288x32xbf16>
    %cst_51 = arith.constant dense<0.000000e+00> : vector<128x32xf32>
    %33 = tpu.matmul %31, %32, %cst_51 {dimension_numbers = #tpu.dot_dimension_numbers<[1], [0], [0], [1], [0, 0, 1, 1], [], []>} : vector<128x288xbf16>, vector<288x32xbf16>, vector<128x32xf32> -> vector<128x32xf32>
    %cst_52 = arith.constant dense<0.000000e+00> : vector<32xf32>
    %34 = vector.multi_reduction <add>, %33, %cst_52 [0] : vector<128x32xf32> to vector<32xf32>
    %35 = vector.shape_cast %34 : vector<32xf32> to vector<1x32xf32>
    %cst_53 = arith.constant 7.812500e-03 : f32
    %36 = vector.broadcast %cst_53 : f32 to vector<1x32xf32>
    %37 = arith.mulf %35, %36 : vector<1x32xf32>
    %38 = vector.broadcast %37 : vector<1x32xf32> to vector<128x32xf32>
    %39 = arith.subf %33, %38 : vector<128x32xf32>
    %40 = arith.mulf %39, %39 : vector<128x32xf32>
    %cst_54 = arith.constant dense<0.000000e+00> : vector<32xf32>
    %41 = vector.multi_reduction <add>, %40, %cst_54 [0] : vector<128x32xf32> to vector<32xf32>
    %42 = vector.shape_cast %41 : vector<32xf32> to vector<1x32xf32>
    %cst_55 = arith.constant 7.812500e-03 : f32
    %43 = vector.broadcast %cst_55 : f32 to vector<1x32xf32>
    %44 = arith.mulf %42, %43 : vector<1x32xf32>
    %cst_56 = arith.constant 9.99999974E-6 : f32
    %45 = vector.broadcast %cst_56 : f32 to vector<1x32xf32>
    %46 = arith.addf %44, %45 : vector<1x32xf32>
    %47 = math.rsqrt %46 : vector<1x32xf32>
    %48 = vector.broadcast %47 : vector<1x32xf32> to vector<128x32xf32>
    %49 = arith.mulf %39, %48 : vector<128x32xf32>
    %cst_57 = arith.constant 0.000000e+00 : f32
    %50 = vector.broadcast %cst_57 : f32 to vector<128x32xf32>
    %51 = arith.maximumf %49, %50 : vector<128x32xf32>
    %52 = vector.shape_cast %51 : vector<128x32xf32> to vector<2x8x8x32xf32>
    %c0_58 = arith.constant 0 : index
    %c1_59 = arith.constant 1 : index
    %c1_60 = arith.constant 1 : index
    %c0_61 = arith.constant 0 : index
    %53 = vector.load %arg11[%c0_58, %c1_59, %c1_60, %c0_61] : memref<2x10x10x32xf32, #tpu.memory_space<vmem>>, vector<2x8x8x32xf32>
    tpu.vector_store %arg11[%c0_58, %c1_59, %c1_60, %c0_61], %52 {strides = array<i32>} : memref<2x10x10x32xf32, #tpu.memory_space<vmem>>, vector<2x8x8x32xf32>,
    %c0_62 = arith.constant 0 : index
    %c0_63 = arith.constant 0 : index
    %c0_64 = arith.constant 0 : index
    %c0_65 = arith.constant 0 : index
    %54 = vector.load %arg11[%c0_62, %c0_63, %c0_64, %c0_65] : memref<2x10x10x32xf32, #tpu.memory_space<vmem>>, vector<2x8x8x32xf32>
    %55 = vector.shape_cast %54 : vector<2x8x8x32xf32> to vector<128x32xf32>
    %c0_66 = arith.constant 0 : index
    %c0_67 = arith.constant 0 : index
    %c1_68 = arith.constant 1 : index
    %c0_69 = arith.constant 0 : index
    %56 = vector.load %arg11[%c0_66, %c0_67, %c1_68, %c0_69] : memref<2x10x10x32xf32, #tpu.memory_space<vmem>>, vector<2x8x8x32xf32>
    %57 = vector.shape_cast %56 : vector<2x8x8x32xf32> to vector<128x32xf32>
    %c0_70 = arith.constant 0 : index
    %c0_71 = arith.constant 0 : index
    %c2_72 = arith.constant 2 : index
    %c0_73 = arith.constant 0 : index
    %58 = vector.load %arg11[%c0_70, %c0_71, %c2_72, %c0_73] : memref<2x10x10x32xf32, #tpu.memory_space<vmem>>, vector<2x8x8x32xf32>
    %59 = vector.shape_cast %58 : vector<2x8x8x32xf32> to vector<128x32xf32>
    %c0_74 = arith.constant 0 : index
    %c1_75 = arith.constant 1 : index
    %c0_76 = arith.constant 0 : index
    %c0_77 = arith.constant 0 : index
    %60 = vector.load %arg11[%c0_74, %c1_75, %c0_76, %c0_77] : memref<2x10x10x32xf32, #tpu.memory_space<vmem>>, vector<2x8x8x32xf32>
    %61 = vector.shape_cast %60 : vector<2x8x8x32xf32> to vector<128x32xf32>
    %c0_78 = arith.constant 0 : index
    %c1_79 = arith.constant 1 : index
    %c1_80 = arith.constant 1 : index
    %c0_81 = arith.constant 0 : index
    %62 = vector.load %arg11[%c0_78, %c1_79, %c1_80, %c0_81] : memref<2x10x10x32xf32, #tpu.memory_space<vmem>>, vector<2x8x8x32xf32>
    %63 = vector.shape_cast %62 : vector<2x8x8x32xf32> to vector<128x32xf32>
    %c0_82 = arith.constant 0 : index
    %c1_83 = arith.constant 1 : index
    %c2_84 = arith.constant 2 : index
    %c0_85 = arith.constant 0 : index
    %64 = vector.load %arg11[%c0_82, %c1_83, %c2_84, %c0_85] : memref<2x10x10x32xf32, #tpu.memory_space<vmem>>, vector<2x8x8x32xf32>
    %65 = vector.shape_cast %64 : vector<2x8x8x32xf32> to vector<128x32xf32>
    %c0_86 = arith.constant 0 : index
    %c2_87 = arith.constant 2 : index
    %c0_88 = arith.constant 0 : index
    %c0_89 = arith.constant 0 : index
    %66 = vector.load %arg11[%c0_86, %c2_87, %c0_88, %c0_89] : memref<2x10x10x32xf32, #tpu.memory_space<vmem>>, vector<2x8x8x32xf32>
    %67 = vector.shape_cast %66 : vector<2x8x8x32xf32> to vector<128x32xf32>
    %c0_90 = arith.constant 0 : index
    %c2_91 = arith.constant 2 : index
    %c1_92 = arith.constant 1 : index
    %c0_93 = arith.constant 0 : index
    %68 = vector.load %arg11[%c0_90, %c2_91, %c1_92, %c0_93] : memref<2x10x10x32xf32, #tpu.memory_space<vmem>>, vector<2x8x8x32xf32>
    %69 = vector.shape_cast %68 : vector<2x8x8x32xf32> to vector<128x32xf32>
    %c0_94 = arith.constant 0 : index
    %c2_95 = arith.constant 2 : index
    %c2_96 = arith.constant 2 : index
    %c0_97 = arith.constant 0 : index
    %70 = vector.load %arg11[%c0_94, %c2_95, %c2_96, %c0_97] : memref<2x10x10x32xf32, #tpu.memory_space<vmem>>, vector<2x8x8x32xf32>
    %71 = vector.shape_cast %70 : vector<2x8x8x32xf32> to vector<128x32xf32>
    %72 = tpu.concatenate %55, %57, %59, %61, %63, %65, %67, %69, %71 in 1 : vector<128x32xf32>, vector<128x32xf32>, vector<128x32xf32>, vector<128x32xf32>, vector<128x32xf32>, vector<128x32xf32>, vector<128x32xf32>, vector<128x32xf32>, vector<128x32xf32> -> vector<128x288xf32>
    %73 = arith.truncf %72 : vector<128x288xf32> to vector<128x288xbf16>
    %c0_98 = arith.constant 0 : index
    %c0_99 = arith.constant 0 : index
    %74 = vector.load %arg5[%c0_98, %c0_99] : memref<288x32xbf16, #tpu.memory_space<vmem>>, vector<288x32xbf16>
    %cst_100 = arith.constant dense<0.000000e+00> : vector<128x32xf32>
    %75 = tpu.matmul %73, %74, %cst_100 {dimension_numbers = #tpu.dot_dimension_numbers<[1], [0], [0], [1], [0, 0, 1, 1], [], []>} : vector<128x288xbf16>, vector<288x32xbf16>, vector<128x32xf32> -> vector<128x32xf32>
    %cst_101 = arith.constant dense<0.000000e+00> : vector<32xf32>
    %76 = vector.multi_reduction <add>, %75, %cst_101 [0] : vector<128x32xf32> to vector<32xf32>
    %77 = vector.shape_cast %76 : vector<32xf32> to vector<1x32xf32>
    %cst_102 = arith.constant 7.812500e-03 : f32
    %78 = vector.broadcast %cst_102 : f32 to vector<1x32xf32>
    %79 = arith.mulf %77, %78 : vector<1x32xf32>
    %80 = vector.broadcast %79 : vector<1x32xf32> to vector<128x32xf32>
    %81 = arith.subf %75, %80 : vector<128x32xf32>
    %82 = arith.mulf %81, %81 : vector<128x32xf32>
    %cst_103 = arith.constant dense<0.000000e+00> : vector<32xf32>
    %83 = vector.multi_reduction <add>, %82, %cst_103 [0] : vector<128x32xf32> to vector<32xf32>
    %84 = vector.shape_cast %83 : vector<32xf32> to vector<1x32xf32>
    %cst_104 = arith.constant 7.812500e-03 : f32
    %85 = vector.broadcast %cst_104 : f32 to vector<1x32xf32>
    %86 = arith.mulf %84, %85 : vector<1x32xf32>
    %cst_105 = arith.constant 9.99999974E-6 : f32
    %87 = vector.broadcast %cst_105 : f32 to vector<1x32xf32>
    %88 = arith.addf %86, %87 : vector<1x32xf32>
    %89 = math.rsqrt %88 : vector<1x32xf32>
    %90 = vector.broadcast %89 : vector<1x32xf32> to vector<128x32xf32>
    %91 = arith.mulf %81, %90 : vector<128x32xf32>
    %92 = arith.addf %91, %7 : vector<128x32xf32>
    %cst_106 = arith.constant 0.000000e+00 : f32
    %93 = vector.broadcast %cst_106 : f32 to vector<128x32xf32>
    %94 = arith.maximumf %92, %93 : vector<128x32xf32>
    %95 = arith.truncf %94 : vector<128x32xf32> to vector<128x32xbf16>
    %c0_107 = arith.constant 0 : index
    %c0_108 = arith.constant 0 : index
    %96 = vector.load %arg6[%c0_107, %c0_108] : memref<32x32xbf16, #tpu.memory_space<vmem>>, vector<32x32xbf16>
    %cst_109 = arith.constant dense<0.000000e+00> : vector<128x32xf32>
    %97 = tpu.matmul %95, %96, %cst_109 {dimension_numbers = #tpu.dot_dimension_numbers<[1], [0], [0], [1], [0, 0, 1, 1], [], []>} : vector<128x32xbf16>, vector<32x32xbf16>, vector<128x32xf32> -> vector<128x32xf32>
    %c0_110 = arith.constant 0 : index
    %c0_111 = arith.constant 0 : index
    %98 = vector.load %arg7[%c0_110, %c0_111] : memref<1x32xf32, #tpu.memory_space<vmem>>, vector<1x32xf32>
    %99 = vector.broadcast %98 : vector<1x32xf32> to vector<128x32xf32>
    %100 = arith.addf %97, %99 : vector<128x32xf32>
    %cst_112 = arith.constant 0.000000e+00 : f32
    %101 = vector.broadcast %cst_112 : f32 to vector<128x32xf32>
    %102 = arith.maximumf %100, %101 : vector<128x32xf32>
    %103 = vector.shape_cast %94 : vector<128x32xf32> to vector<2x8x8x32xf32>
    %c0_113 = arith.constant 0 : index
    %c1_114 = arith.constant 1 : index
    %c1_115 = arith.constant 1 : index
    %c0_116 = arith.constant 0 : index
    %104 = vector.load %arg11[%c0_113, %c1_114, %c1_115, %c0_116] : memref<2x10x10x32xf32, #tpu.memory_space<vmem>>, vector<2x8x8x32xf32>
    tpu.vector_store %arg11[%c0_113, %c1_114, %c1_115, %c0_116], %103 {strides = array<i32>} : memref<2x10x10x32xf32, #tpu.memory_space<vmem>>, vector<2x8x8x32xf32>,
    %c0_117 = arith.constant 0 : index
    %c0_118 = arith.constant 0 : index
    %c0_119 = arith.constant 0 : index
    %c0_120 = arith.constant 0 : index
    %105 = vector.load %arg11[%c0_117, %c0_118, %c0_119, %c0_120] : memref<2x10x10x32xf32, #tpu.memory_space<vmem>>, vector<2x8x8x32xf32>
    %106 = vector.shape_cast %105 : vector<2x8x8x32xf32> to vector<128x32xf32>
    %c0_121 = arith.constant 0 : index
    %c0_122 = arith.constant 0 : index
    %c1_123 = arith.constant 1 : index
    %c0_124 = arith.constant 0 : index
    %107 = vector.load %arg11[%c0_121, %c0_122, %c1_123, %c0_124] : memref<2x10x10x32xf32, #tpu.memory_space<vmem>>, vector<2x8x8x32xf32>
    %108 = vector.shape_cast %107 : vector<2x8x8x32xf32> to vector<128x32xf32>
    %c0_125 = arith.constant 0 : index
    %c0_126 = arith.constant 0 : index
    %c2_127 = arith.constant 2 : index
    %c0_128 = arith.constant 0 : index
    %109 = vector.load %arg11[%c0_125, %c0_126, %c2_127, %c0_128] : memref<2x10x10x32xf32, #tpu.memory_space<vmem>>, vector<2x8x8x32xf32>
    %110 = vector.shape_cast %109 : vector<2x8x8x32xf32> to vector<128x32xf32>
    %c0_129 = arith.constant 0 : index
    %c1_130 = arith.constant 1 : index
    %c0_131 = arith.constant 0 : index
    %c0_132 = arith.constant 0 : index
    %111 = vector.load %arg11[%c0_129, %c1_130, %c0_131, %c0_132] : memref<2x10x10x32xf32, #tpu.memory_space<vmem>>, vector<2x8x8x32xf32>
    %112 = vector.shape_cast %111 : vector<2x8x8x32xf32> to vector<128x32xf32>
    %c0_133 = arith.constant 0 : index
    %c1_134 = arith.constant 1 : index
    %c1_135 = arith.constant 1 : index
    %c0_136 = arith.constant 0 : index
    %113 = vector.load %arg11[%c0_133, %c1_134, %c1_135, %c0_136] : memref<2x10x10x32xf32, #tpu.memory_space<vmem>>, vector<2x8x8x32xf32>
    %114 = vector.shape_cast %113 : vector<2x8x8x32xf32> to vector<128x32xf32>
    %c0_137 = arith.constant 0 : index
    %c1_138 = arith.constant 1 : index
    %c2_139 = arith.constant 2 : index
    %c0_140 = arith.constant 0 : index
    %115 = vector.load %arg11[%c0_137, %c1_138, %c2_139, %c0_140] : memref<2x10x10x32xf32, #tpu.memory_space<vmem>>, vector<2x8x8x32xf32>
    %116 = vector.shape_cast %115 : vector<2x8x8x32xf32> to vector<128x32xf32>
    %c0_141 = arith.constant 0 : index
    %c2_142 = arith.constant 2 : index
    %c0_143 = arith.constant 0 : index
    %c0_144 = arith.constant 0 : index
    %117 = vector.load %arg11[%c0_141, %c2_142, %c0_143, %c0_144] : memref<2x10x10x32xf32, #tpu.memory_space<vmem>>, vector<2x8x8x32xf32>
    %118 = vector.shape_cast %117 : vector<2x8x8x32xf32> to vector<128x32xf32>
    %c0_145 = arith.constant 0 : index
    %c2_146 = arith.constant 2 : index
    %c1_147 = arith.constant 1 : index
    %c0_148 = arith.constant 0 : index
    %119 = vector.load %arg11[%c0_145, %c2_146, %c1_147, %c0_148] : memref<2x10x10x32xf32, #tpu.memory_space<vmem>>, vector<2x8x8x32xf32>
    %120 = vector.shape_cast %119 : vector<2x8x8x32xf32> to vector<128x32xf32>
    %c0_149 = arith.constant 0 : index
    %c2_150 = arith.constant 2 : index
    %c2_151 = arith.constant 2 : index
    %c0_152 = arith.constant 0 : index
    %121 = vector.load %arg11[%c0_149, %c2_150, %c2_151, %c0_152] : memref<2x10x10x32xf32, #tpu.memory_space<vmem>>, vector<2x8x8x32xf32>
    %122 = vector.shape_cast %121 : vector<2x8x8x32xf32> to vector<128x32xf32>
    %123 = tpu.concatenate %106, %108, %110, %112, %114, %116, %118, %120, %122 in 1 : vector<128x32xf32>, vector<128x32xf32>, vector<128x32xf32>, vector<128x32xf32>, vector<128x32xf32>, vector<128x32xf32>, vector<128x32xf32>, vector<128x32xf32>, vector<128x32xf32> -> vector<128x288xf32>
    %124 = arith.truncf %123 : vector<128x288xf32> to vector<128x288xbf16>
    %c0_153 = arith.constant 0 : index
    %c0_154 = arith.constant 0 : index
    %125 = vector.load %arg8[%c0_153, %c0_154] : memref<288x64xbf16, #tpu.memory_space<vmem>>, vector<288x64xbf16>
    %cst_155 = arith.constant dense<0.000000e+00> : vector<128x64xf32>
    %126 = tpu.matmul %124, %125, %cst_155 {dimension_numbers = #tpu.dot_dimension_numbers<[1], [0], [0], [1], [0, 0, 1, 1], [], []>} : vector<128x288xbf16>, vector<288x64xbf16>, vector<128x64xf32> -> vector<128x64xf32>
    %c0_156 = arith.constant 0 : index
    %c0_157 = arith.constant 0 : index
    %127 = vector.load %arg9[%c0_156, %c0_157] : memref<1x64xf32, #tpu.memory_space<vmem>>, vector<1x64xf32>
    %128 = vector.broadcast %127 : vector<1x64xf32> to vector<128x64xf32>
    %129 = arith.addf %126, %128 : vector<128x64xf32>
    %cst_158 = arith.constant 0.000000e+00 : f32
    %130 = vector.broadcast %cst_158 : f32 to vector<128x64xf32>
    %131 = arith.maximumf %129, %130 : vector<128x64xf32>
    %132 = vector.extract_strided_slice %131 {offsets = [0, 0], sizes = [128, 32], strides = [1, 1]} : vector<128x64xf32> to vector<128x32xf32>
    %133 = vector.extract_strided_slice %131 {offsets = [0, 32], sizes = [128, 32], strides = [1, 1]} : vector<128x64xf32> to vector<128x32xf32>
    %cst_159 = arith.constant 0.176776692 : f32
    %134 = vector.broadcast %cst_159 : f32 to vector<128x32xf32>
    %135 = arith.mulf %102, %134 : vector<128x32xf32>
    %136 = vector.shape_cast %135 : vector<128x32xf32> to vector<2x64x32xf32>
    %137 = arith.truncf %136 : vector<2x64x32xf32> to vector<2x64x32xbf16>
    %138 = vector.shape_cast %132 : vector<128x32xf32> to vector<2x64x32xf32>
    %139 = arith.truncf %138 : vector<2x64x32xf32> to vector<2x64x32xbf16>
    %140 = vector.shape_cast %133 : vector<128x32xf32> to vector<2x64x32xf32>
    %141 = arith.truncf %140 : vector<2x64x32xf32> to vector<2x64x32xbf16>
    "tpu.trace_start"() <{level = 10 : i32, message = "bqd,bkd->bqk"}> : () -> ()
    %cst_160 = arith.constant dense<0.000000e+00> : vector<2x64x64xf32>
    %142 = tpu.matmul %137, %139, %cst_160 {dimension_numbers = #tpu.dot_dimension_numbers<[2], [2], [1], [1], [0, 0, 0, 1, 1, 1], [0], [0]>} : vector<2x64x32xbf16>, vector<2x64x32xbf16>, vector<2x64x64xf32> -> vector<2x64x64xf32>
    "tpu.trace_stop"() : () -> ()
    %cst_161 = arith.constant dense<0xFF800000> : vector<2x64xf32>
    %143 = vector.multi_reduction <maximumf>, %142, %cst_161 [2] : vector<2x64x64xf32> to vector<2x64xf32>
    %144 = vector.shape_cast %143 : vector<2x64xf32> to vector<2x64x1xf32>
    %145 = vector.broadcast %144 : vector<2x64x1xf32> to vector<2x64x64xf32>
    %146 = arith.subf %142, %145 : vector<2x64x64xf32>
    %147 = math.exp %146 : vector<2x64x64xf32>
    %cst_162 = arith.constant dense<0.000000e+00> : vector<2x64xf32>
    %148 = vector.multi_reduction <add>, %147, %cst_162 [2] : vector<2x64x64xf32> to vector<2x64xf32>
    %149 = vector.shape_cast %148 : vector<2x64xf32> to vector<2x64x1xf32>
    %150 = tpu.reciprocal %149 {approx = true} : vector<2x64x1xf32> -> vector<2x64x1xf32>
    %151 = vector.broadcast %150 : vector<2x64x1xf32> to vector<2x64x64xf32>
    %152 = arith.mulf %147, %151 : vector<2x64x64xf32>
    %153 = arith.truncf %152 : vector<2x64x64xf32> to vector<2x64x64xbf16>
    "tpu.trace_start"() <{level = 10 : i32, message = "bqk,bkd->bqd"}> : () -> ()
    %cst_163 = arith.constant dense<0.000000e+00> : vector<2x64x32xf32>
    %154 = tpu.matmul %153, %141, %cst_163 {dimension_numbers = #tpu.dot_dimension_numbers<[2], [1], [1], [2], [0, 0, 0, 1, 1, 2], [0], [0]>} : vector<2x64x64xbf16>, vector<2x64x32xbf16>, vector<2x64x32xf32> -> vector<2x64x32xf32>
    "tpu.trace_stop"() : () -> ()
    %155 = vector.shape_cast %154 : vector<2x64x32xf32> to vector<128x32xf32>
    %156 = arith.addf %155, %94 : vector<128x32xf32>
    %cst_164 = arith.constant dense<0.000000e+00> : vector<32xf32>
    %157 = vector.multi_reduction <add>, %156, %cst_164 [0] : vector<128x32xf32> to vector<32xf32>
    %158 = vector.shape_cast %157 : vector<32xf32> to vector<1x32xf32>
    %cst_165 = arith.constant 7.812500e-03 : f32
    %159 = vector.broadcast %cst_165 : f32 to vector<1x32xf32>
    %160 = arith.mulf %158, %159 : vector<1x32xf32>
    %161 = vector.broadcast %160 : vector<1x32xf32> to vector<128x32xf32>
    %162 = arith.subf %156, %161 : vector<128x32xf32>
    %163 = arith.mulf %162, %162 : vector<128x32xf32>
    %cst_166 = arith.constant dense<0.000000e+00> : vector<32xf32>
    %164 = vector.multi_reduction <add>, %163, %cst_166 [0] : vector<128x32xf32> to vector<32xf32>
    %165 = vector.shape_cast %164 : vector<32xf32> to vector<1x32xf32>
    %cst_167 = arith.constant 7.812500e-03 : f32
    %166 = vector.broadcast %cst_167 : f32 to vector<1x32xf32>
    %167 = arith.mulf %165, %166 : vector<1x32xf32>
    %cst_168 = arith.constant 9.99999974E-6 : f32
    %168 = vector.broadcast %cst_168 : f32 to vector<1x32xf32>
    %169 = arith.addf %167, %168 : vector<1x32xf32>
    %170 = math.rsqrt %169 : vector<1x32xf32>
    %171 = vector.broadcast %170 : vector<1x32xf32> to vector<128x32xf32>
    %172 = arith.mulf %162, %171 : vector<128x32xf32>
    %c0_169 = arith.constant 0 : index
    %c0_170 = arith.constant 0 : index
    %c0_171 = arith.constant 0 : index
    %173 = vector.load %arg10[%c0_169, %c0_170, %c0_171] : memref<1x128x32xf32, #tpu.memory_space<vmem>>, vector<1x128x32xf32>
    %174 = vector.shape_cast %173 : vector<1x128x32xf32> to vector<128x32xf32>
    %175 = vector.shape_cast %172 : vector<128x32xf32> to vector<1x128x32xf32>
    tpu.vector_store %arg10[%c0_169, %c0_170, %c0_171], %175 {strides = array<i32>} : memref<1x128x32xf32, #tpu.memory_space<vmem>>, vector<1x128x32xf32>,
    return
  }
  func.func @transform_0(%arg0: i32) -> (i32, i32, i32) {
    %c0_i32 = arith.constant 0 : i32
    %c0_i32_0 = arith.constant 0 : i32
    %c0_i32_1 = arith.constant 0 : i32
    return %arg0, %c0_i32, %c0_i32_0 : i32, i32, i32
  }
  func.func @transform_1(%arg0: i32) -> (i32, i32) {
    %c0_i32 = arith.constant 0 : i32
    %c0_i32_0 = arith.constant 0 : i32
    %c0_i32_1 = arith.constant 0 : i32
    return %c0_i32, %c0_i32_0 : i32, i32
  }
  func.func @transform_2(%arg0: i32) -> (i32, i32) {
    %c0_i32 = arith.constant 0 : i32
    %c0_i32_0 = arith.constant 0 : i32
    %c0_i32_1 = arith.constant 0 : i32
    return %c0_i32, %c0_i32_0 : i32, i32
  }
  func.func @transform_3(%arg0: i32) -> (i32, i32) {
    %c0_i32 = arith.constant 0 : i32
    %c0_i32_0 = arith.constant 0 : i32
    %c0_i32_1 = arith.constant 0 : i32
    return %c0_i32, %c0_i32_0 : i32, i32
  }
  func.func @transform_4(%arg0: i32) -> (i32, i32) {
    %c0_i32 = arith.constant 0 : i32
    %c0_i32_0 = arith.constant 0 : i32
    %c0_i32_1 = arith.constant 0 : i32
    return %c0_i32, %c0_i32_0 : i32, i32
  }
  func.func @transform_5(%arg0: i32) -> (i32, i32) {
    %c0_i32 = arith.constant 0 : i32
    %c0_i32_0 = arith.constant 0 : i32
    %c0_i32_1 = arith.constant 0 : i32
    return %c0_i32, %c0_i32_0 : i32, i32
  }
  func.func @transform_6(%arg0: i32) -> (i32, i32) {
    %c0_i32 = arith.constant 0 : i32
    %c0_i32_0 = arith.constant 0 : i32
    %c0_i32_1 = arith.constant 0 : i32
    return %c0_i32, %c0_i32_0 : i32, i32
  }
  func.func @transform_7(%arg0: i32) -> (i32, i32) {
    %c0_i32 = arith.constant 0 : i32
    %c0_i32_0 = arith.constant 0 : i32
    %c0_i32_1 = arith.constant 0 : i32
    return %c0_i32, %c0_i32_0 : i32, i32
  }
  func.func @transform_8(%arg0: i32) -> (i32, i32) {
    %c0_i32 = arith.constant 0 : i32
    %c0_i32_0 = arith.constant 0 : i32
    %c0_i32_1 = arith.constant 0 : i32
    return %c0_i32, %c0_i32_0 : i32, i32
  }
  func.func @transform_9(%arg0: i32) -> (i32, i32, i32) {
    %c0_i32 = arith.constant 0 : i32
    %c0_i32_0 = arith.constant 0 : i32
    %c0_i32_1 = arith.constant 0 : i32
    return %arg0, %c0_i32, %c0_i32_0 : i32, i32, i32
  }
}

</mosaic_0001>

<llo_original>
// kernel: cross_conv_attention.3
$region0: #{cross_conv_attention.3}
  #allocation0 [shape = 'u32[]', space=smem, size = 0x4, offset = 0x4, fixed_abs, tag = 'smem constant byte address 0x4 - core index']
  #allocation1 [shape = 'u32[144,128]{1,0:T(1,128)}', space=vmem, size = 0x12000, scoped, tag = 'internal scratch']
  %s0 = inlined_call_operand.vmem [shape: f32[2,128,32], index: 0, kind: input, shape index: {}, may-alias: {0,1}]
  %s1 = inlined_call_operand.vmem [shape: f32[2,128,32], index: 1, kind: input, shape index: {}, may-alias: {0,1}]
  %s2 = inlined_call_operand.vmem [shape: bf16[32,32], index: 2, kind: input, shape index: {}]
  %s3 = inlined_call_operand.vmem [shape: f32[1,32], index: 3, kind: input, shape index: {}]
  %s4 = inlined_call_operand.vmem [shape: bf16[32,64], index: 4, kind: input, shape index: {}]
  %s5 = inlined_call_operand.vmem [shape: f32[1,64], index: 5, kind: input, shape index: {}]
  %s6 = inlined_call_operand.vmem [shape: bf16[32,32], index: 6, kind: input, shape index: {}]
  %s7 = inlined_call_operand.vmem [shape: f32[1,32], index: 7, kind: input, shape index: {}]
  %s8 = inlined_call_operand.vmem [shape: bf16[32,32], index: 8, kind: input, shape index: {}]
  %s9 = inlined_call_operand.vmem [shape: f32[1,32], index: 9, kind: input, shape index: {}]
  %s10 = inlined_call_operand.hbm [shape: f32[2,64,32], index: 10, kind: output, shape index: {0}]
  %s11 = inlined_call_operand.hbm [shape: f32[2,64,32], index: 11, kind: output, shape index: {1}]
  %12 = xla_tuple %s10, %s11
  %s13 = sld [smem:[#allocation0]]
  $region81: #{cross_conv_attention.3} parent=0
    _
  %s15 = ssub.s32 1, %s13
  %s16 = scalar_select 0, %s15, %s13
  $region1: #{cross_conv_attention.3} parent=0
    #allocation2 [shape = 'u8[65536]{0}', space=vmem, size = 0x10000, scoped, tag = 'output window, operand 0']
    #allocation3 [shape = 's32[2]{0}', space=sflag, size = 0x8, scoped, tag = 'scoped memory for cross_conv_attention.3']
    #allocation4 [shape = 'u8[65536]{0}', space=vmem, size = 0x10000, scoped, tag = 'output window, operand 1']
    #allocation5 [shape = 's32[2]{0}', space=sflag, size = 0x8, scoped, tag = 'scoped memory for cross_conv_attention.3']
    %17 = vsyncpa [#allocation3], 0
    %s18 = scalar_lea.sflag [#allocation3], 1
    %19 = vsyncpa %s18, 0
    %20 = vsyncpa [#allocation5], 0
    %s21 = scalar_lea.sflag [#allocation5], 1
    %22 = vsyncpa %s21, 0
    loop: start=0, step=1, limit=4
    $region2: #{cross_conv_attention.3} parent=1 // loop_pre_header
      _
    $region3: #{cross_conv_attention.3} parent=1 // loop_header
      %s24 = sphi 0, %s28
      %p25 = scmp.ge.s32.totalorder %s24, 4
      %s34 = sphi 0, %s36
      %s37 = sphi 0, %s34
      %s38 = sphi 0, %s37
      %s54 = sphi 0, %s38
      %s60 = sphi 0, %s62
      %s63 = sphi 0, %s60
      %s64 = sphi 0, %s63
      %s80 = sphi 0, %s64
      %s84 = sphi 0, %s84
      %s86 = sphi 0, %s84
      %s87 = sphi 0, %s86
      %s101 = sphi 0, %s87
      %s105 = sphi 0, %s105
      %s107 = sphi 0, %s105
      %s108 = sphi 0, %s107
      %s122 = sphi 0, %s108
      %s126 = sphi 0, %s126
      %s128 = sphi 0, %s126
      %s129 = sphi 0, %s128
      %s143 = sphi 0, %s129
      %s147 = sphi 0, %s147
      %s149 = sphi 0, %s147
      %s150 = sphi 0, %s149
      %s164 = sphi 0, %s150
      %s168 = sphi 0, %s168
      %s170 = sphi 0, %s168
      %s171 = sphi 0, %s170
      %s185 = sphi 0, %s171
      %s189 = sphi 0, %s189
      %s191 = sphi 0, %s189
      %s192 = sphi 0, %s191
      %s206 = sphi 0, %s192
      %s210 = sphi 0, %s210
      %s212 = sphi 0, %s210
      %s213 = sphi 0, %s212
      %s227 = sphi 0, %s213
      %s231 = sphi 0, %s231
      %s233 = sphi 0, %s231
      %s234 = sphi 0, %s233
      %s248 = sphi 0, %s234
      %s254 = sphi 0, %s256
      %s257 = sphi 0, %s254
      %s258 = sphi 0, %s257
      %s274 = sphi 0, %s258
      %s280 = sphi 0, %s282
      %s283 = sphi 0, %s280
      %s284 = sphi 0, %s283
      %s300 = sphi 0, %s284
    $region4: #{cross_conv_attention.3} parent=1 // loop_header_branch
      %27 = sbr.rel (%p25) target = $region8
    $region5: #{cross_conv_attention.3} parent=1 // loop_body
      %s29 = ssub.s32 %s24, 1
      %s30 = ssub.s32 %s24, 2
      %s31 = sadd.s32 %s24, 1
      %s32 = ssub.s32 %s24, %s31
      %p33 = scmp.eq.s32.totalorder %s32, 0
      %s35 = sadd.s32 %s34, 1
      %s36 = scalar_select %p33, %s34, %s35
      %p39 = pneg %p33
      %p40 = scmp.eq.s32.totalorder %s24, 1
      %p41 = por %p39, %p40
      %p42 = scmp.ne.s32.totalorder %s34, %s37
      %p43 = scmp.eq.s32.totalorder %s24, 0
      %p44 = por %p42, %p43
      %p45 = scmp.ne.s32.totalorder %s34, %s37
      %p46 = scmp.eq.s32.totalorder %s29, 1
      %p47 = por %p45, %p46
      %p48 = scmp.ne.s32.totalorder %s37, %s38
      %p49 = scmp.eq.s32.totalorder %s29, 0
      %p50 = por %p48, %p49
      %p51 = scmp.ne.s32.totalorder %s37, %s38
      %p52 = scmp.eq.s32.totalorder %s30, 1
      %p53 = por %p51, %p52
      %p55 = scmp.ne.s32.totalorder %s38, %s54
      %p56 = scmp.eq.s32.totalorder %s30, 0
      %p57 = por %p55, %p56
      %s58 = ssub.s32 %s24, %s31
      %p59 = scmp.eq.s32.totalorder %s58, 0
      %s61 = sadd.s32 %s60, 1
      %s62 = scalar_select %p59, %s60, %s61
      %p65 = pneg %p59
      %p66 = scmp.eq.s32.totalorder %s24, 1
      %p67 = por %p65, %p66
      %p68 = scmp.ne.s32.totalorder %s60, %s63
      %p69 = scmp.eq.s32.totalorder %s24, 0
      %p70 = por %p68, %p69
      %p71 = scmp.ne.s32.totalorder %s60, %s63
      %p72 = scmp.eq.s32.totalorder %s29, 1
      %p73 = por %p71, %p72
      %p74 = scmp.ne.s32.totalorder %s63, %s64
      %p75 = scmp.eq.s32.totalorder %s29, 0
      %p76 = por %p74, %p75
      %p77 = scmp.ne.s32.totalorder %s63, %s64
      %p78 = scmp.eq.s32.totalorder %s30, 1
      %p79 = por %p77, %p78
      %p81 = scmp.ne.s32.totalorder %s64, %s80
      %p82 = scmp.eq.s32.totalorder %s30, 0
      %p83 = por %p81, %p82
      %s85 = sadd.s32 %s84, 1
      %p88 = scmp.eq.s32.totalorder %s24, 1
      %p89 = scmp.ne.s32.totalorder %s84, %s86
      %p90 = scmp.eq.s32.totalorder %s24, 0
      %p91 = por %p89, %p90
      %p92 = scmp.ne.s32.totalorder %s84, %s86
      %p93 = scmp.eq.s32.totalorder %s29, 1
      %p94 = por %p92, %p93
      %p95 = scmp.ne.s32.totalorder %s86, %s87
      %p96 = scmp.eq.s32.totalorder %s29, 0
      %p97 = por %p95, %p96
      %p98 = scmp.ne.s32.totalorder %s86, %s87
      %p99 = scmp.eq.s32.totalorder %s30, 1
      %p100 = por %p98, %p99
      %p102 = scmp.ne.s32.totalorder %s87, %s101
      %p103 = scmp.eq.s32.totalorder %s30, 0
      %p104 = por %p102, %p103
      %s106 = sadd.s32 %s105, 1
      %p109 = scmp.eq.s32.totalorder %s24, 1
      %p110 = scmp.ne.s32.totalorder %s105, %s107
      %p111 = scmp.eq.s32.totalorder %s24, 0
      %p112 = por %p110, %p111
      %p113 = scmp.ne.s32.totalorder %s105, %s107
      %p114 = scmp.eq.s32.totalorder %s29, 1
      %p115 = por %p113, %p114
      %p116 = scmp.ne.s32.totalorder %s107, %s108
      %p117 = scmp.eq.s32.totalorder %s29, 0
      %p118 = por %p116, %p117
      %p119 = scmp.ne.s32.totalorder %s107, %s108
      %p120 = scmp.eq.s32.totalorder %s30, 1
      %p121 = por %p119, %p120
      %p123 = scmp.ne.s32.totalorder %s108, %s122
      %p124 = scmp.eq.s32.totalorder %s30, 0
      %p125 = por %p123, %p124
      %s127 = sadd.s32 %s126, 1
      %p130 = scmp.eq.s32.totalorder %s24, 1
      %p131 = scmp.ne.s32.totalorder %s126, %s128
      %p132 = scmp.eq.s32.totalorder %s24, 0
      %p133 = por %p131, %p132
      %p134 = scmp.ne.s32.totalorder %s126, %s128
      %p135 = scmp.eq.s32.totalorder %s29, 1
      %p136 = por %p134, %p135
      %p137 = scmp.ne.s32.totalorder %s128, %s129
      %p138 = scmp.eq.s32.totalorder %s29, 0
      %p139 = por %p137, %p138
      %p140 = scmp.ne.s32.totalorder %s128, %s129
      %p141 = scmp.eq.s32.totalorder %s30, 1
      %p142 = por %p140, %p141
      %p144 = scmp.ne.s32.totalorder %s129, %s143
      %p145 = scmp.eq.s32.totalorder %s30, 0
      %p146 = por %p144, %p145
      %s148 = sadd.s32 %s147, 1
      %p151 = scmp.eq.s32.totalorder %s24, 1
      %p152 = scmp.ne.s32.totalorder %s147, %s149
      %p153 = scmp.eq.s32.totalorder %s24, 0
      %p154 = por %p152, %p153
      %p155 = scmp.ne.s32.totalorder %s147, %s149
      %p156 = scmp.eq.s32.totalorder %s29, 1
      %p157 = por %p155, %p156
      %p158 = scmp.ne.s32.totalorder %s149, %s150
      %p159 = scmp.eq.s32.totalorder %s29, 0
      %p160 = por %p158, %p159
      %p161 = scmp.ne.s32.totalorder %s149, %s150
      %p162 = scmp.eq.s32.totalorder %s30, 1
      %p163 = por %p161, %p162
      %p165 = scmp.ne.s32.totalorder %s150, %s164
      %p166 = scmp.eq.s32.totalorder %s30, 0
      %p167 = por %p165, %p166
      %s169 = sadd.s32 %s168, 1
      %p172 = scmp.eq.s32.totalorder %s24, 1
      %p173 = scmp.ne.s32.totalorder %s168, %s170
      %p174 = scmp.eq.s32.totalorder %s24, 0
      %p175 = por %p173, %p174
      %p176 = scmp.ne.s32.totalorder %s168, %s170
      %p177 = scmp.eq.s32.totalorder %s29, 1
      %p178 = por %p176, %p177
      %p179 = scmp.ne.s32.totalorder %s170, %s171
      %p180 = scmp.eq.s32.totalorder %s29, 0
      %p181 = por %p179, %p180
      %p182 = scmp.ne.s32.totalorder %s170, %s171
      %p183 = scmp.eq.s32.totalorder %s30, 1
      %p184 = por %p182, %p183
      %p186 = scmp.ne.s32.totalorder %s171, %s185
      %p187 = scmp.eq.s32.totalorder %s30, 0
      %p188 = por %p186, %p187
      %s190 = sadd.s32 %s189, 1
      %p193 = scmp.eq.s32.totalorder %s24, 1
      %p194 = scmp.ne.s32.totalorder %s189, %s191
      %p195 = scmp.eq.s32.totalorder %s24, 0
      %p196 = por %p194, %p195
      %p197 = scmp.ne.s32.totalorder %s189, %s191
      %p198 = scmp.eq.s32.totalorder %s29, 1
      %p199 = por %p197, %p198
      %p200 = scmp.ne.s32.totalorder %s191, %s192
      %p201 = scmp.eq.s32.totalorder %s29, 0
      %p202 = por %p200, %p201
      %p203 = scmp.ne.s32.totalorder %s191, %s192
      %p204 = scmp.eq.s32.totalorder %s30, 1
      %p205 = por %p203, %p204
      %p207 = scmp.ne.s32.totalorder %s192, %s206
      %p208 = scmp.eq.s32.totalorder %s30, 0
      %p209 = por %p207, %p208
      %s211 = sadd.s32 %s210, 1
      %p214 = scmp.eq.s32.totalorder %s24, 1
      %p215 = scmp.ne.s32.totalorder %s210, %s212
      %p216 = scmp.eq.s32.totalorder %s24, 0
      %p217 = por %p215, %p216
      %p218 = scmp.ne.s32.totalorder %s210, %s212
      %p219 = scmp.eq.s32.totalorder %s29, 1
      %p220 = por %p218, %p219
      %p221 = scmp.ne.s32.totalorder %s212, %s213
      %p222 = scmp.eq.s32.totalorder %s29, 0
      %p223 = por %p221, %p222
      %p224 = scmp.ne.s32.totalorder %s212, %s213
      %p225 = scmp.eq.s32.totalorder %s30, 1
      %p226 = por %p224, %p225
      %p228 = scmp.ne.s32.totalorder %s213, %s227
      %p229 = scmp.eq.s32.totalorder %s30, 0
      %p230 = por %p228, %p229
      %s232 = sadd.s32 %s231, 1
      %p235 = scmp.eq.s32.totalorder %s24, 1
      %p236 = scmp.ne.s32.totalorder %s231, %s233
      %p237 = scmp.eq.s32.totalorder %s24, 0
      %p238 = por %p236, %p237
      %p239 = scmp.ne.s32.totalorder %s231, %s233
      %p240 = scmp.eq.s32.totalorder %s29, 1
      %p241 = por %p239, %p240
      %p242 = scmp.ne.s32.totalorder %s233, %s234
      %p243 = scmp.eq.s32.totalorder %s29, 0
      %p244 = por %p242, %p243
      %p245 = scmp.ne.s32.totalorder %s233, %s234
      %p246 = scmp.eq.s32.totalorder %s30, 1
      %p247 = por %p245, %p246
      %p249 = scmp.ne.s32.totalorder %s234, %s248
      %p250 = scmp.eq.s32.totalorder %s30, 0
      %p251 = por %p249, %p250
      %s252 = ssub.s32 %s24, %s31
      %p253 = scmp.eq.s32.totalorder %s252, 0
      %s255 = sadd.s32 %s254, 1
      %s256 = scalar_select %p253, %s254, %s255
      %p259 = pneg %p253
      %p260 = scmp.eq.s32.totalorder %s24, 1
      %p261 = por %p259, %p260
      %p262 = scmp.ne.s32.totalorder %s254, %s257
      %p263 = scmp.eq.s32.totalorder %s24, 0
      %p264 = por %p262, %p263
      %p265 = scmp.ne.s32.totalorder %s254, %s257
      %p266 = scmp.eq.s32.totalorder %s29, 1
      %p267 = por %p265, %p266
      %p268 = scmp.ne.s32.totalorder %s257, %s258
      %p269 = scmp.eq.s32.totalorder %s29, 0
      %p270 = por %p268, %p269
      %p271 = scmp.ne.s32.totalorder %s257, %s258
      %p272 = scmp.eq.s32.totalorder %s30, 1
      %p273 = por %p271, %p272
      %p275 = scmp.ne.s32.totalorder %s258, %s274
      %p276 = scmp.eq.s32.totalorder %s30, 0
      %p277 = por %p275, %p276
      %s278 = ssub.s32 %s24, %s31
      %p279 = scmp.eq.s32.totalorder %s278, 0
      %s281 = sadd.s32 %s280, 1
      %s282 = scalar_select %p279, %s280, %s281
      %p285 = pneg %p279
      %p286 = scmp.eq.s32.totalorder %s24, 1
      %p287 = por %p285, %p286
      %p288 = scmp.ne.s32.totalorder %s280, %s283
      %p289 = scmp.eq.s32.totalorder %s24, 0
      %p290 = por %p288, %p289
      %p291 = scmp.ne.s32.totalorder %s280, %s283
      %p292 = scmp.eq.s32.totalorder %s29, 1
      %p293 = por %p291, %p292
      %p294 = scmp.ne.s32.totalorder %s283, %s284
      %p295 = scmp.eq.s32.totalorder %s29, 0
      %p296 = por %p294, %p295
      %p297 = scmp.ne.s32.totalorder %s283, %s284
      %p298 = scmp.eq.s32.totalorder %s30, 1
      %p299 = por %p297, %p298
      %p301 = scmp.ne.s32.totalorder %s284, %s300
      %p302 = scmp.eq.s32.totalorder %s30, 0
      %p303 = por %p301, %p302
      %p304 = scmp.le.s32.totalorder 1, %s24
      %p305 = scmp.lt.s32.totalorder %s24, 3
      %p306 = pnand %p304, %p305
      %p307 = pneg %p306
      // Predicated region
      $region9: #{cross_conv_attention.3} parent=5 // pred_check
        _
      $region10: #{cross_conv_attention.3} parent=5 // pred_check_branch
        %309 = sbr.rel (%p306) target = $region12
      $region11: #{cross_conv_attention.3} parent=5 // pred_region
        %s310 = ssub.s32 %s24, 1
        // Predicated region
        $region13: #{cross_conv_attention.3} parent=11 // pred_check
          %p311 = pneg %p97
        $region14: #{cross_conv_attention.3} parent=11 // pred_check_branch
          %313 = sbr.rel (%p311) target = $region16
        $region15: #{cross_conv_attention.3} parent=11 // pred_region
          _
        $region16: #{cross_conv_attention.3} parent=11 // pred_fallthru
          _
        // Predicated region
        $region17: #{cross_conv_attention.3} parent=11 // pred_check
          %p314 = pneg %p118
        $region18: #{cross_conv_attention.3} parent=11 // pred_check_branch
          %316 = sbr.rel (%p314) target = $region20
        $region19: #{cross_conv_attention.3} parent=11 // pred_region
          _
        $region20: #{cross_conv_attention.3} parent=11 // pred_fallthru
          _
        // Predicated region
        $region21: #{cross_conv_attention.3} parent=11 // pred_check
          %p317 = pneg %p139
        $region22: #{cross_conv_attention.3} parent=11 // pred_check_branch
          %319 = sbr.rel (%p317) target = $region24
        $region23: #{cross_conv_attention.3} parent=11 // pred_region
          _
        $region24: #{cross_conv_attention.3} parent=11 // pred_fallthru
          _
        // Predicated region
        $region25: #{cross_conv_attention.3} parent=11 // pred_check
          %p320 = pneg %p160
        $region26: #{cross_conv_attention.3} parent=11 // pred_check_branch
          %322 = sbr.rel (%p320) target = $region28
        $region27: #{cross_conv_attention.3} parent=11 // pred_region
          _
        $region28: #{cross_conv_attention.3} parent=11 // pred_fallthru
          _
        // Predicated region
        $region29: #{cross_conv_attention.3} parent=11 // pred_check
          %p323 = pneg %p181
        $region30: #{cross_conv_attention.3} parent=11 // pred_check_branch
          %325 = sbr.rel (%p323) target = $region32
        $region31: #{cross_conv_attention.3} parent=11 // pred_region
          _
        $region32: #{cross_conv_attention.3} parent=11 // pred_fallthru
          _
        // Predicated region
        $region33: #{cross_conv_attention.3} parent=11 // pred_check
          %p326 = pneg %p202
        $region34: #{cross_conv_attention.3} parent=11 // pred_check_branch
          %328 = sbr.rel (%p326) target = $region36
        $region35: #{cross_conv_attention.3} parent=11 // pred_region
          _
        $region36: #{cross_conv_attention.3} parent=11 // pred_fallthru
          _
        // Predicated region
        $region37: #{cross_conv_attention.3} parent=11 // pred_check
          %p329 = pneg %p223
        $region38: #{cross_conv_attention.3} parent=11 // pred_check_branch
          %331 = sbr.rel (%p329) target = $region40
        $region39: #{cross_conv_attention.3} parent=11 // pred_region
          _
        $region40: #{cross_conv_attention.3} parent=11 // pred_fallthru
          _
        // Predicated region
        $region41: #{cross_conv_attention.3} parent=11 // pred_check
          %p332 = pneg %p244
        $region42: #{cross_conv_attention.3} parent=11 // pred_check_branch
          %334 = sbr.rel (%p332) target = $region44
        $region43: #{cross_conv_attention.3} parent=11 // pred_region
          _
        $region44: #{cross_conv_attention.3} parent=11 // pred_fallthru
          _
      $region12: #{cross_conv_attention.3} parent=5 // pred_fallthru
        _
      %p335 = scmp.lt.s32.totalorder %s24, 2
      // Predicated region
      $region45: #{cross_conv_attention.3} parent=5 // pred_check
        %p336 = pneg %p335
      $region46: #{cross_conv_attention.3} parent=5 // pred_check_branch
        %338 = sbr.rel (%p336) target = $region48
      $region47: #{cross_conv_attention.3} parent=5 // pred_region
        // Predicated region
        $region49: #{cross_conv_attention.3} parent=47 // pred_check
          %p339 = pneg %p44
        $region50: #{cross_conv_attention.3} parent=47 // pred_check_branch
          %341 = sbr.rel (%p339) target = $region52
        $region51: #{cross_conv_attention.3} parent=47 // pred_region
          %s342 = smul.u32 8, %s24
          %p343 = scmp.lt.s32.totalorder %s342, 15
          %s344 = scalar_select %p343, %s342, 15
          %s345 = smul.addr %s344, 8
          %s346 = scalar_lea.vmem %s0, %s345
          %s347 = smul.u32 8, %s24
        $region52: #{cross_conv_attention.3} parent=47 // pred_fallthru
          _
        // Predicated region
        $region53: #{cross_conv_attention.3} parent=47 // pred_check
          %p348 = pneg %p70
        $region54: #{cross_conv_attention.3} parent=47 // pred_check_branch
          %350 = sbr.rel (%p348) target = $region56
        $region55: #{cross_conv_attention.3} parent=47 // pred_region
          %s351 = smul.u32 8, %s24
          %p352 = scmp.lt.s32.totalorder %s351, 15
          %s353 = scalar_select %p352, %s351, 15
          %s354 = sadd.s32 %s353, 16
          %s355 = smul.addr %s354, 8
          %s356 = scalar_lea.vmem %s1, %s355
          %s357 = smul.u32 8, %s24
        $region56: #{cross_conv_attention.3} parent=47 // pred_fallthru
          _
      $region48: #{cross_conv_attention.3} parent=5 // pred_fallthru
        _
      %p358 = scmp.le.s32.totalorder 1, %s24
      %p359 = scmp.lt.s32.totalorder %s24, 3
      %p360 = pnand %p358, %p359
      %p361 = pneg %p360
      // Predicated region
      $region57: #{cross_conv_attention.3} parent=5 // pred_check
        _
      $region58: #{cross_conv_attention.3} parent=5 // pred_check_branch
        %363 = sbr.rel (%p360) target = $region60
      $region59: #{cross_conv_attention.3} parent=5 // pred_region
        %s364 = ssub.s32 %s24, 1
        %s365 = smul.u32 8, %s29
        %p366 = scmp.lt.s32.totalorder %s365, 15
        %s367 = scalar_select %p366, %s365, 15
        %s368 = smul.addr %s367, 8
        %s369 = scalar_lea.vmem %s0, %s368
        %p370 = pneg %p50
        %p371 = pneg %p47
        %s372 = smul.u32 8, %s29
        %p373 = scmp.lt.s32.totalorder %s372, 15
        %s374 = scalar_select %p373, %s372, 15
        %s375 = sadd.s32 %s374, 16
        %s376 = smul.addr %s375, 8
        %s377 = scalar_lea.vmem %s1, %s376
        %p378 = pneg %p76
        %p379 = pneg %p73
        %p380 = pneg %p97
        %p381 = pneg %p94
        %p382 = pneg %p118
        %p383 = pneg %p115
        %p384 = pneg %p139
        %p385 = pneg %p136
        %p386 = pneg %p160
        %p387 = pneg %p157
        %p388 = pneg %p181
        %p389 = pneg %p178
        %p390 = pneg %p202
        %p391 = pneg %p199
        %p392 = pneg %p223
        %p393 = pneg %p220
        %p394 = pneg %p244
        %p395 = pneg %p241
        %p396 = pneg %p270
        %p397 = pneg %p267
        %s398 = sand.u32 %s257, 1
        %s399 = scalar_lea.sflag [#allocation3], %s398
        %s400 = sand.u32 %s257, 1
        %s401 = smul.addr %s400, 64
        %s402 = scalar_lea.vmem [#allocation2], %s401
        %p403 = pneg %p296
        %p404 = pneg %p293
        %s405 = sand.u32 %s283, 1
        %s406 = scalar_lea.sflag [#allocation5], %s405
        %s407 = sand.u32 %s283, 1
        %s408 = smul.addr %s407, 64
        %s409 = scalar_lea.vmem [#allocation4], %s408
        %s410 = smul.u32 8, %s29
        %p411 = scmp.lt.s32.totalorder %s410, 15
        %s412 = scalar_select %p411, %s410, 15
        %s413 = smul.addr %s412, 8
        %s414 = scalar_lea.vmem %s0, %s413
        %s415 = smul.u32 8, %s29
        %s416 = smul.u32 8, %s29
        %p417 = scmp.lt.s32.totalorder %s416, 15
        %s418 = scalar_select %p417, %s416, 15
        %s419 = sadd.s32 %s418, 16
        %s420 = smul.addr %s419, 8
        %s421 = scalar_lea.vmem %s1, %s420
        %s422 = smul.u32 8, %s29
        %v424 = vld [vmem:[%s414] sm:$0xff]
        %v425 = vld [vmem:[%s414 + $0x8] sm:$0xff]
        %v426 = vld [vmem:[%s414 + $0x10] sm:$0xff]
        %v427 = vld [vmem:[%s414 + $0x18] sm:$0xff]
        %v428 = vld [vmem:[%s414 + $0x20] sm:$0xff]
        %v429 = vld [vmem:[%s414 + $0x28] sm:$0xff]
        %v430 = vld [vmem:[%s414 + $0x30] sm:$0xff]
        %v431 = vld [vmem:[%s414 + $0x38] sm:$0xff]
        %v432 = vld [vmem:[%s421] sm:$0xff]
        %v433 = vld [vmem:[%s421 + $0x8] sm:$0xff]
        %v434 = vld [vmem:[%s421 + $0x10] sm:$0xff]
        %v435 = vld [vmem:[%s421 + $0x18] sm:$0xff]
        %v436 = vld [vmem:[%s421 + $0x20] sm:$0xff]
        %v437 = vld [vmem:[%s421 + $0x28] sm:$0xff]
        %v438 = vld [vmem:[%s421 + $0x30] sm:$0xff]
        %v439 = vld [vmem:[%s421 + $0x38] sm:$0xff]
        %v440 = vpack.c.bf16 %v425, %v424
        %v441 = vpack.c.bf16 %v427, %v426
        %v442 = vpack.c.bf16 %v429, %v428
        %v443 = vpack.c.bf16 %v431, %v430
        %v444 = vld [vmem:[%s2] sm:$0xf]
        %v445 = vld [vmem:[%s2 + $0x4] sm:$0xf]
        %v446 = vld [vmem:[%s2 + $0x8] sm:$0xf]
        %v447 = vld [vmem:[%s2 + $0xc] sm:$0xf]
        %v448 = vld [vmem:[%s3] sm:$0x1]
        %v450 = vlaneseq
        %v451 = vshrl.u32 %v450, 7
        %v452 = vsub.s32 0, %v451
        %v453 = vrot.slane %v448, %v452
        %v459 = vunpack.c.l.b16 %v444
        %v460 = vunpack.c.l.b16 %v445
        %v461 = vunpack.c.l.b16 %v446
        %v462 = vunpack.c.l.b16 %v447
        %v463 = vpack.c.b16 %v460, %v459
        %v464 = vpack.c.b16 %v462, %v461
        %vm467 = vcmask 261120
        %v469 = vsel %vm467, %v440, 0
        %v472 = vsel %vm467, %v441, 0
        %v475 = vsel %vm467, %v442, 0
        %v478 = vsel %vm467, %v443, 0
        %480 = vmatprep.subr.bf16.mxu0 0
        %481 = vmatpush1.bf16.msra.mxu0 %v463
        %482 = vmatprep.subr.bf16.mxu0 0
        %483 = vmatpush1.bf16.msra.mxu0 %v464
        %484 = vmatprep.subr.bf16.mxu0 0
        %485 = vmatpush1.bf16.msra.mxu0 0
        %486 = vmatprep.subr.bf16.mxu0 0
        %487 = vmatpush1.bf16.msra.mxu0 0
        %488 = vmatprep.subr.bf16.mxu0 0
        %489 = vmatpush1.bf16.msra.mxu0 0
        %490 = vmatprep.subr.bf16.mxu0 0
        %491 = vmatpush1.bf16.msra.mxu0 0
        %492 = vmatprep.subr.bf16.mxu0 0
        %493 = vmatpush1.bf16.msra.mxu0 0
        %494 = vmatprep.subr.bf16.mxu0 0
        %495 = vmatpush1.bf16.msra.mxu0 0
        %496 = vmatprep.subr.bf16.mxu0 0
        %497 = vmatpush1.bf16.msra.mxu0 0
        %498 = vmatprep.subr.bf16.mxu0 0
        %499 = vmatpush1.bf16.msra.mxu0 0
        %500 = vmatprep.subr.bf16.mxu0 0
        %501 = vmatpush1.bf16.msra.mxu0 0
        %502 = vmatprep.subr.bf16.mxu0 0
        %503 = vmatpush1.bf16.msra.mxu0 0
        %504 = vmatprep.subr.bf16.mxu0 0
        %505 = vmatpush1.bf16.msra.mxu0 0
        %506 = vmatprep.subr.bf16.mxu0 0
        %507 = vmatpush1.bf16.msra.mxu0 0
        %508 = vmatprep.subr.bf16.mxu0 0
        %509 = vmatpush1.bf16.msra.mxu0 0
        %510 = vmatprep.subr.bf16.mxu0 0
        %511 = vmatpush1.bf16.msra.mxu0 0
        %512 = vmatprep.mubr.bf16.mxu0 0
        %513 = vmatmul.mubr.bf16.gmra.mrb[0].mxu0 %v469
        %v514 = vpop.f32.mrb[0].mxu0
        %v515 = vadd.f32 %v453, %v514
        %v516 = vpop.f32.mrb[0].mxu0
        %v517 = vpop.f32.mrb[0].mxu0
        %v518 = vadd.f32 %v453, %v517
        %v519 = vpop.f32.mrb[0].mxu0
        %520 = vmatprep.mubr.bf16.mxu0 0
        %521 = vmatmul.mubr.bf16.gmra.mrb[0].mxu0 %v472
        %v522 = vpop.f32.mrb[0].mxu0
        %v523 = vadd.f32 %v453, %v522
        %v524 = vpop.f32.mrb[0].mxu0
        %v525 = vpop.f32.mrb[0].mxu0
        %v526 = vadd.f32 %v453, %v525
        %v527 = vpop.f32.mrb[0].mxu0
        %528 = vmatprep.mubr.bf16.mxu0 0
        %529 = vmatmul.mubr.bf16.gmra.mrb[0].mxu0 %v475
        %v530 = vpop.f32.mrb[0].mxu0
        %v531 = vadd.f32 %v453, %v530
        %v532 = vpop.f32.mrb[0].mxu0
        %v533 = vpop.f32.mrb[0].mxu0
        %v534 = vadd.f32 %v453, %v533
        %v535 = vpop.f32.mrb[0].mxu0
        %536 = vmatprep.mubr.bf16.mxu0 0
        %537 = vmatmul.mubr.bf16.gmra.mrb[0].mxu0 %v478
        %v538 = vpop.f32.mrb[0].mxu0
        %v539 = vadd.f32 %v453, %v538
        %v540 = vpop.f32.mrb[0].mxu0
        %v541 = vpop.f32.mrb[0].mxu0
        %v542 = vadd.f32 %v453, %v541
        %v543 = vpop.f32.mrb[0].mxu0
        %544 = vdwg.mxu0
        %v545 = vpack.c.bf16 %v433, %v432
        %v546 = vpack.c.bf16 %v435, %v434
        %v547 = vpack.c.bf16 %v437, %v436
        %v548 = vpack.c.bf16 %v439, %v438
        %v549 = vld [vmem:[%s4] sm:$0xf]
        %v550 = vld [vmem:[%s4 + $0x4] sm:$0xf]
        %v551 = vld [vmem:[%s4 + $0x8] sm:$0xf]
        %v552 = vld [vmem:[%s4 + $0xc] sm:$0xf]
        %v553 = vld [vmem:[%s5] sm:$0x1]
        %v555 = vlaneseq
        %v556 = vshrl.u32 %v555, 7
        %v557 = vsub.s32 0, %v556
        %v558 = vrot.slane %v553, %v557
        %v564 = vunpack.c.l.b16 %v549
        %v565 = vunpack.c.l.b16 %v550
        %v566 = vunpack.c.l.b16 %v551
        %v567 = vunpack.c.l.b16 %v552
        %v568 = vpack.c.b16 %v565, %v564
        %v569 = vpack.c.b16 %v567, %v566
        %v573 = vsel %vm467, %v545, 0
        %v576 = vsel %vm467, %v546, 0
        %v579 = vsel %vm467, %v547, 0
        %v582 = vsel %vm467, %v548, 0
        %584 = vmatprep.subr.bf16.mxu0 0
        %585 = vmatpush1.bf16.msra.mxu0 %v568
        %586 = vmatprep.subr.bf16.mxu0 0
        %587 = vmatpush1.bf16.msra.mxu0 %v569
        %588 = vmatprep.subr.bf16.mxu0 0
        %589 = vmatpush1.bf16.msra.mxu0 0
        %590 = vmatprep.subr.bf16.mxu0 0
        %591 = vmatpush1.bf16.msra.mxu0 0
        %592 = vmatprep.subr.bf16.mxu0 0
        %593 = vmatpush1.bf16.msra.mxu0 0
        %594 = vmatprep.subr.bf16.mxu0 0
        %595 = vmatpush1.bf16.msra.mxu0 0
        %596 = vmatprep.subr.bf16.mxu0 0
        %597 = vmatpush1.bf16.msra.mxu0 0
        %598 = vmatprep.subr.bf16.mxu0 0
        %599 = vmatpush1.bf16.msra.mxu0 0
        %600 = vmatprep.subr.bf16.mxu0 0
        %601 = vmatpush1.bf16.msra.mxu0 0
        %602 = vmatprep.subr.bf16.mxu0 0
        %603 = vmatpush1.bf16.msra.mxu0 0
        %604 = vmatprep.subr.bf16.mxu0 0
        %605 = vmatpush1.bf16.msra.mxu0 0
        %606 = vmatprep.subr.bf16.mxu0 0
        %607 = vmatpush1.bf16.msra.mxu0 0
        %608 = vmatprep.subr.bf16.mxu0 0
        %609 = vmatpush1.bf16.msra.mxu0 0
        %610 = vmatprep.subr.bf16.mxu0 0
        %611 = vmatpush1.bf16.msra.mxu0 0
        %612 = vmatprep.subr.bf16.mxu0 0
        %613 = vmatpush1.bf16.msra.mxu0 0
        %614 = vmatprep.subr.bf16.mxu0 0
        %615 = vmatpush1.bf16.msra.mxu0 0
        %616 = vmatprep.mubr.bf16.mxu0 0
        %617 = vmatmul.mubr.bf16.gmra.mrb[0].mxu0 %v573
        %v618 = vpop.f32.mrb[0].mxu0
        %v619 = vadd.f32 %v558, %v618
        %v620 = vpop.f32.mrb[0].mxu0
        %v621 = vpop.f32.mrb[0].mxu0
        %v622 = vadd.f32 %v558, %v621
        %v623 = vpop.f32.mrb[0].mxu0
        %624 = vmatprep.mubr.bf16.mxu0 0
        %625 = vmatmul.mubr.bf16.gmra.mrb[0].mxu0 %v576
        %v626 = vpop.f32.mrb[0].mxu0
        %v627 = vadd.f32 %v558, %v626
        %v628 = vpop.f32.mrb[0].mxu0
        %v629 = vpop.f32.mrb[0].mxu0
        %v630 = vadd.f32 %v558, %v629
        %v631 = vpop.f32.mrb[0].mxu0
        %632 = vmatprep.mubr.bf16.mxu0 0
        %633 = vmatmul.mubr.bf16.gmra.mrb[0].mxu0 %v579
        %v634 = vpop.f32.mrb[0].mxu0
        %v635 = vadd.f32 %v558, %v634
        %v636 = vpop.f32.mrb[0].mxu0
        %v637 = vpop.f32.mrb[0].mxu0
        %v638 = vadd.f32 %v558, %v637
        %v639 = vpop.f32.mrb[0].mxu0
        %640 = vmatprep.mubr.bf16.mxu0 0
        %641 = vmatmul.mubr.bf16.gmra.mrb[0].mxu0 %v582
        %v642 = vpop.f32.mrb[0].mxu0
        %v643 = vadd.f32 %v558, %v642
        %v644 = vpop.f32.mrb[0].mxu0
        %v645 = vpop.f32.mrb[0].mxu0
        %v646 = vadd.f32 %v558, %v645
        %v647 = vpop.f32.mrb[0].mxu0
        %648 = vdwg.mxu0
        %v649 = vmul.f32 %v515, 0.17677669
        %v650 = vmul.f32 %v518, 0.17677669
        %v651 = vmul.f32 %v523, 0.17677669
        %v652 = vmul.f32 %v526, 0.17677669
        %v653 = vmul.f32 %v531, 0.17677669
        %v654 = vmul.f32 %v534, 0.17677669
        %v655 = vmul.f32 %v539, 0.17677669
        %v656 = vmul.f32 %v542, 0.17677669
        %v657 = vpack.c.bf16 %v650, %v649
        %v658 = vpack.c.bf16 %v652, %v651
        %v659 = vpack.c.bf16 %v654, %v653
        %v660 = vpack.c.bf16 %v656, %v655
        %v661 = vpack.c.bf16 %v622, %v619
        %v662 = vpack.c.bf16 %v630, %v627
        %v663 = vpack.c.bf16 %v638, %v635
        %v664 = vpack.c.bf16 %v646, %v643
        %v666 = vsel %vm467, %v657, 0
        %v669 = vsel %vm467, %v658, 0
        %v672 = vsel %vm467, %v659, 0
        %v675 = vsel %vm467, %v660, 0
        %v678 = vsel %vm467, %v661, 0
        %v681 = vsel %vm467, %v662, 0
        %v684 = vsel %vm467, %v663, 0
        %v687 = vsel %vm467, %v664, 0
        %689 = vmatprep.subr.bf16.mxu0 0
        %690 = vmatpush1.bf16.xpose.msra.mxu0 %v678
        %691 = vmatprep.subr.bf16.mxu0 0
        %692 = vmatpush1.bf16.xpose.msra.mxu0 %v681
        %693 = vmatprep.subr.bf16.mxu0 0
        %694 = vmatpush1.bf16.xpose.msra.mxu0 %v684
        %695 = vmatprep.subr.bf16.mxu0 0
        %696 = vmatpush1.bf16.xpose.msra.mxu0 %v687
        %697 = vmatprep.subr.bf16.mxu0 0
        %698 = vmatpush1.bf16.xpose.msra.mxu0 0
        %699 = vmatprep.subr.bf16.mxu0 0
        %700 = vmatpush1.bf16.xpose.msra.mxu0 0
        %701 = vmatprep.subr.bf16.mxu0 0
        %702 = vmatpush1.bf16.xpose.msra.mxu0 0
        %703 = vmatprep.subr.bf16.mxu0 0
        %704 = vmatpush1.bf16.xpose.msra.mxu0 0
        %705 = vmatprep.subr.bf16.mxu0 0
        %706 = vmatpush1.bf16.xpose.msra.mxu0 0
        %707 = vmatprep.subr.bf16.mxu0 0
        %708 = vmatpush1.bf16.xpose.msra.mxu0 0
        %709 = vmatprep.subr.bf16.mxu0 0
        %710 = vmatpush1.bf16.xpose.msra.mxu0 0
        %711 = vmatprep.subr.bf16.mxu0 0
        %712 = vmatpush1.bf16.xpose.msra.mxu0 0
        %713 = vmatprep.subr.bf16.mxu0 0
        %714 = vmatpush1.bf16.xpose.msra.mxu0 0
        %715 = vmatprep.subr.bf16.mxu0 0
        %716 = vmatpush1.bf16.xpose.msra.mxu0 0
        %717 = vmatprep.subr.bf16.mxu0 0
        %718 = vmatpush1.bf16.xpose.msra.mxu0 0
        %719 = vmatprep.subr.bf16.mxu0 0
        %720 = vmatpush1.bf16.xpose.msra.mxu0 0
        %721 = vmatprep.mubr.bf16.mxu0 0
        %722 = vmatmul.mubr.bf16.gmra.mrb[0].mxu0 %v666
        %v723 = vpop.f32.mrb[0].mxu0
        %v724 = vadd.f32 0.0, %v723
        %v725 = vpop.f32.mrb[0].mxu0
        %v726 = vpop.f32.mrb[0].mxu0
        %v727 = vadd.f32 0.0, %v726
        %v728 = vpop.f32.mrb[0].mxu0
        %729 = vmatprep.mubr.bf16.mxu0 0
        %730 = vmatmul.mubr.bf16.gmra.mrb[0].mxu0 %v669
        %v731 = vpop.f32.mrb[0].mxu0
        %v732 = vadd.f32 0.0, %v731
        %v733 = vpop.f32.mrb[0].mxu0
        %v734 = vpop.f32.mrb[0].mxu0
        %v735 = vadd.f32 0.0, %v734
        %v736 = vpop.f32.mrb[0].mxu0
        %737 = vmatprep.mubr.bf16.mxu0 0
        %738 = vmatmul.mubr.bf16.gmra.mrb[0].mxu0 %v672
        %v739 = vpop.f32.mrb[0].mxu0
        %v740 = vadd.f32 0.0, %v739
        %v741 = vpop.f32.mrb[0].mxu0
        %v742 = vpop.f32.mrb[0].mxu0
        %v743 = vadd.f32 0.0, %v742
        %v744 = vpop.f32.mrb[0].mxu0
        %745 = vmatprep.mubr.bf16.mxu0 0
        %746 = vmatmul.mubr.bf16.gmra.mrb[0].mxu0 %v675
        %v747 = vpop.f32.mrb[0].mxu0
        %v748 = vadd.f32 0.0, %v747
        %v749 = vpop.f32.mrb[0].mxu0
        %v750 = vpop.f32.mrb[0].mxu0
        %v751 = vadd.f32 0.0, %v750
        %v752 = vpop.f32.mrb[0].mxu0
        %753 = vdwg.mxu0
        %vm754 = vcmask 523264
        %v755 = vsel %vm754, %v724, -inf
        %756 = vmax.xlane.f32.xlu0 %v755
        %v757 = vpop.xlane.xlu0 %756
        %v758 = vsel %vm754, %v727, -inf
        %759 = vmax.xlane.f32.xlu0 %v758
        %v760 = vpop.xlane.xlu0 %759
        %v761 = vsel %vm754, %v732, -inf
        %762 = vmax.xlane.f32.xlu0 %v761
        %v763 = vpop.xlane.xlu0 %762
        %v764 = vsel %vm754, %v735, -inf
        %765 = vmax.xlane.f32.xlu0 %v764
        %v766 = vpop.xlane.xlu0 %765
        %v767 = vsel %vm754, %v740, -inf
        %768 = vmax.xlane.f32.xlu0 %v767
        %v769 = vpop.xlane.xlu0 %768
        %v770 = vsel %vm754, %v743, -inf
        %771 = vmax.xlane.f32.xlu0 %v770
        %v772 = vpop.xlane.xlu0 %771
        %v773 = vsel %vm754, %v748, -inf
        %774 = vmax.xlane.f32.xlu0 %v773
        %v775 = vpop.xlane.xlu0 %774
        %v776 = vsel %vm754, %v751, -inf
        %777 = vmax.xlane.f32.xlu0 %v776
        %v778 = vpop.xlane.xlu0 %777
        %v779 = vsub.f32 %v724, %v757
        %v780 = vsub.f32 %v727, %v760
        %v781 = vsub.f32 %v732, %v763
        %v782 = vsub.f32 %v735, %v766
        %v783 = vsub.f32 %v740, %v769
        %v784 = vsub.f32 %v743, %v772
        %v785 = vsub.f32 %v748, %v775
        %v786 = vsub.f32 %v751, %v778
        %v787 = vmul.f32 %v779, 1.442695
        %v788 = vpow.pop %v787
        %v789 = vmul.f32 %v780, 1.442695
        %v790 = vpow.pop %v789
        %v791 = vmul.f32 %v781, 1.442695
        %v792 = vpow.pop %v791
        %v793 = vmul.f32 %v782, 1.442695
        %v794 = vpow.pop %v793
        %v795 = vmul.f32 %v783, 1.442695
        %v796 = vpow.pop %v795
        %v797 = vmul.f32 %v784, 1.442695
        %v798 = vpow.pop %v797
        %v799 = vmul.f32 %v785, 1.442695
        %v800 = vpow.pop %v799
        %v801 = vmul.f32 %v786, 1.442695
        %v802 = vpow.pop %v801
        %v803 = vsel %vm754, %v788, 0.0
        %804 = vadd.xlane.f32.xlu0 %v803
        %v805 = vpop.xlane.xlu0 %804
        %v806 = vsel %vm754, %v790, 0.0
        %807 = vadd.xlane.f32.xlu0 %v806
        %v808 = vpop.xlane.xlu0 %807
        %v809 = vsel %vm754, %v792, 0.0
        %810 = vadd.xlane.f32.xlu0 %v809
        %v811 = vpop.xlane.xlu0 %810
        %v812 = vsel %vm754, %v794, 0.0
        %813 = vadd.xlane.f32.xlu0 %v812
        %v814 = vpop.xlane.xlu0 %813
        %v815 = vsel %vm754, %v796, 0.0
        %816 = vadd.xlane.f32.xlu0 %v815
        %v817 = vpop.xlane.xlu0 %816
        %v818 = vsel %vm754, %v798, 0.0
        %819 = vadd.xlane.f32.xlu0 %v818
        %v820 = vpop.xlane.xlu0 %819
        %v821 = vsel %vm754, %v800, 0.0
        %822 = vadd.xlane.f32.xlu0 %v821
        %v823 = vpop.xlane.xlu0 %822
        %v824 = vsel %vm754, %v802, 0.0
        %825 = vadd.xlane.f32.xlu0 %v824
        %v826 = vpop.xlane.xlu0 %825
        %v827 = vrcp.pop %v805
        %v828 = vrcp.pop %v808
        %v829 = vrcp.pop %v811
        %v830 = vrcp.pop %v814
        %v831 = vrcp.pop %v817
        %v832 = vrcp.pop %v820
        %v833 = vrcp.pop %v823
        %v834 = vrcp.pop %v826
        %v835 = vmul.f32 %v788, %v827
        %v836 = vmul.f32 %v790, %v828
        %v837 = vmul.f32 %v792, %v829
        %v838 = vmul.f32 %v794, %v830
        %v839 = vmul.f32 %v796, %v831
        %v840 = vmul.f32 %v798, %v832
        %v841 = vmul.f32 %v800, %v833
        %v842 = vmul.f32 %v802, %v834
        %v843 = vpack.c.bf16 %v836, %v835
        %v844 = vpack.c.bf16 %v838, %v837
        %v845 = vpack.c.bf16 %v840, %v839
        %v846 = vpack.c.bf16 %v842, %v841
        %851 = vrot.lane.b32.xlu0 %v661, 96
        %v852 = vpop.permute.xlu0 %851
        %853 = vrot.lane.b32.xlu0 %v662, 96
        %v854 = vpop.permute.xlu0 %853
        %855 = vrot.lane.b32.xlu0 %v663, 96
        %v856 = vpop.permute.xlu0 %855
        %857 = vrot.lane.b32.xlu0 %v664, 96
        %v858 = vpop.permute.xlu0 %857
        %v864 = vsel %vm754, %v843, 0
        %v867 = vsel %vm754, %v844, 0
        %v870 = vsel %vm754, %v845, 0
        %v873 = vsel %vm754, %v846, 0
        %875 = vmatprep.subr.bf16.mxu0 0
        %876 = vmatpush1.bf16.msra.mxu0 %v852
        %877 = vmatprep.subr.bf16.mxu0 0
        %878 = vmatpush1.bf16.msra.mxu0 %v854
        %879 = vmatprep.subr.bf16.mxu0 0
        %880 = vmatpush1.bf16.msra.mxu0 %v856
        %881 = vmatprep.subr.bf16.mxu0 0
        %882 = vmatpush1.bf16.msra.mxu0 %v858
        %883 = vmatprep.subr.bf16.mxu0 0
        %884 = vmatpush1.bf16.msra.mxu0 0
        %885 = vmatprep.subr.bf16.mxu0 0
        %886 = vmatpush1.bf16.msra.mxu0 0
        %887 = vmatprep.subr.bf16.mxu0 0
        %888 = vmatpush1.bf16.msra.mxu0 0
        %889 = vmatprep.subr.bf16.mxu0 0
        %890 = vmatpush1.bf16.msra.mxu0 0
        %891 = vmatprep.subr.bf16.mxu0 0
        %892 = vmatpush1.bf16.msra.mxu0 0
        %893 = vmatprep.subr.bf16.mxu0 0
        %894 = vmatpush1.bf16.msra.mxu0 0
        %895 = vmatprep.subr.bf16.mxu0 0
        %896 = vmatpush1.bf16.msra.mxu0 0
        %897 = vmatprep.subr.bf16.mxu0 0
        %898 = vmatpush1.bf16.msra.mxu0 0
        %899 = vmatprep.subr.bf16.mxu0 0
        %900 = vmatpush1.bf16.msra.mxu0 0
        %901 = vmatprep.subr.bf16.mxu0 0
        %902 = vmatpush1.bf16.msra.mxu0 0
        %903 = vmatprep.subr.bf16.mxu0 0
        %904 = vmatpush1.bf16.msra.mxu0 0
        %905 = vmatprep.subr.bf16.mxu0 0
        %906 = vmatpush1.bf16.msra.mxu0 0
        %907 = vmatprep.mubr.bf16.mxu0 0
        %908 = vmatmul.mubr.bf16.gmra.mrb[0].mxu0 %v864
        %v909 = vpop.f32.mrb[0].mxu0
        %v910 = vadd.f32 0.0, %v909
        %v911 = vpop.f32.mrb[0].mxu0
        %v912 = vpop.f32.mrb[0].mxu0
        %v913 = vadd.f32 0.0, %v912
        %v914 = vpop.f32.mrb[0].mxu0
        %915 = vmatprep.mubr.bf16.mxu0 0
        %916 = vmatmul.mubr.bf16.gmra.mrb[0].mxu0 %v867
        %v917 = vpop.f32.mrb[0].mxu0
        %v918 = vadd.f32 0.0, %v917
        %v919 = vpop.f32.mrb[0].mxu0
        %v920 = vpop.f32.mrb[0].mxu0
        %v921 = vadd.f32 0.0, %v920
        %v922 = vpop.f32.mrb[0].mxu0
        %923 = vmatprep.mubr.bf16.mxu0 0
        %924 = vmatmul.mubr.bf16.gmra.mrb[0].mxu0 %v870
        %v925 = vpop.f32.mrb[0].mxu0
        %v926 = vadd.f32 0.0, %v925
        %v927 = vpop.f32.mrb[0].mxu0
        %v928 = vpop.f32.mrb[0].mxu0
        %v929 = vadd.f32 0.0, %v928
        %v930 = vpop.f32.mrb[0].mxu0
        %931 = vmatprep.mubr.bf16.mxu0 0
        %932 = vmatmul.mubr.bf16.gmra.mrb[0].mxu0 %v873
        %v933 = vpop.f32.mrb[0].mxu0
        %v934 = vadd.f32 0.0, %v933
        %v935 = vpop.f32.mrb[0].mxu0
        %v936 = vpop.f32.mrb[0].mxu0
        %v937 = vadd.f32 0.0, %v936
        %v938 = vpop.f32.mrb[0].mxu0
        %939 = vdwg.mxu0
        %940 = vst.msk [vmem:[%s402] sm:$0xff] %vm467, %v910
        %941 = vst.msk [vmem:[%s402 + $0x8] sm:$0xff] %vm467, %v913
        %942 = vst.msk [vmem:[%s402 + $0x10] sm:$0xff] %vm467, %v918
        %943 = vst.msk [vmem:[%s402 + $0x18] sm:$0xff] %vm467, %v921
        %944 = vst.msk [vmem:[%s402 + $0x20] sm:$0xff] %vm467, %v926
        %945 = vst.msk [vmem:[%s402 + $0x28] sm:$0xff] %vm467, %v929
        %946 = vst.msk [vmem:[%s402 + $0x30] sm:$0xff] %vm467, %v934
        %947 = vst.msk [vmem:[%s402 + $0x38] sm:$0xff] %vm467, %v937
        %v948 = vpack.c.bf16 %v913, %v910
        %v949 = vpack.c.bf16 %v921, %v918
        %v950 = vpack.c.bf16 %v929, %v926
        %v951 = vpack.c.bf16 %v937, %v934
        %v952 = vld [vmem:[%s6] sm:$0xf]
        %v953 = vld [vmem:[%s6 + $0x4] sm:$0xf]
        %v954 = vld [vmem:[%s6 + $0x8] sm:$0xf]
        %v955 = vld [vmem:[%s6 + $0xc] sm:$0xf]
        %v956 = vld [vmem:[%s7] sm:$0x1]
        %v958 = vlaneseq
        %v959 = vshrl.u32 %v958, 7
        %v960 = vsub.s32 0, %v959
        %v961 = vrot.slane %v956, %v960
        %v967 = vunpack.c.l.b16 %v952
        %v968 = vunpack.c.l.b16 %v953
        %v969 = vunpack.c.l.b16 %v954
        %v970 = vunpack.c.l.b16 %v955
        %v971 = vpack.c.b16 %v968, %v967
        %v972 = vpack.c.b16 %v970, %v969
        %v976 = vsel %vm467, %v948, 0
        %v979 = vsel %vm467, %v949, 0
        %v982 = vsel %vm467, %v950, 0
        %v985 = vsel %vm467, %v951, 0
        %987 = vmatprep.subr.bf16.mxu0 0
        %988 = vmatpush1.bf16.msra.mxu0 %v971
        %989 = vmatprep.subr.bf16.mxu0 0
        %990 = vmatpush1.bf16.msra.mxu0 %v972
        %991 = vmatprep.subr.bf16.mxu0 0
        %992 = vmatpush1.bf16.msra.mxu0 0
        %993 = vmatprep.subr.bf16.mxu0 0
        %994 = vmatpush1.bf16.msra.mxu0 0
        %995 = vmatprep.subr.bf16.mxu0 0
        %996 = vmatpush1.bf16.msra.mxu0 0
        %997 = vmatprep.subr.bf16.mxu0 0
        %998 = vmatpush1.bf16.msra.mxu0 0
        %999 = vmatprep.subr.bf16.mxu0 0
        %1000 = vmatpush1.bf16.msra.mxu0 0
        %1001 = vmatprep.subr.bf16.mxu0 0
        %1002 = vmatpush1.bf16.msra.mxu0 0
        %1003 = vmatprep.subr.bf16.mxu0 0
        %1004 = vmatpush1.bf16.msra.mxu0 0
        %1005 = vmatprep.subr.bf16.mxu0 0
        %1006 = vmatpush1.bf16.msra.mxu0 0
        %1007 = vmatprep.subr.bf16.mxu0 0
        %1008 = vmatpush1.bf16.msra.mxu0 0
        %1009 = vmatprep.subr.bf16.mxu0 0
        %1010 = vmatpush1.bf16.msra.mxu0 0
        %1011 = vmatprep.subr.bf16.mxu0 0
        %1012 = vmatpush1.bf16.msra.mxu0 0
        %1013 = vmatprep.subr.bf16.mxu0 0
        %1014 = vmatpush1.bf16.msra.mxu0 0
        %1015 = vmatprep.subr.bf16.mxu0 0
        %1016 = vmatpush1.bf16.msra.mxu0 0
        %1017 = vmatprep.subr.bf16.mxu0 0
        %1018 = vmatpush1.bf16.msra.mxu0 0
        %1019 = vmatprep.mubr.bf16.mxu0 0
        %1020 = vmatmul.mubr.bf16.gmra.mrb[0].mxu0 %v976
        %v1021 = vpop.f32.mrb[0].mxu0
        %v1022 = vadd.f32 %v961, %v1021
        %v1023 = vpop.f32.mrb[0].mxu0
        %v1024 = vpop.f32.mrb[0].mxu0
        %v1025 = vadd.f32 %v961, %v1024
        %v1026 = vpop.f32.mrb[0].mxu0
        %1027 = vmatprep.mubr.bf16.mxu0 0
        %1028 = vmatmul.mubr.bf16.gmra.mrb[0].mxu0 %v979
        %v1029 = vpop.f32.mrb[0].mxu0
        %v1030 = vadd.f32 %v961, %v1029
        %v1031 = vpop.f32.mrb[0].mxu0
        %v1032 = vpop.f32.mrb[0].mxu0
        %v1033 = vadd.f32 %v961, %v1032
        %v1034 = vpop.f32.mrb[0].mxu0
        %1035 = vmatprep.mubr.bf16.mxu0 0
        %1036 = vmatmul.mubr.bf16.gmra.mrb[0].mxu0 %v982
        %v1037 = vpop.f32.mrb[0].mxu0
        %v1038 = vadd.f32 %v961, %v1037
        %v1039 = vpop.f32.mrb[0].mxu0
        %v1040 = vpop.f32.mrb[0].mxu0
        %v1041 = vadd.f32 %v961, %v1040
        %v1042 = vpop.f32.mrb[0].mxu0
        %1043 = vmatprep.mubr.bf16.mxu0 0
        %1044 = vmatmul.mubr.bf16.gmra.mrb[0].mxu0 %v985
        %v1045 = vpop.f32.mrb[0].mxu0
        %v1046 = vadd.f32 %v961, %v1045
        %v1047 = vpop.f32.mrb[0].mxu0
        %v1048 = vpop.f32.mrb[0].mxu0
        %v1049 = vadd.f32 %v961, %v1048
        %v1050 = vpop.f32.mrb[0].mxu0
        %1051 = vdwg.mxu0
        %v1052 = vmax.f32 %v1022, 0.0
        %v1053 = vmax.f32 %v1025, 0.0
        %v1054 = vmax.f32 %v1030, 0.0
        %v1055 = vmax.f32 %v1033, 0.0
        %v1056 = vmax.f32 %v1038, 0.0
        %v1057 = vmax.f32 %v1041, 0.0
        %v1058 = vmax.f32 %v1046, 0.0
        %v1059 = vmax.f32 %v1049, 0.0
        %v1060 = vpack.c.bf16 %v1053, %v1052
        %v1061 = vpack.c.bf16 %v1055, %v1054
        %v1062 = vpack.c.bf16 %v1057, %v1056
        %v1063 = vpack.c.bf16 %v1059, %v1058
        %v1064 = vld [vmem:[%s8] sm:$0xf]
        %v1065 = vld [vmem:[%s8 + $0x4] sm:$0xf]
        %v1066 = vld [vmem:[%s8 + $0x8] sm:$0xf]
        %v1067 = vld [vmem:[%s8 + $0xc] sm:$0xf]
        %v1068 = vld [vmem:[%s9] sm:$0x1]
        %v1070 = vlaneseq
        %v1071 = vshrl.u32 %v1070, 7
        %v1072 = vsub.s32 0, %v1071
        %v1073 = vrot.slane %v1068, %v1072
        %v1079 = vunpack.c.l.b16 %v1064
        %v1080 = vunpack.c.l.b16 %v1065
        %v1081 = vunpack.c.l.b16 %v1066
        %v1082 = vunpack.c.l.b16 %v1067
        %v1083 = vpack.c.b16 %v1080, %v1079
        %v1084 = vpack.c.b16 %v1082, %v1081
        %v1088 = vsel %vm467, %v1060, 0
        %v1091 = vsel %vm467, %v1061, 0
        %v1094 = vsel %vm467, %v1062, 0
        %v1097 = vsel %vm467, %v1063, 0
        %1099 = vmatprep.subr.bf16.mxu0 0
        %1100 = vmatpush1.bf16.msra.mxu0 %v1083
        %1101 = vmatprep.subr.bf16.mxu0 0
        %1102 = vmatpush1.bf16.msra.mxu0 %v1084
        %1103 = vmatprep.subr.bf16.mxu0 0
        %1104 = vmatpush1.bf16.msra.mxu0 0
        %1105 = vmatprep.subr.bf16.mxu0 0
        %1106 = vmatpush1.bf16.msra.mxu0 0
        %1107 = vmatprep.subr.bf16.mxu0 0
        %1108 = vmatpush1.bf16.msra.mxu0 0
        %1109 = vmatprep.subr.bf16.mxu0 0
        %1110 = vmatpush1.bf16.msra.mxu0 0
        %1111 = vmatprep.subr.bf16.mxu0 0
        %1112 = vmatpush1.bf16.msra.mxu0 0
        %1113 = vmatprep.subr.bf16.mxu0 0
        %1114 = vmatpush1.bf16.msra.mxu0 0
        %1115 = vmatprep.subr.bf16.mxu0 0
        %1116 = vmatpush1.bf16.msra.mxu0 0
        %1117 = vmatprep.subr.bf16.mxu0 0
        %1118 = vmatpush1.bf16.msra.mxu0 0
        %1119 = vmatprep.subr.bf16.mxu0 0
        %1120 = vmatpush1.bf16.msra.mxu0 0
        %1121 = vmatprep.subr.bf16.mxu0 0
        %1122 = vmatpush1.bf16.msra.mxu0 0
        %1123 = vmatprep.subr.bf16.mxu0 0
        %1124 = vmatpush1.bf16.msra.mxu0 0
        %1125 = vmatprep.subr.bf16.mxu0 0
        %1126 = vmatpush1.bf16.msra.mxu0 0
        %1127 = vmatprep.subr.bf16.mxu0 0
        %1128 = vmatpush1.bf16.msra.mxu0 0
        %1129 = vmatprep.subr.bf16.mxu0 0
        %1130 = vmatpush1.bf16.msra.mxu0 0
        %1131 = vmatprep.mubr.bf16.mxu0 0
        %1132 = vmatmul.mubr.bf16.gmra.mrb[0].mxu0 %v1088
        %v1133 = vpop.f32.mrb[0].mxu0
        %v1134 = vadd.f32 %v1073, %v1133
        %v1135 = vpop.f32.mrb[0].mxu0
        %v1136 = vpop.f32.mrb[0].mxu0
        %v1137 = vadd.f32 %v1073, %v1136
        %v1138 = vpop.f32.mrb[0].mxu0
        %1139 = vmatprep.mubr.bf16.mxu0 0
        %1140 = vmatmul.mubr.bf16.gmra.mrb[0].mxu0 %v1091
        %v1141 = vpop.f32.mrb[0].mxu0
        %v1142 = vadd.f32 %v1073, %v1141
        %v1143 = vpop.f32.mrb[0].mxu0
        %v1144 = vpop.f32.mrb[0].mxu0
        %v1145 = vadd.f32 %v1073, %v1144
        %v1146 = vpop.f32.mrb[0].mxu0
        %1147 = vmatprep.mubr.bf16.mxu0 0
        %1148 = vmatmul.mubr.bf16.gmra.mrb[0].mxu0 %v1094
        %v1149 = vpop.f32.mrb[0].mxu0
        %v1150 = vadd.f32 %v1073, %v1149
        %v1151 = vpop.f32.mrb[0].mxu0
        %v1152 = vpop.f32.mrb[0].mxu0
        %v1153 = vadd.f32 %v1073, %v1152
        %v1154 = vpop.f32.mrb[0].mxu0
        %1155 = vmatprep.mubr.bf16.mxu0 0
        %1156 = vmatmul.mubr.bf16.gmra.mrb[0].mxu0 %v1097
        %v1157 = vpop.f32.mrb[0].mxu0
        %v1158 = vadd.f32 %v1073, %v1157
        %v1159 = vpop.f32.mrb[0].mxu0
        %v1160 = vpop.f32.mrb[0].mxu0
        %v1161 = vadd.f32 %v1073, %v1160
        %v1162 = vpop.f32.mrb[0].mxu0
        %1163 = vdwg.mxu0
        %v1164 = vmax.f32 %v1134, 0.0
        %v1165 = vmax.f32 %v1137, 0.0
        %v1166 = vmax.f32 %v1142, 0.0
        %v1167 = vmax.f32 %v1145, 0.0
        %v1168 = vmax.f32 %v1150, 0.0
        %v1169 = vmax.f32 %v1153, 0.0
        %v1170 = vmax.f32 %v1158, 0.0
        %v1171 = vmax.f32 %v1161, 0.0
        %1172 = vst.msk [vmem:[%s409] sm:$0xff] %vm467, %v1164
        %1173 = vst.msk [vmem:[%s409 + $0x8] sm:$0xff] %vm467, %v1165
        %1174 = vst.msk [vmem:[%s409 + $0x10] sm:$0xff] %vm467, %v1166
        %1175 = vst.msk [vmem:[%s409 + $0x18] sm:$0xff] %vm467, %v1167
        %1176 = vst.msk [vmem:[%s409 + $0x20] sm:$0xff] %vm467, %v1168
        %1177 = vst.msk [vmem:[%s409 + $0x28] sm:$0xff] %vm467, %v1169
        %1178 = vst.msk [vmem:[%s409 + $0x30] sm:$0xff] %vm467, %v1170
        %1179 = vst.msk [vmem:[%s409 + $0x38] sm:$0xff] %vm467, %v1171
        %s1180 = sand.u32 %s257, 1
        %s1181 = scalar_lea.sflag [#allocation3], %s1180
        %s1182 = sand.u32 %s257, 1
        %s1183 = smul.addr %s1182, 64
        %s1184 = scalar_lea.vmem [#allocation2], %s1183
        %s1185 = sand.u32 %s283, 1
        %s1186 = scalar_lea.sflag [#allocation5], %s1185
        %s1187 = sand.u32 %s283, 1
        %s1188 = smul.addr %s1187, 64
        %s1189 = scalar_lea.vmem [#allocation4], %s1188
        // Predicated region
        $region61: #{cross_conv_attention.3} parent=59 // pred_check
          %p1190 = pneg %p267
        $region62: #{cross_conv_attention.3} parent=59 // pred_check_branch
          %1192 = sbr.rel (%p1190) target = $region64
        $region63: #{cross_conv_attention.3} parent=59 // pred_region
          %s1194 = ssub.s32 1024, 1024
          %1195 = vsyncadd %s1181, %s1194
          %s1196 = smul.addr %s29, 8
          %s1197 = smul.addr %s1196, 128
          %s1198 = scalar_lea.hbm %s10, %s1197
          %s1199 = sshll.u32 %s1184, 4
          %s1200 = int_to_ptr.vmem [resolvable:$true] %s1199
          %1205 = dma.vmem_to_hbm [thread:$0]  %s1200, 1024, %s1198, %s1181, 128, 128, 8
        $region64: #{cross_conv_attention.3} parent=59 // pred_fallthru
          _
        // Predicated region
        $region65: #{cross_conv_attention.3} parent=59 // pred_check
          %p1206 = pneg %p293
        $region66: #{cross_conv_attention.3} parent=59 // pred_check_branch
          %1208 = sbr.rel (%p1206) target = $region68
        $region67: #{cross_conv_attention.3} parent=59 // pred_region
          %s1210 = ssub.s32 1024, 1024
          %1211 = vsyncadd %s1186, %s1210
          %s1212 = smul.addr %s29, 8
          %s1213 = smul.addr %s1212, 128
          %s1214 = scalar_lea.hbm %s11, %s1213
          %s1215 = sshll.u32 %s1189, 4
          %s1216 = int_to_ptr.vmem [resolvable:$true] %s1215
          %1221 = dma.vmem_to_hbm [thread:$0]  %s1216, 1024, %s1214, %s1186, 128, 128, 8
        $region68: #{cross_conv_attention.3} parent=59 // pred_fallthru
          _
      $region60: #{cross_conv_attention.3} parent=5 // pred_fallthru
        _
      %p1222 = scmp.le.s32.totalorder 2, %s24
      // Predicated region
      $region69: #{cross_conv_attention.3} parent=5 // pred_check
        %p1223 = pneg %p1222
      $region70: #{cross_conv_attention.3} parent=5 // pred_check_branch
        %1225 = sbr.rel (%p1223) target = $region72
      $region71: #{cross_conv_attention.3} parent=5 // pred_region
        %s1226 = ssub.s32 %s24, 2
        // Predicated region
        $region73: #{cross_conv_attention.3} parent=71 // pred_check
          %p1227 = pneg %p273
        $region74: #{cross_conv_attention.3} parent=71 // pred_check_branch
          %1229 = sbr.rel (%p1227) target = $region76
        $region75: #{cross_conv_attention.3} parent=71 // pred_region
          %s1230 = sand.u32 %s258, 1
          %s1231 = scalar_lea.sflag [#allocation3], %s1230
          %s1232 = sand.u32 %s258, 1
          %s1233 = smul.addr %s1232, 64
          %s1234 = scalar_lea.vmem [#allocation2], %s1233
          %1235 = dma.done %s1231, 1024
        $region76: #{cross_conv_attention.3} parent=71 // pred_fallthru
          _
        // Predicated region
        $region77: #{cross_conv_attention.3} parent=71 // pred_check
          %p1236 = pneg %p299
        $region78: #{cross_conv_attention.3} parent=71 // pred_check_branch
          %1238 = sbr.rel (%p1236) target = $region80
        $region79: #{cross_conv_attention.3} parent=71 // pred_region
          %s1239 = sand.u32 %s284, 1
          %s1240 = scalar_lea.sflag [#allocation5], %s1239
          %s1241 = sand.u32 %s284, 1
          %s1242 = smul.addr %s1241, 64
          %s1243 = scalar_lea.vmem [#allocation4], %s1242
          %1244 = dma.done %s1240, 1024
        $region80: #{cross_conv_attention.3} parent=71 // pred_fallthru
          _
      $region72: #{cross_conv_attention.3} parent=5 // pred_fallthru
        _
    $region6: #{cross_conv_attention.3} parent=1 // loop_footer
      %s28 = sadd.s32 1, %s24
    $region7: #{cross_conv_attention.3} parent=1 // loop_footer_branch
      %23 = sbr.rel target = $region3
    $region8: #{cross_conv_attention.3} parent=1 // loop_exit
      _
    %1245 = vsyncpa [#allocation3], 1
    %s1246 = scalar_lea.sflag [#allocation3], 1
    %1247 = vsyncpa %s1246, 1
    %1248 = vsyncpa [#allocation5], 1
    %s1249 = scalar_lea.sflag [#allocation5], 1
    %1250 = vsyncpa %s1249, 1

// kernel: cross_conv_attention.2
$region0: #{cross_conv_attention.2}
  #allocation0 [shape = 'u32[]', space=smem, size = 0x4, offset = 0x4, fixed_abs, tag = 'smem constant byte address 0x4 - core index']
  #allocation1 [shape = 'u32[144,128]{1,0:T(1,128)}', space=vmem, size = 0x12000, scoped, tag = 'internal scratch']
  #allocation2 [shape = 'f32[2,10,10,32]{3,2,1,0:T(8,128)}', space=vmem, size = 0x28000, scoped, tag = 'scratch operand']
  %s0 = inlined_call_operand.vmem [shape: f32[2,128,32], index: 0, kind: input, shape index: {}]
  %s1 = inlined_call_operand.vmem [shape: bf16[32,32], index: 1, kind: input, shape index: {}]
  %s2 = inlined_call_operand.vmem [shape: f32[1,32], index: 2, kind: input, shape index: {}]
  %s3 = inlined_call_operand.vmem [shape: bf16[288,32], index: 3, kind: input, shape index: {}]
  %s4 = inlined_call_operand.vmem [shape: bf16[288,32], index: 4, kind: input, shape index: {}]
  %s5 = inlined_call_operand.vmem [shape: bf16[32,32], index: 5, kind: input, shape index: {}]
  %s6 = inlined_call_operand.vmem [shape: f32[1,32], index: 6, kind: input, shape index: {}]
  %s7 = inlined_call_operand.vmem [shape: bf16[288,64], index: 7, kind: input, shape index: {}]
  %s8 = inlined_call_operand.vmem [shape: f32[1,64], index: 8, kind: input, shape index: {}]
  %s9 = inlined_call_operand.vmem [shape: f32[2,128,32], index: 9, kind: output, shape index: {}]
  %s10 = sld [smem:[#allocation0]]
  $region69: #{cross_conv_attention.2} parent=0
    _
  %s12 = ssub.s32 1, %s10
  %s13 = scalar_select 0, %s12, %s10
  loop: start=0, step=1, limit=4
  $region2: #{cross_conv_attention.2} parent=0 // loop_pre_header
    _
  $region3: #{cross_conv_attention.2} parent=0 // loop_header
    %s15 = sphi 0, %s19
    %p16 = scmp.ge.s32.totalorder %s15, 4
    %s25 = sphi 0, %s27
    %s28 = sphi 0, %s25
    %s29 = sphi 0, %s28
    %s45 = sphi 0, %s29
    %s49 = sphi 0, %s49
    %s51 = sphi 0, %s49
    %s52 = sphi 0, %s51
    %s66 = sphi 0, %s52
    %s70 = sphi 0, %s70
    %s72 = sphi 0, %s70
    %s73 = sphi 0, %s72
    %s87 = sphi 0, %s73
    %s91 = sphi 0, %s91
    %s93 = sphi 0, %s91
    %s94 = sphi 0, %s93
    %s108 = sphi 0, %s94
    %s112 = sphi 0, %s112
    %s114 = sphi 0, %s112
    %s115 = sphi 0, %s114
    %s129 = sphi 0, %s115
    %s133 = sphi 0, %s133
    %s135 = sphi 0, %s133
    %s136 = sphi 0, %s135
    %s150 = sphi 0, %s136
    %s154 = sphi 0, %s154
    %s156 = sphi 0, %s154
    %s157 = sphi 0, %s156
    %s171 = sphi 0, %s157
    %s175 = sphi 0, %s175
    %s177 = sphi 0, %s175
    %s178 = sphi 0, %s177
    %s192 = sphi 0, %s178
    %s196 = sphi 0, %s196
    %s198 = sphi 0, %s196
    %s199 = sphi 0, %s198
    %s213 = sphi 0, %s199
    %s219 = sphi 0, %s221
    %s222 = sphi 0, %s219
    %s223 = sphi 0, %s222
    %s239 = sphi 0, %s223
  $region4: #{cross_conv_attention.2} parent=0 // loop_header_branch
    %18 = sbr.rel (%p16) target = $region8
  $region5: #{cross_conv_attention.2} parent=0 // loop_body
    %s20 = ssub.s32 %s15, 1
    %s21 = ssub.s32 %s15, 2
    %s22 = sadd.s32 %s15, 1
    %s23 = ssub.s32 %s15, %s22
    %p24 = scmp.eq.s32.totalorder %s23, 0
    %s26 = sadd.s32 %s25, 1
    %s27 = scalar_select %p24, %s25, %s26
    %p30 = pneg %p24
    %p31 = scmp.eq.s32.totalorder %s15, 1
    %p32 = por %p30, %p31
    %p33 = scmp.ne.s32.totalorder %s25, %s28
    %p34 = scmp.eq.s32.totalorder %s15, 0
    %p35 = por %p33, %p34
    %p36 = scmp.ne.s32.totalorder %s25, %s28
    %p37 = scmp.eq.s32.totalorder %s20, 1
    %p38 = por %p36, %p37
    %p39 = scmp.ne.s32.totalorder %s28, %s29
    %p40 = scmp.eq.s32.totalorder %s20, 0
    %p41 = por %p39, %p40
    %p42 = scmp.ne.s32.totalorder %s28, %s29
    %p43 = scmp.eq.s32.totalorder %s21, 1
    %p44 = por %p42, %p43
    %p46 = scmp.ne.s32.totalorder %s29, %s45
    %p47 = scmp.eq.s32.totalorder %s21, 0
    %p48 = por %p46, %p47
    %s50 = sadd.s32 %s49, 1
    %p53 = scmp.eq.s32.totalorder %s15, 1
    %p54 = scmp.ne.s32.totalorder %s49, %s51
    %p55 = scmp.eq.s32.totalorder %s15, 0
    %p56 = por %p54, %p55
    %p57 = scmp.ne.s32.totalorder %s49, %s51
    %p58 = scmp.eq.s32.totalorder %s20, 1
    %p59 = por %p57, %p58
    %p60 = scmp.ne.s32.totalorder %s51, %s52
    %p61 = scmp.eq.s32.totalorder %s20, 0
    %p62 = por %p60, %p61
    %p63 = scmp.ne.s32.totalorder %s51, %s52
    %p64 = scmp.eq.s32.totalorder %s21, 1
    %p65 = por %p63, %p64
    %p67 = scmp.ne.s32.totalorder %s52, %s66
    %p68 = scmp.eq.s32.totalorder %s21, 0
    %p69 = por %p67, %p68
    %s71 = sadd.s32 %s70, 1
    %p74 = scmp.eq.s32.totalorder %s15, 1
    %p75 = scmp.ne.s32.totalorder %s70, %s72
    %p76 = scmp.eq.s32.totalorder %s15, 0
    %p77 = por %p75, %p76
    %p78 = scmp.ne.s32.totalorder %s70, %s72
    %p79 = scmp.eq.s32.totalorder %s20, 1
    %p80 = por %p78, %p79
    %p81 = scmp.ne.s32.totalorder %s72, %s73
    %p82 = scmp.eq.s32.totalorder %s20, 0
    %p83 = por %p81, %p82
    %p84 = scmp.ne.s32.totalorder %s72, %s73
    %p85 = scmp.eq.s32.totalorder %s21, 1
    %p86 = por %p84, %p85
    %p88 = scmp.ne.s32.totalorder %s73, %s87
    %p89 = scmp.eq.s32.totalorder %s21, 0
    %p90 = por %p88, %p89
    %s92 = sadd.s32 %s91, 1
    %p95 = scmp.eq.s32.totalorder %s15, 1
    %p96 = scmp.ne.s32.totalorder %s91, %s93
    %p97 = scmp.eq.s32.totalorder %s15, 0
    %p98 = por %p96, %p97
    %p99 = scmp.ne.s32.totalorder %s91, %s93
    %p100 = scmp.eq.s32.totalorder %s20, 1
    %p101 = por %p99, %p100
    %p102 = scmp.ne.s32.totalorder %s93, %s94
    %p103 = scmp.eq.s32.totalorder %s20, 0
    %p104 = por %p102, %p103
    %p105 = scmp.ne.s32.totalorder %s93, %s94
    %p106 = scmp.eq.s32.totalorder %s21, 1
    %p107 = por %p105, %p106
    %p109 = scmp.ne.s32.totalorder %s94, %s108
    %p110 = scmp.eq.s32.totalorder %s21, 0
    %p111 = por %p109, %p110
    %s113 = sadd.s32 %s112, 1
    %p116 = scmp.eq.s32.totalorder %s15, 1
    %p117 = scmp.ne.s32.totalorder %s112, %s114
    %p118 = scmp.eq.s32.totalorder %s15, 0
    %p119 = por %p117, %p118
    %p120 = scmp.ne.s32.totalorder %s112, %s114
    %p121 = scmp.eq.s32.totalorder %s20, 1
    %p122 = por %p120, %p121
    %p123 = scmp.ne.s32.totalorder %s114, %s115
    %p124 = scmp.eq.s32.totalorder %s20, 0
    %p125 = por %p123, %p124
    %p126 = scmp.ne.s32.totalorder %s114, %s115
    %p127 = scmp.eq.s32.totalorder %s21, 1
    %p128 = por %p126, %p127
    %p130 = scmp.ne.s32.totalorder %s115, %s129
    %p131 = scmp.eq.s32.totalorder %s21, 0
    %p132 = por %p130, %p131
    %s134 = sadd.s32 %s133, 1
    %p137 = scmp.eq.s32.totalorder %s15, 1
    %p138 = scmp.ne.s32.totalorder %s133, %s135
    %p139 = scmp.eq.s32.totalorder %s15, 0
    %p140 = por %p138, %p139
    %p141 = scmp.ne.s32.totalorder %s133, %s135
    %p142 = scmp.eq.s32.totalorder %s20, 1
    %p143 = por %p141, %p142
    %p144 = scmp.ne.s32.totalorder %s135, %s136
    %p145 = scmp.eq.s32.totalorder %s20, 0
    %p146 = por %p144, %p145
    %p147 = scmp.ne.s32.totalorder %s135, %s136
    %p148 = scmp.eq.s32.totalorder %s21, 1
    %p149 = por %p147, %p148
    %p151 = scmp.ne.s32.totalorder %s136, %s150
    %p152 = scmp.eq.s32.totalorder %s21, 0
    %p153 = por %p151, %p152
    %s155 = sadd.s32 %s154, 1
    %p158 = scmp.eq.s32.totalorder %s15, 1
    %p159 = scmp.ne.s32.totalorder %s154, %s156
    %p160 = scmp.eq.s32.totalorder %s15, 0
    %p161 = por %p159, %p160
    %p162 = scmp.ne.s32.totalorder %s154, %s156
    %p163 = scmp.eq.s32.totalorder %s20, 1
    %p164 = por %p162, %p163
    %p165 = scmp.ne.s32.totalorder %s156, %s157
    %p166 = scmp.eq.s32.totalorder %s20, 0
    %p167 = por %p165, %p166
    %p168 = scmp.ne.s32.totalorder %s156, %s157
    %p169 = scmp.eq.s32.totalorder %s21, 1
    %p170 = por %p168, %p169
    %p172 = scmp.ne.s32.totalorder %s157, %s171
    %p173 = scmp.eq.s32.totalorder %s21, 0
    %p174 = por %p172, %p173
    %s176 = sadd.s32 %s175, 1
    %p179 = scmp.eq.s32.totalorder %s15, 1
    %p180 = scmp.ne.s32.totalorder %s175, %s177
    %p181 = scmp.eq.s32.totalorder %s15, 0
    %p182 = por %p180, %p181
    %p183 = scmp.ne.s32.totalorder %s175, %s177
    %p184 = scmp.eq.s32.totalorder %s20, 1
    %p185 = por %p183, %p184
    %p186 = scmp.ne.s32.totalorder %s177, %s178
    %p187 = scmp.eq.s32.totalorder %s20, 0
    %p188 = por %p186, %p187
    %p189 = scmp.ne.s32.totalorder %s177, %s178
    %p190 = scmp.eq.s32.totalorder %s21, 1
    %p191 = por %p189, %p190
    %p193 = scmp.ne.s32.totalorder %s178, %s192
    %p194 = scmp.eq.s32.totalorder %s21, 0
    %p195 = por %p193, %p194
    %s197 = sadd.s32 %s196, 1
    %p200 = scmp.eq.s32.totalorder %s15, 1
    %p201 = scmp.ne.s32.totalorder %s196, %s198
    %p202 = scmp.eq.s32.totalorder %s15, 0
    %p203 = por %p201, %p202
    %p204 = scmp.ne.s32.totalorder %s196, %s198
    %p205 = scmp.eq.s32.totalorder %s20, 1
    %p206 = por %p204, %p205
    %p207 = scmp.ne.s32.totalorder %s198, %s199
    %p208 = scmp.eq.s32.totalorder %s20, 0
    %p209 = por %p207, %p208
    %p210 = scmp.ne.s32.totalorder %s198, %s199
    %p211 = scmp.eq.s32.totalorder %s21, 1
    %p212 = por %p210, %p211
    %p214 = scmp.ne.s32.totalorder %s199, %s213
    %p215 = scmp.eq.s32.totalorder %s21, 0
    %p216 = por %p214, %p215
    %s217 = ssub.s32 %s15, %s22
    %p218 = scmp.eq.s32.totalorder %s217, 0
    %s220 = sadd.s32 %s219, 1
    %s221 = scalar_select %p218, %s219, %s220
    %p224 = pneg %p218
    %p225 = scmp.eq.s32.totalorder %s15, 1
    %p226 = por %p224, %p225
    %p227 = scmp.ne.s32.totalorder %s219, %s222
    %p228 = scmp.eq.s32.totalorder %s15, 0
    %p229 = por %p227, %p228
    %p230 = scmp.ne.s32.totalorder %s219, %s222
    %p231 = scmp.eq.s32.totalorder %s20, 1
    %p232 = por %p230, %p231
    %p233 = scmp.ne.s32.totalorder %s222, %s223
    %p234 = scmp.eq.s32.totalorder %s20, 0
    %p235 = por %p233, %p234
    %p236 = scmp.ne.s32.totalorder %s222, %s223
    %p237 = scmp.eq.s32.totalorder %s21, 1
    %p238 = por %p236, %p237
    %p240 = scmp.ne.s32.totalorder %s223, %s239
    %p241 = scmp.eq.s32.totalorder %s21, 0
    %p242 = por %p240, %p241
    %p243 = scmp.le.s32.totalorder 1, %s15
    %p244 = scmp.lt.s32.totalorder %s15, 3
    %p245 = pnand %p243, %p244
    %p246 = pneg %p245
    // Predicated region
    $region9: #{cross_conv_attention.2} parent=5 // pred_check
      _
    $region10: #{cross_conv_attention.2} parent=5 // pred_check_branch
      %248 = sbr.rel (%p245) target = $region12
    $region11: #{cross_conv_attention.2} parent=5 // pred_region
      %s249 = ssub.s32 %s15, 1
      // Predicated region
      $region13: #{cross_conv_attention.2} parent=11 // pred_check
        %p250 = pneg %p62
      $region14: #{cross_conv_attention.2} parent=11 // pred_check_branch
        %252 = sbr.rel (%p250) target = $region16
      $region15: #{cross_conv_attention.2} parent=11 // pred_region
        _
      $region16: #{cross_conv_attention.2} parent=11 // pred_fallthru
        _
      // Predicated region
      $region17: #{cross_conv_attention.2} parent=11 // pred_check
        %p253 = pneg %p83
      $region18: #{cross_conv_attention.2} parent=11 // pred_check_branch
        %255 = sbr.rel (%p253) target = $region20
      $region19: #{cross_conv_attention.2} parent=11 // pred_region
        _
      $region20: #{cross_conv_attention.2} parent=11 // pred_fallthru
        _
      // Predicated region
      $region21: #{cross_conv_attention.2} parent=11 // pred_check
        %p256 = pneg %p104
      $region22: #{cross_conv_attention.2} parent=11 // pred_check_branch
        %258 = sbr.rel (%p256) target = $region24
      $region23: #{cross_conv_attention.2} parent=11 // pred_region
        _
      $region24: #{cross_conv_attention.2} parent=11 // pred_fallthru
        _
      // Predicated region
      $region25: #{cross_conv_attention.2} parent=11 // pred_check
        %p259 = pneg %p125
      $region26: #{cross_conv_attention.2} parent=11 // pred_check_branch
        %261 = sbr.rel (%p259) target = $region28
      $region27: #{cross_conv_attention.2} parent=11 // pred_region
        _
      $region28: #{cross_conv_attention.2} parent=11 // pred_fallthru
        _
      // Predicated region
      $region29: #{cross_conv_attention.2} parent=11 // pred_check
        %p262 = pneg %p146
      $region30: #{cross_conv_attention.2} parent=11 // pred_check_branch
        %264 = sbr.rel (%p262) target = $region32
      $region31: #{cross_conv_attention.2} parent=11 // pred_region
        _
      $region32: #{cross_conv_attention.2} parent=11 // pred_fallthru
        _
      // Predicated region
      $region33: #{cross_conv_attention.2} parent=11 // pred_check
        %p265 = pneg %p167
      $region34: #{cross_conv_attention.2} parent=11 // pred_check_branch
        %267 = sbr.rel (%p265) target = $region36
      $region35: #{cross_conv_attention.2} parent=11 // pred_region
        _
      $region36: #{cross_conv_attention.2} parent=11 // pred_fallthru
        _
      // Predicated region
      $region37: #{cross_conv_attention.2} parent=11 // pred_check
        %p268 = pneg %p188
      $region38: #{cross_conv_attention.2} parent=11 // pred_check_branch
        %270 = sbr.rel (%p268) target = $region40
      $region39: #{cross_conv_attention.2} parent=11 // pred_region
        _
      $region40: #{cross_conv_attention.2} parent=11 // pred_fallthru
        _
      // Predicated region
      $region41: #{cross_conv_attention.2} parent=11 // pred_check
        %p271 = pneg %p209
      $region42: #{cross_conv_attention.2} parent=11 // pred_check_branch
        %273 = sbr.rel (%p271) target = $region44
      $region43: #{cross_conv_attention.2} parent=11 // pred_region
        _
      $region44: #{cross_conv_attention.2} parent=11 // pred_fallthru
        _
    $region12: #{cross_conv_attention.2} parent=5 // pred_fallthru
      _
    %p274 = scmp.lt.s32.totalorder %s15, 2
    // Predicated region
    $region45: #{cross_conv_attention.2} parent=5 // pred_check
      %p275 = pneg %p274
    $region46: #{cross_conv_attention.2} parent=5 // pred_check_branch
      %277 = sbr.rel (%p275) target = $region48
    $region47: #{cross_conv_attention.2} parent=5 // pred_region
      // Predicated region
      $region49: #{cross_conv_attention.2} parent=47 // pred_check
        %p278 = pneg %p35
      $region50: #{cross_conv_attention.2} parent=47 // pred_check_branch
        %280 = sbr.rel (%p278) target = $region52
      $region51: #{cross_conv_attention.2} parent=47 // pred_region
        %p281 = scmp.lt.s32.totalorder %s15, 1
        %s282 = scalar_select %p281, %s15, 1
        %s283 = smul.addr %s282, 16
        %s284 = smul.addr %s283, 8
        %s285 = scalar_lea.vmem %s0, %s284
      $region52: #{cross_conv_attention.2} parent=47 // pred_fallthru
        _
    $region48: #{cross_conv_attention.2} parent=5 // pred_fallthru
      _
    %p286 = scmp.le.s32.totalorder 1, %s15
    %p287 = scmp.lt.s32.totalorder %s15, 3
    %p288 = pnand %p286, %p287
    %p289 = pneg %p288
    // Predicated region
    $region53: #{cross_conv_attention.2} parent=5 // pred_check
      _
    $region54: #{cross_conv_attention.2} parent=5 // pred_check_branch
      %291 = sbr.rel (%p288) target = $region56
    $region55: #{cross_conv_attention.2} parent=5 // pred_region
      %s292 = ssub.s32 %s15, 1
      %p293 = scmp.lt.s32.totalorder %s20, 1
      %s294 = scalar_select %p293, %s20, 1
      %s295 = smul.addr %s294, 16
      %s296 = smul.addr %s295, 8
      %s297 = scalar_lea.vmem %s0, %s296
      %p298 = pneg %p41
      %p299 = pneg %p38
      %p300 = pneg %p62
      %p301 = pneg %p59
      %p302 = pneg %p83
      %p303 = pneg %p80
      %p304 = pneg %p104
      %p305 = pneg %p101
      %p306 = pneg %p125
      %p307 = pneg %p122
      %p308 = pneg %p146
      %p309 = pneg %p143
      %p310 = pneg %p167
      %p311 = pneg %p164
      %p312 = pneg %p188
      %p313 = pneg %p185
      %p314 = pneg %p209
      %p315 = pneg %p206
      %p316 = pneg %p235
      %p317 = pneg %p232
      %p318 = scmp.lt.s32.totalorder %s20, 1
      %s319 = scalar_select %p318, %s20, 1
      %s320 = smul.addr %s319, 16
      %s321 = smul.addr %s320, 8
      %s322 = scalar_lea.vmem %s9, %s321
      %p323 = scmp.lt.s32.totalorder %s20, 1
      %s324 = scalar_select %p323, %s20, 1
      %s325 = smul.addr %s324, 16
      %s326 = smul.addr %s325, 8
      %s327 = scalar_lea.vmem %s0, %s326
      %p328 = scmp.lt.s32.totalorder %s20, 1
      %s329 = scalar_select %p328, %s20, 1
      %s330 = smul.addr %s329, 16
      %s331 = smul.addr %s330, 8
      %s332 = scalar_lea.vmem %s9, %s331
      %v334 = vld [vmem:[%s327] sm:$0xff]
      %v335 = vld [vmem:[%s327 + $0x8] sm:$0xff]
      %v336 = vld [vmem:[%s327 + $0x10] sm:$0xff]
      %v337 = vld [vmem:[%s327 + $0x18] sm:$0xff]
      %v338 = vld [vmem:[%s327 + $0x20] sm:$0xff]
      %v339 = vld [vmem:[%s327 + $0x28] sm:$0xff]
      %v340 = vld [vmem:[%s327 + $0x30] sm:$0xff]
      %v341 = vld [vmem:[%s327 + $0x38] sm:$0xff]
      %v342 = vld [vmem:[%s327 + $0x40] sm:$0xff]
      %v343 = vld [vmem:[%s327 + $0x48] sm:$0xff]
      %v344 = vld [vmem:[%s327 + $0x50] sm:$0xff]
      %v345 = vld [vmem:[%s327 + $0x58] sm:$0xff]
      %v346 = vld [vmem:[%s327 + $0x60] sm:$0xff]
      %v347 = vld [vmem:[%s327 + $0x68] sm:$0xff]
      %v348 = vld [vmem:[%s327 + $0x70] sm:$0xff]
      %v349 = vld [vmem:[%s327 + $0x78] sm:$0xff]
      %v350 = vpack.c.bf16 %v335, %v334
      %v351 = vpack.c.bf16 %v337, %v336
      %v352 = vpack.c.bf16 %v339, %v338
      %v353 = vpack.c.bf16 %v341, %v340
      %v354 = vpack.c.bf16 %v343, %v342
      %v355 = vpack.c.bf16 %v345, %v344
      %v356 = vpack.c.bf16 %v347, %v346
      %v357 = vpack.c.bf16 %v349, %v348
      %v358 = vld [vmem:[%s1] sm:$0xf]
      %v359 = vld [vmem:[%s1 + $0x4] sm:$0xf]
      %v360 = vld [vmem:[%s1 + $0x8] sm:$0xf]
      %v361 = vld [vmem:[%s1 + $0xc] sm:$0xf]
      %v362 = vld [vmem:[%s2] sm:$0x1]
      %v364 = vlaneseq
      %v365 = vshrl.u32 %v364, 7
      %v366 = vsub.s32 0, %v365
      %v367 = vrot.slane %v362, %v366
      %v373 = vunpack.c.l.b16 %v358
      %v374 = vunpack.c.l.b16 %v359
      %v375 = vunpack.c.l.b16 %v360
      %v376 = vunpack.c.l.b16 %v361
      %v377 = vpack.c.b16 %v374, %v373
      %v378 = vpack.c.b16 %v376, %v375
      %vm381 = vcmask 261120
      %v383 = vsel %vm381, %v350, 0
      %v386 = vsel %vm381, %v351, 0
      %v389 = vsel %vm381, %v352, 0
      %v392 = vsel %vm381, %v353, 0
      %v395 = vsel %vm381, %v354, 0
      %v398 = vsel %vm381, %v355, 0
      %v401 = vsel %vm381, %v356, 0
      %v404 = vsel %vm381, %v357, 0
      %406 = vmatprep.subr.bf16.mxu0 0
      %407 = vmatpush1.bf16.msra.mxu0 %v377
      %408 = vmatprep.subr.bf16.mxu0 0
      %409 = vmatpush1.bf16.msra.mxu0 %v378
      %410 = vmatprep.subr.bf16.mxu0 0
      %411 = vmatpush1.bf16.msra.mxu0 0
      %412 = vmatprep.subr.bf16.mxu0 0
      %413 = vmatpush1.bf16.msra.mxu0 0
      %414 = vmatprep.subr.bf16.mxu0 0
      %415 = vmatpush1.bf16.msra.mxu0 0
      %416 = vmatprep.subr.bf16.mxu0 0
      %417 = vmatpush1.bf16.msra.mxu0 0
      %418 = vmatprep.subr.bf16.mxu0 0
      %419 = vmatpush1.bf16.msra.mxu0 0
      %420 = vmatprep.subr.bf16.mxu0 0
      %421 = vmatpush1.bf16.msra.mxu0 0
      %422 = vmatprep.subr.bf16.mxu0 0
      %423 = vmatpush1.bf16.msra.mxu0 0
      %424 = vmatprep.subr.bf16.mxu0 0
      %425 = vmatpush1.bf16.msra.mxu0 0
      %426 = vmatprep.subr.bf16.mxu0 0
      %427 = vmatpush1.bf16.msra.mxu0 0
      %428 = vmatprep.subr.bf16.mxu0 0
      %429 = vmatpush1.bf16.msra.mxu0 0
      %430 = vmatprep.subr.bf16.mxu0 0
      %431 = vmatpush1.bf16.msra.mxu0 0
      %432 = vmatprep.subr.bf16.mxu0 0
      %433 = vmatpush1.bf16.msra.mxu0 0
      %434 = vmatprep.subr.bf16.mxu0 0
      %435 = vmatpush1.bf16.msra.mxu0 0
      %436 = vmatprep.subr.bf16.mxu0 0
      %437 = vmatpush1.bf16.msra.mxu0 0
      %438 = vmatprep.mubr.bf16.mxu0 0
      %439 = vmatmul.mubr.bf16.gmra.mrb[0].mxu0 %v383
      %v440 = vpop.f32.mrb[0].mxu0
      %v441 = vadd.f32 %v367, %v440
      %v442 = vpop.f32.mrb[0].mxu0
      %v443 = vpop.f32.mrb[0].mxu0
      %v444 = vadd.f32 %v367, %v443
      %v445 = vpop.f32.mrb[0].mxu0
      %446 = vmatprep.mubr.bf16.mxu0 0
      %447 = vmatmul.mubr.bf16.gmra.mrb[0].mxu0 %v386
      %v448 = vpop.f32.mrb[0].mxu0
      %v449 = vadd.f32 %v367, %v448
      %v450 = vpop.f32.mrb[0].mxu0
      %v451 = vpop.f32.mrb[0].mxu0
      %v452 = vadd.f32 %v367, %v451
      %v453 = vpop.f32.mrb[0].mxu0
      %454 = vmatprep.mubr.bf16.mxu0 0
      %455 = vmatmul.mubr.bf16.gmra.mrb[0].mxu0 %v389
      %v456 = vpop.f32.mrb[0].mxu0
      %v457 = vadd.f32 %v367, %v456
      %v458 = vpop.f32.mrb[0].mxu0
      %v459 = vpop.f32.mrb[0].mxu0
      %v460 = vadd.f32 %v367, %v459
      %v461 = vpop.f32.mrb[0].mxu0
      %462 = vmatprep.mubr.bf16.mxu0 0
      %463 = vmatmul.mubr.bf16.gmra.mrb[0].mxu0 %v392
      %v464 = vpop.f32.mrb[0].mxu0
      %v465 = vadd.f32 %v367, %v464
      %v466 = vpop.f32.mrb[0].mxu0
      %v467 = vpop.f32.mrb[0].mxu0
      %v468 = vadd.f32 %v367, %v467
      %v469 = vpop.f32.mrb[0].mxu0
      %470 = vmatprep.mubr.bf16.mxu0 0
      %471 = vmatmul.mubr.bf16.gmra.mrb[0].mxu0 %v395
      %v472 = vpop.f32.mrb[0].mxu0
      %v473 = vadd.f32 %v367, %v472
      %v474 = vpop.f32.mrb[0].mxu0
      %v475 = vpop.f32.mrb[0].mxu0
      %v476 = vadd.f32 %v367, %v475
      %v477 = vpop.f32.mrb[0].mxu0
      %478 = vmatprep.mubr.bf16.mxu0 0
      %479 = vmatmul.mubr.bf16.gmra.mrb[0].mxu0 %v398
      %v480 = vpop.f32.mrb[0].mxu0
      %v481 = vadd.f32 %v367, %v480
      %v482 = vpop.f32.mrb[0].mxu0
      %v483 = vpop.f32.mrb[0].mxu0
      %v484 = vadd.f32 %v367, %v483
      %v485 = vpop.f32.mrb[0].mxu0
      %486 = vmatprep.mubr.bf16.mxu0 0
      %487 = vmatmul.mubr.bf16.gmra.mrb[0].mxu0 %v401
      %v488 = vpop.f32.mrb[0].mxu0
      %v489 = vadd.f32 %v367, %v488
      %v490 = vpop.f32.mrb[0].mxu0
      %v491 = vpop.f32.mrb[0].mxu0
      %v492 = vadd.f32 %v367, %v491
      %v493 = vpop.f32.mrb[0].mxu0
      %494 = vmatprep.mubr.bf16.mxu0 0
      %495 = vmatmul.mubr.bf16.gmra.mrb[0].mxu0 %v404
      %v496 = vpop.f32.mrb[0].mxu0
      %v497 = vadd.f32 %v367, %v496
      %v498 = vpop.f32.mrb[0].mxu0
      %v499 = vpop.f32.mrb[0].mxu0
      %v500 = vadd.f32 %v367, %v499
      %v501 = vpop.f32.mrb[0].mxu0
      %502 = vdwg.mxu0
      %503 = vst.msk [vmem:[#allocation2] sm:$0xff] %vm381, 0.0
      %vm504 = vcmask 254976
      %505 = vst.msk [vmem:[#allocation2 + $0x8] sm:$0x3] %vm504, 0.0
      %506 = vst.msk [vmem:[#allocation2 + $0x10] sm:$0xff] %vm381, 0.0
      %507 = vst.msk [vmem:[#allocation2 + $0x18] sm:$0x3] %vm504, 0.0
      %508 = vst.msk [vmem:[#allocation2 + $0x20] sm:$0xff] %vm381, 0.0
      %509 = vst.msk [vmem:[#allocation2 + $0x28] sm:$0x3] %vm504, 0.0
      %510 = vst.msk [vmem:[#allocation2 + $0x30] sm:$0xff] %vm381, 0.0
      %511 = vst.msk [vmem:[#allocation2 + $0x38] sm:$0x3] %vm504, 0.0
      %512 = vst.msk [vmem:[#allocation2 + $0x40] sm:$0xff] %vm381, 0.0
      %513 = vst.msk [vmem:[#allocation2 + $0x48] sm:$0x3] %vm504, 0.0
      %514 = vst.msk [vmem:[#allocation2 + $0x50] sm:$0xff] %vm381, 0.0
      %515 = vst.msk [vmem:[#allocation2 + $0x58] sm:$0x3] %vm504, 0.0
      %516 = vst.msk [vmem:[#allocation2 + $0x60] sm:$0xff] %vm381, 0.0
      %517 = vst.msk [vmem:[#allocation2 + $0x68] sm:$0x3] %vm504, 0.0
      %518 = vst.msk [vmem:[#allocation2 + $0x70] sm:$0xff] %vm381, 0.0
      %519 = vst.msk [vmem:[#allocation2 + $0x78] sm:$0x3] %vm504, 0.0
      %520 = vst.msk [vmem:[#allocation2 + $0x80] sm:$0xff] %vm381, 0.0
      %521 = vst.msk [vmem:[#allocation2 + $0x88] sm:$0x3] %vm504, 0.0
      %522 = vst.msk [vmem:[#allocation2 + $0x90] sm:$0xff] %vm381, 0.0
      %523 = vst.msk [vmem:[#allocation2 + $0x98] sm:$0x3] %vm504, 0.0
      %524 = vst.msk [vmem:[#allocation2 + $0xa0] sm:$0xff] %vm381, 0.0
      %525 = vst.msk [vmem:[#allocation2 + $0xa8] sm:$0x3] %vm504, 0.0
      %526 = vst.msk [vmem:[#allocation2 + $0xb0] sm:$0xff] %vm381, 0.0
      %527 = vst.msk [vmem:[#allocation2 + $0xb8] sm:$0x3] %vm504, 0.0
      %528 = vst.msk [vmem:[#allocation2 + $0xc0] sm:$0xff] %vm381, 0.0
      %529 = vst.msk [vmem:[#allocation2 + $0xc8] sm:$0x3] %vm504, 0.0
      %530 = vst.msk [vmem:[#allocation2 + $0xd0] sm:$0xff] %vm381, 0.0
      %531 = vst.msk [vmem:[#allocation2 + $0xd8] sm:$0x3] %vm504, 0.0
      %532 = vst.msk [vmem:[#allocation2 + $0xe0] sm:$0xff] %vm381, 0.0
      %533 = vst.msk [vmem:[#allocation2 + $0xe8] sm:$0x3] %vm504, 0.0
      %534 = vst.msk [vmem:[#allocation2 + $0xf0] sm:$0xff] %vm381, 0.0
      %535 = vst.msk [vmem:[#allocation2 + $0xf8] sm:$0x3] %vm504, 0.0
      %536 = vst.msk [vmem:[#allocation2 + $0x100] sm:$0xff] %vm381, 0.0
      %537 = vst.msk [vmem:[#allocation2 + $0x108] sm:$0x3] %vm504, 0.0
      %538 = vst.msk [vmem:[#allocation2 + $0x110] sm:$0xff] %vm381, 0.0
      %539 = vst.msk [vmem:[#allocation2 + $0x118] sm:$0x3] %vm504, 0.0
      %540 = vst.msk [vmem:[#allocation2 + $0x120] sm:$0xff] %vm381, 0.0
      %541 = vst.msk [vmem:[#allocation2 + $0x128] sm:$0x3] %vm504, 0.0
      %542 = vst.msk [vmem:[#allocation2 + $0x130] sm:$0xff] %vm381, 0.0
      %543 = vst.msk [vmem:[#allocation2 + $0x138] sm:$0x3] %vm504, 0.0
      %s544 = scalar_lea.vmem [#allocation2], 16
      %545 = vst.msk [vmem:[%s544 + $0x1] sm:$0xff] %vm381, %v441
      %546 = vst.msk [vmem:[%s544 + $0x11] sm:$0xff] %vm381, %v444
      %547 = vst.msk [vmem:[%s544 + $0x21] sm:$0xff] %vm381, %v449
      %548 = vst.msk [vmem:[%s544 + $0x31] sm:$0xff] %vm381, %v452
      %549 = vst.msk [vmem:[%s544 + $0x41] sm:$0xff] %vm381, %v457
      %550 = vst.msk [vmem:[%s544 + $0x51] sm:$0xff] %vm381, %v460
      %551 = vst.msk [vmem:[%s544 + $0x61] sm:$0xff] %vm381, %v465
      %552 = vst.msk [vmem:[%s544 + $0x71] sm:$0xff] %vm381, %v468
      %553 = vst.msk [vmem:[%s544 + $0xa1] sm:$0xff] %vm381, %v473
      %554 = vst.msk [vmem:[%s544 + $0xb1] sm:$0xff] %vm381, %v476
      %555 = vst.msk [vmem:[%s544 + $0xc1] sm:$0xff] %vm381, %v481
      %556 = vst.msk [vmem:[%s544 + $0xd1] sm:$0xff] %vm381, %v484
      %557 = vst.msk [vmem:[%s544 + $0xe1] sm:$0xff] %vm381, %v489
      %558 = vst.msk [vmem:[%s544 + $0xf1] sm:$0xff] %vm381, %v492
      %559 = vst.msk [vmem:[%s544 + $0x101] sm:$0xff] %vm381, %v497
      %560 = vst.msk [vmem:[%s544 + $0x111] sm:$0xff] %vm381, %v500
      %v561 = vld [vmem:[#allocation2] sm:$0xff]
      %v562 = vld [vmem:[#allocation2 + $0x10] sm:$0xff]
      %v563 = vld [vmem:[#allocation2 + $0x20] sm:$0xff]
      %v564 = vld [vmem:[#allocation2 + $0x30] sm:$0xff]
      %v565 = vld [vmem:[#allocation2 + $0x40] sm:$0xff]
      %v566 = vld [vmem:[#allocation2 + $0x50] sm:$0xff]
      %v567 = vld [vmem:[#allocation2 + $0x60] sm:$0xff]
      %v568 = vld [vmem:[#allocation2 + $0x70] sm:$0xff]
      %v569 = vld [vmem:[#allocation2 + $0xa0] sm:$0xff]
      %v570 = vld [vmem:[#allocation2 + $0xb0] sm:$0xff]
      %v571 = vld [vmem:[#allocation2 + $0xc0] sm:$0xff]
      %v572 = vld [vmem:[#allocation2 + $0xd0] sm:$0xff]
      %v573 = vld [vmem:[#allocation2 + $0xe0] sm:$0xff]
      %v574 = vld [vmem:[#allocation2 + $0xf0] sm:$0xff]
      %v575 = vld [vmem:[#allocation2 + $0x100] sm:$0xff]
      %v576 = vld [vmem:[#allocation2 + $0x110] sm:$0xff]
      %v577 = vld [vmem:[#allocation2 + $0x1] sm:$0xff]
      %v578 = vld [vmem:[#allocation2 + $0x11] sm:$0xff]
      %v579 = vld [vmem:[#allocation2 + $0x21] sm:$0xff]
      %v580 = vld [vmem:[#allocation2 + $0x31] sm:$0xff]
      %v581 = vld [vmem:[#allocation2 + $0x41] sm:$0xff]
      %v582 = vld [vmem:[#allocation2 + $0x51] sm:$0xff]
      %v583 = vld [vmem:[#allocation2 + $0x61] sm:$0xff]
      %v584 = vld [vmem:[#allocation2 + $0x71] sm:$0xff]
      %v585 = vld [vmem:[#allocation2 + $0xa1] sm:$0xff]
      %v586 = vld [vmem:[#allocation2 + $0xb1] sm:$0xff]
      %v587 = vld [vmem:[#allocation2 + $0xc1] sm:$0xff]
      %v588 = vld [vmem:[#allocation2 + $0xd1] sm:$0xff]
      %v589 = vld [vmem:[#allocation2 + $0xe1] sm:$0xff]
      %v590 = vld [vmem:[#allocation2 + $0xf1] sm:$0xff]
      %v591 = vld [vmem:[#allocation2 + $0x101] sm:$0xff]
      %v592 = vld [vmem:[#allocation2 + $0x111] sm:$0xff]
      %v593 = vld [vmem:[#allocation2 + $0x2] sm:$0xff]
      %v594 = vld [vmem:[#allocation2 + $0x12] sm:$0xff]
      %v595 = vld [vmem:[#allocation2 + $0x22] sm:$0xff]
      %v596 = vld [vmem:[#allocation2 + $0x32] sm:$0xff]
      %v597 = vld [vmem:[#allocation2 + $0x42] sm:$0xff]
      %v598 = vld [vmem:[#allocation2 + $0x52] sm:$0xff]
      %v599 = vld [vmem:[#allocation2 + $0x62] sm:$0xff]
      %v600 = vld [vmem:[#allocation2 + $0x72] sm:$0xff]
      %v601 = vld [vmem:[#allocation2 + $0xa2] sm:$0xff]
      %v602 = vld [vmem:[#allocation2 + $0xb2] sm:$0xff]
      %v603 = vld [vmem:[#allocation2 + $0xc2] sm:$0xff]
      %v604 = vld [vmem:[#allocation2 + $0xd2] sm:$0xff]
      %v605 = vld [vmem:[#allocation2 + $0xe2] sm:$0xff]
      %v606 = vld [vmem:[#allocation2 + $0xf2] sm:$0xff]
      %v607 = vld [vmem:[#allocation2 + $0x102] sm:$0xff]
      %v608 = vld [vmem:[#allocation2 + $0x112] sm:$0xff]
      %v609 = vld [vmem:[%s544] sm:$0xff]
      %v610 = vld [vmem:[%s544 + $0x10] sm:$0xff]
      %v611 = vld [vmem:[%s544 + $0x20] sm:$0xff]
      %v612 = vld [vmem:[%s544 + $0x30] sm:$0xff]
      %v613 = vld [vmem:[%s544 + $0x40] sm:$0xff]
      %v614 = vld [vmem:[%s544 + $0x50] sm:$0xff]
      %v615 = vld [vmem:[%s544 + $0x60] sm:$0xff]
      %v616 = vld [vmem:[%s544 + $0x70] sm:$0xff]
      %v617 = vld [vmem:[%s544 + $0xa0] sm:$0xff]
      %v618 = vld [vmem:[%s544 + $0xb0] sm:$0xff]
      %v619 = vld [vmem:[%s544 + $0xc0] sm:$0xff]
      %v620 = vld [vmem:[%s544 + $0xd0] sm:$0xff]
      %v621 = vld [vmem:[%s544 + $0xe0] sm:$0xff]
      %v622 = vld [vmem:[%s544 + $0xf0] sm:$0xff]
      %v623 = vld [vmem:[%s544 + $0x100] sm:$0xff]
      %v624 = vld [vmem:[%s544 + $0x110] sm:$0xff]
      %v625 = vld [vmem:[%s544 + $0x1] sm:$0xff]
      %v626 = vld [vmem:[%s544 + $0x11] sm:$0xff]
      %v627 = vld [vmem:[%s544 + $0x21] sm:$0xff]
      %v628 = vld [vmem:[%s544 + $0x31] sm:$0xff]
      %v629 = vld [vmem:[%s544 + $0x41] sm:$0xff]
      %v630 = vld [vmem:[%s544 + $0x51] sm:$0xff]
      %v631 = vld [vmem:[%s544 + $0x61] sm:$0xff]
      %v632 = vld [vmem:[%s544 + $0x71] sm:$0xff]
      %v633 = vld [vmem:[%s544 + $0xa1] sm:$0xff]
      %v634 = vld [vmem:[%s544 + $0xb1] sm:$0xff]
      %v635 = vld [vmem:[%s544 + $0xc1] sm:$0xff]
      %v636 = vld [vmem:[%s544 + $0xd1] sm:$0xff]
      %v637 = vld [vmem:[%s544 + $0xe1] sm:$0xff]
      %v638 = vld [vmem:[%s544 + $0xf1] sm:$0xff]
      %v639 = vld [vmem:[%s544 + $0x101] sm:$0xff]
      %v640 = vld [vmem:[%s544 + $0x111] sm:$0xff]
      %v641 = vld [vmem:[%s544 + $0x2] sm:$0xff]
      %v642 = vld [vmem:[%s544 + $0x12] sm:$0xff]
      %v643 = vld [vmem:[%s544 + $0x22] sm:$0xff]
      %v644 = vld [vmem:[%s544 + $0x32] sm:$0xff]
      %v645 = vld [vmem:[%s544 + $0x42] sm:$0xff]
      %v646 = vld [vmem:[%s544 + $0x52] sm:$0xff]
      %v647 = vld [vmem:[%s544 + $0x62] sm:$0xff]
      %v648 = vld [vmem:[%s544 + $0x72] sm:$0xff]
      %v649 = vld [vmem:[%s544 + $0xa2] sm:$0xff]
      %v650 = vld [vmem:[%s544 + $0xb2] sm:$0xff]
      %v651 = vld [vmem:[%s544 + $0xc2] sm:$0xff]
      %v652 = vld [vmem:[%s544 + $0xd2] sm:$0xff]
      %v653 = vld [vmem:[%s544 + $0xe2] sm:$0xff]
      %v654 = vld [vmem:[%s544 + $0xf2] sm:$0xff]
      %v655 = vld [vmem:[%s544 + $0x102] sm:$0xff]
      %v656 = vld [vmem:[%s544 + $0x112] sm:$0xff]
      %s657 = scalar_lea.vmem [#allocation2], 32
      %v658 = vld [vmem:[%s657] sm:$0xff]
      %v659 = vld [vmem:[%s657 + $0x10] sm:$0xff]
      %v660 = vld [vmem:[%s657 + $0x20] sm:$0xff]
      %v661 = vld [vmem:[%s657 + $0x30] sm:$0xff]
      %v662 = vld [vmem:[%s657 + $0x40] sm:$0xff]
      %v663 = vld [vmem:[%s657 + $0x50] sm:$0xff]
      %v664 = vld [vmem:[%s657 + $0x60] sm:$0xff]
      %v665 = vld [vmem:[%s657 + $0x70] sm:$0xff]
      %v666 = vld [vmem:[%s657 + $0xa0] sm:$0xff]
      %v667 = vld [vmem:[%s657 + $0xb0] sm:$0xff]
      %v668 = vld [vmem:[%s657 + $0xc0] sm:$0xff]
      %v669 = vld [vmem:[%s657 + $0xd0] sm:$0xff]
      %v670 = vld [vmem:[%s657 + $0xe0] sm:$0xff]
      %v671 = vld [vmem:[%s657 + $0xf0] sm:$0xff]
      %v672 = vld [vmem:[%s657 + $0x100] sm:$0xff]
      %v673 = vld [vmem:[%s657 + $0x110] sm:$0xff]
      %v674 = vld [vmem:[%s657 + $0x1] sm:$0xff]
      %v675 = vld [vmem:[%s657 + $0x11] sm:$0xff]
      %v676 = vld [vmem:[%s657 + $0x21] sm:$0xff]
      %v677 = vld [vmem:[%s657 + $0x31] sm:$0xff]
      %v678 = vld [vmem:[%s657 + $0x41] sm:$0xff]
      %v679 = vld [vmem:[%s657 + $0x51] sm:$0xff]
      %v680 = vld [vmem:[%s657 + $0x61] sm:$0xff]
      %v681 = vld [vmem:[%s657 + $0x71] sm:$0xff]
      %v682 = vld [vmem:[%s657 + $0xa1] sm:$0xff]
      %v683 = vld [vmem:[%s657 + $0xb1] sm:$0xff]
      %v684 = vld [vmem:[%s657 + $0xc1] sm:$0xff]
      %v685 = vld [vmem:[%s657 + $0xd1] sm:$0xff]
      %v686 = vld [vmem:[%s657 + $0xe1] sm:$0xff]
      %v687 = vld [vmem:[%s657 + $0xf1] sm:$0xff]
      %v688 = vld [vmem:[%s657 + $0x101] sm:$0xff]
      %v689 = vld [vmem:[%s657 + $0x111] sm:$0xff]
      %v690 = vld [vmem:[%s657 + $0x2] sm:$0xff]
      %v691 = vld [vmem:[%s657 + $0x12] sm:$0xff]
      %v692 = vld [vmem:[%s657 + $0x22] sm:$0xff]
      %v693 = vld [vmem:[%s657 + $0x32] sm:$0xff]
      %v694 = vld [vmem:[%s657 + $0x42] sm:$0xff]
      %v695 = vld [vmem:[%s657 + $0x52] sm:$0xff]
      %v696 = vld [vmem:[%s657 + $0x62] sm:$0xff]
      %v697 = vld [vmem:[%s657 + $0x72] sm:$0xff]
      %v698 = vld [vmem:[%s657 + $0xa2] sm:$0xff]
      %v699 = vld [vmem:[%s657 + $0xb2] sm:$0xff]
      %v700 = vld [vmem:[%s657 + $0xc2] sm:$0xff]
      %v701 = vld [vmem:[%s657 + $0xd2] sm:$0xff]
      %v702 = vld [vmem:[%s657 + $0xe2] sm:$0xff]
      %v703 = vld [vmem:[%s657 + $0xf2] sm:$0xff]
      %v704 = vld [vmem:[%s657 + $0x102] sm:$0xff]
      %v705 = vld [vmem:[%s657 + $0x112] sm:$0xff]
      %722 = vrot.lane.b32.xlu0 %v577, 32
      %v723 = vpop.permute.xlu0 %722
      %724 = vrot.lane.b32.xlu0 %v578, 32
      %v725 = vpop.permute.xlu0 %724
      %726 = vrot.lane.b32.xlu0 %v579, 32
      %v727 = vpop.permute.xlu0 %726
      %728 = vrot.lane.b32.xlu0 %v580, 32
      %v729 = vpop.permute.xlu0 %728
      %730 = vrot.lane.b32.xlu0 %v581, 32
      %v731 = vpop.permute.xlu0 %730
      %732 = vrot.lane.b32.xlu0 %v582, 32
      %v733 = vpop.permute.xlu0 %732
      %734 = vrot.lane.b32.xlu0 %v583, 32
      %v735 = vpop.permute.xlu0 %734
      %736 = vrot.lane.b32.xlu0 %v584, 32
      %v737 = vpop.permute.xlu0 %736
      %738 = vrot.lane.b32.xlu0 %v585, 32
      %v739 = vpop.permute.xlu0 %738
      %740 = vrot.lane.b32.xlu0 %v586, 32
      %v741 = vpop.permute.xlu0 %740
      %742 = vrot.lane.b32.xlu0 %v587, 32
      %v743 = vpop.permute.xlu0 %742
      %744 = vrot.lane.b32.xlu0 %v588, 32
      %v745 = vpop.permute.xlu0 %744
      %746 = vrot.lane.b32.xlu0 %v589, 32
      %v747 = vpop.permute.xlu0 %746
      %748 = vrot.lane.b32.xlu0 %v590, 32
      %v749 = vpop.permute.xlu0 %748
      %750 = vrot.lane.b32.xlu0 %v591, 32
      %v751 = vpop.permute.xlu0 %750
      %752 = vrot.lane.b32.xlu0 %v592, 32
      %v753 = vpop.permute.xlu0 %752
      %786 = vrot.lane.b32.xlu0 %v593, 64
      %v787 = vpop.permute.xlu0 %786
      %788 = vrot.lane.b32.xlu0 %v594, 64
      %v789 = vpop.permute.xlu0 %788
      %790 = vrot.lane.b32.xlu0 %v595, 64
      %v791 = vpop.permute.xlu0 %790
      %792 = vrot.lane.b32.xlu0 %v596, 64
      %v793 = vpop.permute.xlu0 %792
      %794 = vrot.lane.b32.xlu0 %v597, 64
      %v795 = vpop.permute.xlu0 %794
      %796 = vrot.lane.b32.xlu0 %v598, 64
      %v797 = vpop.permute.xlu0 %796
      %798 = vrot.lane.b32.xlu0 %v599, 64
      %v799 = vpop.permute.xlu0 %798
      %800 = vrot.lane.b32.xlu0 %v600, 64
      %v801 = vpop.permute.xlu0 %800
      %802 = vrot.lane.b32.xlu0 %v601, 64
      %v803 = vpop.permute.xlu0 %802
      %804 = vrot.lane.b32.xlu0 %v602, 64
      %v805 = vpop.permute.xlu0 %804
      %806 = vrot.lane.b32.xlu0 %v603, 64
      %v807 = vpop.permute.xlu0 %806
      %808 = vrot.lane.b32.xlu0 %v604, 64
      %v809 = vpop.permute.xlu0 %808
      %810 = vrot.lane.b32.xlu0 %v605, 64
      %v811 = vpop.permute.xlu0 %810
      %812 = vrot.lane.b32.xlu0 %v606, 64
      %v813 = vpop.permute.xlu0 %812
      %814 = vrot.lane.b32.xlu0 %v607, 64
      %v815 = vpop.permute.xlu0 %814
      %816 = vrot.lane.b32.xlu0 %v608, 64
      %v817 = vpop.permute.xlu0 %816
      %850 = vrot.lane.b32.xlu0 %v609, 96
      %v851 = vpop.permute.xlu0 %850
      %852 = vrot.lane.b32.xlu0 %v610, 96
      %v853 = vpop.permute.xlu0 %852
      %854 = vrot.lane.b32.xlu0 %v611, 96
      %v855 = vpop.permute.xlu0 %854
      %856 = vrot.lane.b32.xlu0 %v612, 96
      %v857 = vpop.permute.xlu0 %856
      %858 = vrot.lane.b32.xlu0 %v613, 96
      %v859 = vpop.permute.xlu0 %858
      %860 = vrot.lane.b32.xlu0 %v614, 96
      %v861 = vpop.permute.xlu0 %860
      %862 = vrot.lane.b32.xlu0 %v615, 96
      %v863 = vpop.permute.xlu0 %862
      %864 = vrot.lane.b32.xlu0 %v616, 96
      %v865 = vpop.permute.xlu0 %864
      %866 = vrot.lane.b32.xlu0 %v617, 96
      %v867 = vpop.permute.xlu0 %866
      %868 = vrot.lane.b32.xlu0 %v618, 96
      %v869 = vpop.permute.xlu0 %868
      %870 = vrot.lane.b32.xlu0 %v619, 96
      %v871 = vpop.permute.xlu0 %870
      %872 = vrot.lane.b32.xlu0 %v620, 96
      %v873 = vpop.permute.xlu0 %872
      %874 = vrot.lane.b32.xlu0 %v621, 96
      %v875 = vpop.permute.xlu0 %874
      %876 = vrot.lane.b32.xlu0 %v622, 96
      %v877 = vpop.permute.xlu0 %876
      %878 = vrot.lane.b32.xlu0 %v623, 96
      %v879 = vpop.permute.xlu0 %878
      %880 = vrot.lane.b32.xlu0 %v624, 96
      %v881 = vpop.permute.xlu0 %880
      %914 = vrot.lane.b32.xlu0 %v641, 32
      %v915 = vpop.permute.xlu0 %914
      %916 = vrot.lane.b32.xlu0 %v642, 32
      %v917 = vpop.permute.xlu0 %916
      %918 = vrot.lane.b32.xlu0 %v643, 32
      %v919 = vpop.permute.xlu0 %918
      %920 = vrot.lane.b32.xlu0 %v644, 32
      %v921 = vpop.permute.xlu0 %920
      %922 = vrot.lane.b32.xlu0 %v645, 32
      %v923 = vpop.permute.xlu0 %922
      %924 = vrot.lane.b32.xlu0 %v646, 32
      %v925 = vpop.permute.xlu0 %924
      %926 = vrot.lane.b32.xlu0 %v647, 32
      %v927 = vpop.permute.xlu0 %926
      %928 = vrot.lane.b32.xlu0 %v648, 32
      %v929 = vpop.permute.xlu0 %928
      %930 = vrot.lane.b32.xlu0 %v649, 32
      %v931 = vpop.permute.xlu0 %930
      %932 = vrot.lane.b32.xlu0 %v650, 32
      %v933 = vpop.permute.xlu0 %932
      %934 = vrot.lane.b32.xlu0 %v651, 32
      %v935 = vpop.permute.xlu0 %934
      %936 = vrot.lane.b32.xlu0 %v652, 32
      %v937 = vpop.permute.xlu0 %936
      %938 = vrot.lane.b32.xlu0 %v653, 32
      %v939 = vpop.permute.xlu0 %938
      %940 = vrot.lane.b32.xlu0 %v654, 32
      %v941 = vpop.permute.xlu0 %940
      %942 = vrot.lane.b32.xlu0 %v655, 32
      %v943 = vpop.permute.xlu0 %942
      %944 = vrot.lane.b32.xlu0 %v656, 32
      %v945 = vpop.permute.xlu0 %944
      %978 = vrot.lane.b32.xlu0 %v658, 64
      %v979 = vpop.permute.xlu0 %978
      %980 = vrot.lane.b32.xlu0 %v659, 64
      %v981 = vpop.permute.xlu0 %980
      %982 = vrot.lane.b32.xlu0 %v660, 64
      %v983 = vpop.permute.xlu0 %982
      %984 = vrot.lane.b32.xlu0 %v661, 64
      %v985 = vpop.permute.xlu0 %984
      %986 = vrot.lane.b32.xlu0 %v662, 64
      %v987 = vpop.permute.xlu0 %986
      %988 = vrot.lane.b32.xlu0 %v663, 64
      %v989 = vpop.permute.xlu0 %988
      %990 = vrot.lane.b32.xlu0 %v664, 64
      %v991 = vpop.permute.xlu0 %990
      %992 = vrot.lane.b32.xlu0 %v665, 64
      %v993 = vpop.permute.xlu0 %992
      %994 = vrot.lane.b32.xlu0 %v666, 64
      %v995 = vpop.permute.xlu0 %994
      %996 = vrot.lane.b32.xlu0 %v667, 64
      %v997 = vpop.permute.xlu0 %996
      %998 = vrot.lane.b32.xlu0 %v668, 64
      %v999 = vpop.permute.xlu0 %998
      %1000 = vrot.lane.b32.xlu0 %v669, 64
      %v1001 = vpop.permute.xlu0 %1000
      %1002 = vrot.lane.b32.xlu0 %v670, 64
      %v1003 = vpop.permute.xlu0 %1002
      %1004 = vrot.lane.b32.xlu0 %v671, 64
      %v1005 = vpop.permute.xlu0 %1004
      %1006 = vrot.lane.b32.xlu0 %v672, 64
      %v1007 = vpop.permute.xlu0 %1006
      %1008 = vrot.lane.b32.xlu0 %v673, 64
      %v1009 = vpop.permute.xlu0 %1008
      %1042 = vrot.lane.b32.xlu0 %v674, 96
      %v1043 = vpop.permute.xlu0 %1042
      %1044 = vrot.lane.b32.xlu0 %v675, 96
      %v1045 = vpop.permute.xlu0 %1044
      %1046 = vrot.lane.b32.xlu0 %v676, 96
      %v1047 = vpop.permute.xlu0 %1046
      %1048 = vrot.lane.b32.xlu0 %v677, 96
      %v1049 = vpop.permute.xlu0 %1048
      %1050 = vrot.lane.b32.xlu0 %v678, 96
      %v1051 = vpop.permute.xlu0 %1050
      %1052 = vrot.lane.b32.xlu0 %v679, 96
      %v1053 = vpop.permute.xlu0 %1052
      %1054 = vrot.lane.b32.xlu0 %v680, 96
      %v1055 = vpop.permute.xlu0 %1054
      %1056 = vrot.lane.b32.xlu0 %v681, 96
      %v1057 = vpop.permute.xlu0 %1056
      %1058 = vrot.lane.b32.xlu0 %v682, 96
      %v1059 = vpop.permute.xlu0 %1058
      %1060 = vrot.lane.b32.xlu0 %v683, 96
      %v1061 = vpop.permute.xlu0 %1060
      %1062 = vrot.lane.b32.xlu0 %v684, 96
      %v1063 = vpop.permute.xlu0 %1062
      %1064 = vrot.lane.b32.xlu0 %v685, 96
      %v1065 = vpop.permute.xlu0 %1064
      %1066 = vrot.lane.b32.xlu0 %v686, 96
      %v1067 = vpop.permute.xlu0 %1066
      %1068 = vrot.lane.b32.xlu0 %v687, 96
      %v1069 = vpop.permute.xlu0 %1068
      %1070 = vrot.lane.b32.xlu0 %v688, 96
      %v1071 = vpop.permute.xlu0 %1070
      %1072 = vrot.lane.b32.xlu0 %v689, 96
      %v1073 = vpop.permute.xlu0 %1072
      %v1090 = vsel %vm381, %v561, %v723
      %v1091 = vsel %vm381, %v562, %v725
      %v1092 = vsel %vm381, %v563, %v727
      %v1093 = vsel %vm381, %v564, %v729
      %v1094 = vsel %vm381, %v565, %v731
      %v1095 = vsel %vm381, %v566, %v733
      %v1096 = vsel %vm381, %v567, %v735
      %v1097 = vsel %vm381, %v568, %v737
      %v1098 = vsel %vm381, %v569, %v739
      %v1099 = vsel %vm381, %v570, %v741
      %v1100 = vsel %vm381, %v571, %v743
      %v1101 = vsel %vm381, %v572, %v745
      %v1102 = vsel %vm381, %v573, %v747
      %v1103 = vsel %vm381, %v574, %v749
      %v1104 = vsel %vm381, %v575, %v751
      %v1105 = vsel %vm381, %v576, %v753
      %vm1106 = vcmask 523264
      %v1107 = vsel %vm1106, %v1090, %v787
      %v1108 = vsel %vm1106, %v1091, %v789
      %v1109 = vsel %vm1106, %v1092, %v791
      %v1110 = vsel %vm1106, %v1093, %v793
      %v1111 = vsel %vm1106, %v1094, %v795
      %v1112 = vsel %vm1106, %v1095, %v797
      %v1113 = vsel %vm1106, %v1096, %v799
      %v1114 = vsel %vm1106, %v1097, %v801
      %v1115 = vsel %vm1106, %v1098, %v803
      %v1116 = vsel %vm1106, %v1099, %v805
      %v1117 = vsel %vm1106, %v1100, %v807
      %v1118 = vsel %vm1106, %v1101, %v809
      %v1119 = vsel %vm1106, %v1102, %v811
      %v1120 = vsel %vm1106, %v1103, %v813
      %v1121 = vsel %vm1106, %v1104, %v815
      %v1122 = vsel %vm1106, %v1105, %v817
      %vm1123 = vcmask 785408
      %v1124 = vsel %vm1123, %v1107, %v851
      %v1125 = vsel %vm1123, %v1108, %v853
      %v1126 = vsel %vm1123, %v1109, %v855
      %v1127 = vsel %vm1123, %v1110, %v857
      %v1128 = vsel %vm1123, %v1111, %v859
      %v1129 = vsel %vm1123, %v1112, %v861
      %v1130 = vsel %vm1123, %v1113, %v863
      %v1131 = vsel %vm1123, %v1114, %v865
      %v1132 = vsel %vm1123, %v1115, %v867
      %v1133 = vsel %vm1123, %v1116, %v869
      %v1134 = vsel %vm1123, %v1117, %v871
      %v1135 = vsel %vm1123, %v1118, %v873
      %v1136 = vsel %vm1123, %v1119, %v875
      %v1137 = vsel %vm1123, %v1120, %v877
      %v1138 = vsel %vm1123, %v1121, %v879
      %v1139 = vsel %vm1123, %v1122, %v881
      %v1140 = vsel %vm381, %v625, %v915
      %v1141 = vsel %vm381, %v626, %v917
      %v1142 = vsel %vm381, %v627, %v919
      %v1143 = vsel %vm381, %v628, %v921
      %v1144 = vsel %vm381, %v629, %v923
      %v1145 = vsel %vm381, %v630, %v925
      %v1146 = vsel %vm381, %v631, %v927
      %v1147 = vsel %vm381, %v632, %v929
      %v1148 = vsel %vm381, %v633, %v931
      %v1149 = vsel %vm381, %v634, %v933
      %v1150 = vsel %vm381, %v635, %v935
      %v1151 = vsel %vm381, %v636, %v937
      %v1152 = vsel %vm381, %v637, %v939
      %v1153 = vsel %vm381, %v638, %v941
      %v1154 = vsel %vm381, %v639, %v943
      %v1155 = vsel %vm381, %v640, %v945
      %v1156 = vsel %vm1106, %v1140, %v979
      %v1157 = vsel %vm1106, %v1141, %v981
      %v1158 = vsel %vm1106, %v1142, %v983
      %v1159 = vsel %vm1106, %v1143, %v985
      %v1160 = vsel %vm1106, %v1144, %v987
      %v1161 = vsel %vm1106, %v1145, %v989
      %v1162 = vsel %vm1106, %v1146, %v991
      %v1163 = vsel %vm1106, %v1147, %v993
      %v1164 = vsel %vm1106, %v1148, %v995
      %v1165 = vsel %vm1106, %v1149, %v997
      %v1166 = vsel %vm1106, %v1150, %v999
      %v1167 = vsel %vm1106, %v1151, %v1001
      %v1168 = vsel %vm1106, %v1152, %v1003
      %v1169 = vsel %vm1106, %v1153, %v1005
      %v1170 = vsel %vm1106, %v1154, %v1007
      %v1171 = vsel %vm1106, %v1155, %v1009
      %v1172 = vsel %vm1123, %v1156, %v1043
      %v1173 = vsel %vm1123, %v1157, %v1045
      %v1174 = vsel %vm1123, %v1158, %v1047
      %v1175 = vsel %vm1123, %v1159, %v1049
      %v1176 = vsel %vm1123, %v1160, %v1051
      %v1177 = vsel %vm1123, %v1161, %v1053
      %v1178 = vsel %vm1123, %v1162, %v1055
      %v1179 = vsel %vm1123, %v1163, %v1057
      %v1180 = vsel %vm1123, %v1164, %v1059
      %v1181 = vsel %vm1123, %v1165, %v1061
      %v1182 = vsel %vm1123, %v1166, %v1063
      %v1183 = vsel %vm1123, %v1167, %v1065
      %v1184 = vsel %vm1123, %v1168, %v1067
      %v1185 = vsel %vm1123, %v1169, %v1069
      %v1186 = vsel %vm1123, %v1170, %v1071
      %v1187 = vsel %vm1123, %v1171, %v1073
      %v1188 = vpack.c.bf16 %v1125, %v1124
      %v1189 = vpack.c.bf16 %v1173, %v1172
      %v1190 = vpack.c.bf16 %v691, %v690
      %v1191 = vpack.c.bf16 %v1127, %v1126
      %v1192 = vpack.c.bf16 %v1175, %v1174
      %v1193 = vpack.c.bf16 %v693, %v692
      %v1194 = vpack.c.bf16 %v1129, %v1128
      %v1195 = vpack.c.bf16 %v1177, %v1176
      %v1196 = vpack.c.bf16 %v695, %v694
      %v1197 = vpack.c.bf16 %v1131, %v1130
      %v1198 = vpack.c.bf16 %v1179, %v1178
      %v1199 = vpack.c.bf16 %v697, %v696
      %v1200 = vpack.c.bf16 %v1133, %v1132
      %v1201 = vpack.c.bf16 %v1181, %v1180
      %v1202 = vpack.c.bf16 %v699, %v698
      %v1203 = vpack.c.bf16 %v1135, %v1134
      %v1204 = vpack.c.bf16 %v1183, %v1182
      %v1205 = vpack.c.bf16 %v701, %v700
      %v1206 = vpack.c.bf16 %v1137, %v1136
      %v1207 = vpack.c.bf16 %v1185, %v1184
      %v1208 = vpack.c.bf16 %v703, %v702
      %v1209 = vpack.c.bf16 %v1139, %v1138
      %v1210 = vpack.c.bf16 %v1187, %v1186
      %v1211 = vpack.c.bf16 %v705, %v704
      %v1212 = vld [vmem:[%s3] sm:$0xf]
      %v1213 = vld [vmem:[%s3 + $0x4] sm:$0xf]
      %v1214 = vld [vmem:[%s3 + $0x8] sm:$0xf]
      %v1215 = vld [vmem:[%s3 + $0xc] sm:$0xf]
      %v1216 = vld [vmem:[%s3 + $0x10] sm:$0xf]
      %v1217 = vld [vmem:[%s3 + $0x14] sm:$0xf]
      %v1218 = vld [vmem:[%s3 + $0x18] sm:$0xf]
      %v1219 = vld [vmem:[%s3 + $0x1c] sm:$0xf]
      %v1220 = vld [vmem:[%s3 + $0x20] sm:$0xf]
      %v1221 = vld [vmem:[%s3 + $0x24] sm:$0xf]
      %v1222 = vld [vmem:[%s3 + $0x28] sm:$0xf]
      %v1223 = vld [vmem:[%s3 + $0x2c] sm:$0xf]
      %v1224 = vld [vmem:[%s3 + $0x30] sm:$0xf]
      %v1225 = vld [vmem:[%s3 + $0x34] sm:$0xf]
      %v1226 = vld [vmem:[%s3 + $0x38] sm:$0xf]
      %v1227 = vld [vmem:[%s3 + $0x3c] sm:$0xf]
      %v1228 = vld [vmem:[%s3 + $0x40] sm:$0xf]
      %v1229 = vld [vmem:[%s3 + $0x44] sm:$0xf]
      %v1230 = vld [vmem:[%s3 + $0x48] sm:$0xf]
      %v1231 = vld [vmem:[%s3 + $0x4c] sm:$0xf]
      %v1232 = vld [vmem:[%s3 + $0x50] sm:$0xf]
      %v1233 = vld [vmem:[%s3 + $0x54] sm:$0xf]
      %v1234 = vld [vmem:[%s3 + $0x58] sm:$0xf]
      %v1235 = vld [vmem:[%s3 + $0x5c] sm:$0xf]
      %v1236 = vld [vmem:[%s3 + $0x60] sm:$0xf]
      %v1237 = vld [vmem:[%s3 + $0x64] sm:$0xf]
      %v1238 = vld [vmem:[%s3 + $0x68] sm:$0xf]
      %v1239 = vld [vmem:[%s3 + $0x6c] sm:$0xf]
      %v1240 = vld [vmem:[%s3 + $0x70] sm:$0xf]
      %v1241 = vld [vmem:[%s3 + $0x74] sm:$0xf]
      %v1242 = vld [vmem:[%s3 + $0x78] sm:$0xf]
      %v1243 = vld [vmem:[%s3 + $0x7c] sm:$0xf]
      %v1244 = vld [vmem:[%s3 + $0x80] sm:$0xf]
      %v1245 = vld [vmem:[%s3 + $0x84] sm:$0xf]
      %v1246 = vld [vmem:[%s3 + $0x88] sm:$0xf]
      %v1247 = vld [vmem:[%s3 + $0x8c] sm:$0xf]
      %v1284 = vunpack.c.l.b16 %v1212
      %v1285 = vunpack.c.l.b16 %v1213
      %v1286 = vunpack.c.l.b16 %v1214
      %v1287 = vunpack.c.l.b16 %v1215
      %v1288 = vunpack.c.l.b16 %v1216
      %v1289 = vunpack.c.l.b16 %v1217
      %v1290 = vunpack.c.l.b16 %v1218
      %v1291 = vunpack.c.l.b16 %v1219
      %v1292 = vunpack.c.l.b16 %v1220
      %v1293 = vunpack.c.l.b16 %v1221
      %v1294 = vunpack.c.l.b16 %v1222
      %v1295 = vunpack.c.l.b16 %v1223
      %v1296 = vunpack.c.l.b16 %v1224
      %v1297 = vunpack.c.l.b16 %v1225
      %v1298 = vunpack.c.l.b16 %v1226
      %v1299 = vunpack.c.l.b16 %v1227
      %v1300 = vunpack.c.l.b16 %v1228
      %v1301 = vunpack.c.l.b16 %v1229
      %v1302 = vunpack.c.l.b16 %v1230
      %v1303 = vunpack.c.l.b16 %v1231
      %v1304 = vunpack.c.l.b16 %v1232
      %v1305 = vunpack.c.l.b16 %v1233
      %v1306 = vunpack.c.l.b16 %v1234
      %v1307 = vunpack.c.l.b16 %v1235
      %v1308 = vunpack.c.l.b16 %v1236
      %v1309 = vunpack.c.l.b16 %v1237
      %v1310 = vunpack.c.l.b16 %v1238
      %v1311 = vunpack.c.l.b16 %v1239
      %v1312 = vunpack.c.l.b16 %v1240
      %v1313 = vunpack.c.l.b16 %v1241
      %v1314 = vunpack.c.l.b16 %v1242
      %v1315 = vunpack.c.l.b16 %v1243
      %v1316 = vunpack.c.l.b16 %v1244
      %v1317 = vunpack.c.l.b16 %v1245
      %v1318 = vunpack.c.l.b16 %v1246
      %v1319 = vunpack.c.l.b16 %v1247
      %v1320 = vpack.c.b16 %v1285, %v1284
      %v1321 = vpack.c.b16 %v1287, %v1286
      %v1322 = vpack.c.b16 %v1289, %v1288
      %v1323 = vpack.c.b16 %v1291, %v1290
      %v1324 = vpack.c.b16 %v1293, %v1292
      %v1325 = vpack.c.b16 %v1295, %v1294
      %v1326 = vpack.c.b16 %v1297, %v1296
      %v1327 = vpack.c.b16 %v1299, %v1298
      %v1328 = vpack.c.b16 %v1301, %v1300
      %v1329 = vpack.c.b16 %v1303, %v1302
      %v1330 = vpack.c.b16 %v1305, %v1304
      %v1331 = vpack.c.b16 %v1307, %v1306
      %v1332 = vpack.c.b16 %v1309, %v1308
      %v1333 = vpack.c.b16 %v1311, %v1310
      %v1334 = vpack.c.b16 %v1313, %v1312
      %v1335 = vpack.c.b16 %v1315, %v1314
      %v1336 = vpack.c.b16 %v1317, %v1316
      %v1337 = vpack.c.b16 %v1319, %v1318
      %v1357 = vsel %vm381, %v1190, 0
      %v1360 = vsel %vm381, %v1193, 0
      %v1363 = vsel %vm381, %v1196, 0
      %v1366 = vsel %vm381, %v1199, 0
      %v1369 = vsel %vm381, %v1202, 0
      %v1372 = vsel %vm381, %v1205, 0
      %v1375 = vsel %vm381, %v1208, 0
      %v1378 = vsel %vm381, %v1211, 0
      %1380 = vmatprep.subr.bf16.mxu0 0
      %1381 = vmatpush1.bf16.msra.mxu0 %v1320
      %1382 = vmatprep.subr.bf16.mxu0 0
      %1383 = vmatpush1.bf16.msra.mxu0 %v1321
      %1384 = vmatprep.subr.bf16.mxu0 0
      %1385 = vmatpush1.bf16.msra.mxu0 %v1322
      %1386 = vmatprep.subr.bf16.mxu0 0
      %1387 = vmatpush1.bf16.msra.mxu0 %v1323
      %1388 = vmatprep.subr.bf16.mxu0 0
      %1389 = vmatpush1.bf16.msra.mxu0 %v1324
      %1390 = vmatprep.subr.bf16.mxu0 0
      %1391 = vmatpush1.bf16.msra.mxu0 %v1325
      %1392 = vmatprep.subr.bf16.mxu0 0
      %1393 = vmatpush1.bf16.msra.mxu0 %v1326
      %1394 = vmatprep.subr.bf16.mxu0 0
      %1395 = vmatpush1.bf16.msra.mxu0 %v1327
      %1396 = vmatprep.subr.bf16.mxu0 0
      %1397 = vmatpush1.bf16.msra.mxu0 %v1328
      %1398 = vmatprep.subr.bf16.mxu0 0
      %1399 = vmatpush1.bf16.msra.mxu0 %v1329
      %1400 = vmatprep.subr.bf16.mxu0 0
      %1401 = vmatpush1.bf16.msra.mxu0 %v1330
      %1402 = vmatprep.subr.bf16.mxu0 0
      %1403 = vmatpush1.bf16.msra.mxu0 %v1331
      %1404 = vmatprep.subr.bf16.mxu0 0
      %1405 = vmatpush1.bf16.msra.mxu0 %v1332
      %1406 = vmatprep.subr.bf16.mxu0 0
      %1407 = vmatpush1.bf16.msra.mxu0 %v1333
      %1408 = vmatprep.subr.bf16.mxu0 0
      %1409 = vmatpush1.bf16.msra.mxu0 %v1334
      %1410 = vmatprep.subr.bf16.mxu0 0
      %1411 = vmatpush1.bf16.msra.mxu0 %v1335
      %1412 = vmatprep.mubr.bf16.mxu0 %v1189
      %1413 = vmatmul.mubr.bf16.gmra.mrb[0].mxu0 %v1188
      %v1414 = vpop.f32.mrb[0].mxu0
      %v1415 = vadd.f32 0.0, %v1414
      %v1416 = vpop.f32.mrb[0].mxu0
      %v1417 = vpop.f32.mrb[0].mxu0
      %v1418 = vadd.f32 0.0, %v1417
      %v1419 = vpop.f32.mrb[0].mxu0
      %1420 = vmatprep.mubr.bf16.mxu0 %v1192
      %1421 = vmatmul.mubr.bf16.gmra.mrb[0].mxu0 %v1191
      %v1422 = vpop.f32.mrb[0].mxu0
      %v1423 = vadd.f32 0.0, %v1422
      %v1424 = vpop.f32.mrb[0].mxu0
      %v1425 = vpop.f32.mrb[0].mxu0
      %v1426 = vadd.f32 0.0, %v1425
      %v1427 = vpop.f32.mrb[0].mxu0
      %1428 = vmatprep.mubr.bf16.mxu0 %v1195
      %1429 = vmatmul.mubr.bf16.gmra.mrb[0].mxu0 %v1194
      %v1430 = vpop.f32.mrb[0].mxu0
      %v1431 = vadd.f32 0.0, %v1430
      %v1432 = vpop.f32.mrb[0].mxu0
      %v1433 = vpop.f32.mrb[0].mxu0
      %v1434 = vadd.f32 0.0, %v1433
      %v1435 = vpop.f32.mrb[0].mxu0
      %1436 = vmatprep.mubr.bf16.mxu0 %v1198
      %1437 = vmatmul.mubr.bf16.gmra.mrb[0].mxu0 %v1197
      %v1438 = vpop.f32.mrb[0].mxu0
      %v1439 = vadd.f32 0.0, %v1438
      %v1440 = vpop.f32.mrb[0].mxu0
      %v1441 = vpop.f32.mrb[0].mxu0
      %v1442 = vadd.f32 0.0, %v1441
      %v1443 = vpop.f32.mrb[0].mxu0
      %1444 = vmatprep.mubr.bf16.mxu0 %v1201
      %1445 = vmatmul.mubr.bf16.gmra.mrb[0].mxu0 %v1200
      %v1446 = vpop.f32.mrb[0].mxu0
      %v1447 = vadd.f32 0.0, %v1446
      %v1448 = vpop.f32.mrb[0].mxu0
      %v1449 = vpop.f32.mrb[0].mxu0
      %v1450 = vadd.f32 0.0, %v1449
      %v1451 = vpop.f32.mrb[0].mxu0
      %1452 = vmatprep.mubr.bf16.mxu0 %v1204
      %1453 = vmatmul.mubr.bf16.gmra.mrb[0].mxu0 %v1203
      %v1454 = vpop.f32.mrb[0].mxu0
      %v1455 = vadd.f32 0.0, %v1454
      %v1456 = vpop.f32.mrb[0].mxu0
      %v1457 = vpop.f32.mrb[0].mxu0
      %v1458 = vadd.f32 0.0, %v1457
      %v1459 = vpop.f32.mrb[0].mxu0
      %1460 = vmatprep.mubr.bf16.mxu0 %v1207
      %1461 = vmatmul.mubr.bf16.gmra.mrb[0].mxu0 %v1206
      %v1462 = vpop.f32.mrb[0].mxu0
      %v1463 = vadd.f32 0.0, %v1462
      %v1464 = vpop.f32.mrb[0].mxu0
      %v1465 = vpop.f32.mrb[0].mxu0
      %v1466 = vadd.f32 0.0, %v1465
      %v1467 = vpop.f32.mrb[0].mxu0
      %1468 = vmatprep.mubr.bf16.mxu0 %v1210
      %1469 = vmatmul.mubr.bf16.gmra.mrb[0].mxu0 %v1209
      %v1470 = vpop.f32.mrb[0].mxu0
      %v1471 = vadd.f32 0.0, %v1470
      %v1472 = vpop.f32.mrb[0].mxu0
      %v1473 = vpop.f32.mrb[0].mxu0
      %v1474 = vadd.f32 0.0, %v1473
      %v1475 = vpop.f32.mrb[0].mxu0
      %1476 = vdwg.mxu0
      %1477 = vmatprep.subr.bf16.mxu0 0
      %1478 = vmatpush1.bf16.msra.mxu0 %v1336
      %1479 = vmatprep.subr.bf16.mxu0 0
      %1480 = vmatpush1.bf16.msra.mxu0 %v1337
      %1481 = vmatprep.subr.bf16.mxu0 0
      %1482 = vmatpush1.bf16.msra.mxu0 0
      %1483 = vmatprep.subr.bf16.mxu0 0
      %1484 = vmatpush1.bf16.msra.mxu0 0
      %1485 = vmatprep.subr.bf16.mxu0 0
      %1486 = vmatpush1.bf16.msra.mxu0 0
      %1487 = vmatprep.subr.bf16.mxu0 0
      %1488 = vmatpush1.bf16.msra.mxu0 0
      %1489 = vmatprep.subr.bf16.mxu0 0
      %1490 = vmatpush1.bf16.msra.mxu0 0
      %1491 = vmatprep.subr.bf16.mxu0 0
      %1492 = vmatpush1.bf16.msra.mxu0 0
      %1493 = vmatprep.subr.bf16.mxu0 0
      %1494 = vmatpush1.bf16.msra.mxu0 0
      %1495 = vmatprep.subr.bf16.mxu0 0
      %1496 = vmatpush1.bf16.msra.mxu0 0
      %1497 = vmatprep.subr.bf16.mxu0 0
      %1498 = vmatpush1.bf16.msra.mxu0 0
      %1499 = vmatprep.subr.bf16.mxu0 0
      %1500 = vmatpush1.bf16.msra.mxu0 0
      %1501 = vmatprep.subr.bf16.mxu0 0
      %1502 = vmatpush1.bf16.msra.mxu0 0
      %1503 = vmatprep.subr.bf16.mxu0 0
      %1504 = vmatpush1.bf16.msra.mxu0 0
      %1505 = vmatprep.subr.bf16.mxu0 0
      %1506 = vmatpush1.bf16.msra.mxu0 0
      %1507 = vmatprep.subr.bf16.mxu0 0
      %1508 = vmatpush1.bf16.msra.mxu0 0
      %1509 = vmatprep.mubr.bf16.mxu0 0
      %1510 = vmatmul.mubr.bf16.gmra.mrb[0].mxu0 %v1357
      %v1511 = vpop.f32.mrb[0].mxu0
      %v1512 = vadd.f32 %v1415, %v1511
      %v1513 = vpop.f32.mrb[0].mxu0
      %v1514 = vpop.f32.mrb[0].mxu0
      %v1515 = vadd.f32 %v1418, %v1514
      %v1516 = vpop.f32.mrb[0].mxu0
      %1517 = vmatprep.mubr.bf16.mxu0 0
      %1518 = vmatmul.mubr.bf16.gmra.mrb[0].mxu0 %v1360
      %v1519 = vpop.f32.mrb[0].mxu0
      %v1520 = vadd.f32 %v1423, %v1519
      %v1521 = vpop.f32.mrb[0].mxu0
      %v1522 = vpop.f32.mrb[0].mxu0
      %v1523 = vadd.f32 %v1426, %v1522
      %v1524 = vpop.f32.mrb[0].mxu0
      %1525 = vmatprep.mubr.bf16.mxu0 0
      %1526 = vmatmul.mubr.bf16.gmra.mrb[0].mxu0 %v1363
      %v1527 = vpop.f32.mrb[0].mxu0
      %v1528 = vadd.f32 %v1431, %v1527
      %v1529 = vpop.f32.mrb[0].mxu0
      %v1530 = vpop.f32.mrb[0].mxu0
      %v1531 = vadd.f32 %v1434, %v1530
      %v1532 = vpop.f32.mrb[0].mxu0
      %1533 = vmatprep.mubr.bf16.mxu0 0
      %1534 = vmatmul.mubr.bf16.gmra.mrb[0].mxu0 %v1366
      %v1535 = vpop.f32.mrb[0].mxu0
      %v1536 = vadd.f32 %v1439, %v1535
      %v1537 = vpop.f32.mrb[0].mxu0
      %v1538 = vpop.f32.mrb[0].mxu0
      %v1539 = vadd.f32 %v1442, %v1538
      %v1540 = vpop.f32.mrb[0].mxu0
      %1541 = vmatprep.mubr.bf16.mxu0 0
      %1542 = vmatmul.mubr.bf16.gmra.mrb[0].mxu0 %v1369
      %v1543 = vpop.f32.mrb[0].mxu0
      %v1544 = vadd.f32 %v1447, %v1543
      %v1545 = vpop.f32.mrb[0].mxu0
      %v1546 = vpop.f32.mrb[0].mxu0
      %v1547 = vadd.f32 %v1450, %v1546
      %v1548 = vpop.f32.mrb[0].mxu0
      %1549 = vmatprep.mubr.bf16.mxu0 0
      %1550 = vmatmul.mubr.bf16.gmra.mrb[0].mxu0 %v1372
      %v1551 = vpop.f32.mrb[0].mxu0
      %v1552 = vadd.f32 %v1455, %v1551
      %v1553 = vpop.f32.mrb[0].mxu0
      %v1554 = vpop.f32.mrb[0].mxu0
      %v1555 = vadd.f32 %v1458, %v1554
      %v1556 = vpop.f32.mrb[0].mxu0
      %1557 = vmatprep.mubr.bf16.mxu0 0
      %1558 = vmatmul.mubr.bf16.gmra.mrb[0].mxu0 %v1375
      %v1559 = vpop.f32.mrb[0].mxu0
      %v1560 = vadd.f32 %v1463, %v1559
      %v1561 = vpop.f32.mrb[0].mxu0
      %v1562 = vpop.f32.mrb[0].mxu0
      %v1563 = vadd.f32 %v1466, %v1562
      %v1564 = vpop.f32.mrb[0].mxu0
      %1565 = vmatprep.mubr.bf16.mxu0 0
      %1566 = vmatmul.mubr.bf16.gmra.mrb[0].mxu0 %v1378
      %v1567 = vpop.f32.mrb[0].mxu0
      %v1568 = vadd.f32 %v1471, %v1567
      %v1569 = vpop.f32.mrb[0].mxu0
      %v1570 = vpop.f32.mrb[0].mxu0
      %v1571 = vadd.f32 %v1474, %v1570
      %v1572 = vpop.f32.mrb[0].mxu0
      %1573 = vdwg.mxu0
      %v1574 = vsel %vm381, %v1512, 0.0
      %v1575 = vsel %vm381, %v1515, 0.0
      %v1576 = vadd.f32 %v1574, %v1575
      %v1577 = vsel %vm381, %v1520, 0.0
      %v1578 = vadd.f32 %v1576, %v1577
      %v1579 = vsel %vm381, %v1523, 0.0
      %v1580 = vadd.f32 %v1578, %v1579
      %v1581 = vsel %vm381, %v1528, 0.0
      %v1582 = vadd.f32 %v1580, %v1581
      %v1583 = vsel %vm381, %v1531, 0.0
      %v1584 = vadd.f32 %v1582, %v1583
      %v1585 = vsel %vm381, %v1536, 0.0
      %v1586 = vadd.f32 %v1584, %v1585
      %v1587 = vsel %vm381, %v1539, 0.0
      %v1588 = vadd.f32 %v1586, %v1587
      %v1589 = vsel %vm381, %v1544, 0.0
      %v1590 = vadd.f32 %v1588, %v1589
      %v1591 = vsel %vm381, %v1547, 0.0
      %v1592 = vadd.f32 %v1590, %v1591
      %v1593 = vsel %vm381, %v1552, 0.0
      %v1594 = vadd.f32 %v1592, %v1593
      %v1595 = vsel %vm381, %v1555, 0.0
      %v1596 = vadd.f32 %v1594, %v1595
      %v1597 = vsel %vm381, %v1560, 0.0
      %v1598 = vadd.f32 %v1596, %v1597
      %v1599 = vsel %vm381, %v1563, 0.0
      %v1600 = vadd.f32 %v1598, %v1599
      %v1601 = vsel %vm381, %v1568, 0.0
      %v1602 = vadd.f32 %v1600, %v1601
      %v1603 = vsel %vm381, %v1571, 0.0
      %v1604 = vadd.f32 %v1602, %v1603
      %v1605 = vrot.slane %v1604, 4
      %v1606 = vadd.f32 %v1604, %v1605
      %v1607 = vrot.slane %v1606, 2
      %v1608 = vadd.f32 %v1606, %v1607
      %v1609 = vrot.slane %v1608, 1
      %v1610 = vadd.f32 %v1608, %v1609
      %v1611 = vmul.f32 %v1610, 0.0078125
      %v1612 = vsub.f32 %v1512, %v1611
      %v1613 = vsub.f32 %v1515, %v1611
      %v1614 = vsub.f32 %v1520, %v1611
      %v1615 = vsub.f32 %v1523, %v1611
      %v1616 = vsub.f32 %v1528, %v1611
      %v1617 = vsub.f32 %v1531, %v1611
      %v1618 = vsub.f32 %v1536, %v1611
      %v1619 = vsub.f32 %v1539, %v1611
      %v1620 = vsub.f32 %v1544, %v1611
      %v1621 = vsub.f32 %v1547, %v1611
      %v1622 = vsub.f32 %v1552, %v1611
      %v1623 = vsub.f32 %v1555, %v1611
      %v1624 = vsub.f32 %v1560, %v1611
      %v1625 = vsub.f32 %v1563, %v1611
      %v1626 = vsub.f32 %v1568, %v1611
      %v1627 = vsub.f32 %v1571, %v1611
      %v1628 = vmul.f32 %v1612, %v1612
      %v1629 = vmul.f32 %v1613, %v1613
      %v1630 = vmul.f32 %v1614, %v1614
      %v1631 = vmul.f32 %v1615, %v1615
      %v1632 = vmul.f32 %v1616, %v1616
      %v1633 = vmul.f32 %v1617, %v1617
      %v1634 = vmul.f32 %v1618, %v1618
      %v1635 = vmul.f32 %v1619, %v1619
      %v1636 = vmul.f32 %v1620, %v1620
      %v1637 = vmul.f32 %v1621, %v1621
      %v1638 = vmul.f32 %v1622, %v1622
      %v1639 = vmul.f32 %v1623, %v1623
      %v1640 = vmul.f32 %v1624, %v1624
      %v1641 = vmul.f32 %v1625, %v1625
      %v1642 = vmul.f32 %v1626, %v1626
      %v1643 = vmul.f32 %v1627, %v1627
      %v1644 = vsel %vm381, %v1628, 0.0
      %v1645 = vsel %vm381, %v1629, 0.0
      %v1646 = vadd.f32 %v1644, %v1645
      %v1647 = vsel %vm381, %v1630, 0.0
      %v1648 = vadd.f32 %v1646, %v1647
      %v1649 = vsel %vm381, %v1631, 0.0
      %v1650 = vadd.f32 %v1648, %v1649
      %v1651 = vsel %vm381, %v1632, 0.0
      %v1652 = vadd.f32 %v1650, %v1651
      %v1653 = vsel %vm381, %v1633, 0.0
      %v1654 = vadd.f32 %v1652, %v1653
      %v1655 = vsel %vm381, %v1634, 0.0
      %v1656 = vadd.f32 %v1654, %v1655
      %v1657 = vsel %vm381, %v1635, 0.0
      %v1658 = vadd.f32 %v1656, %v1657
      %v1659 = vsel %vm381, %v1636, 0.0
      %v1660 = vadd.f32 %v1658, %v1659
      %v1661 = vsel %vm381, %v1637, 0.0
      %v1662 = vadd.f32 %v1660, %v1661
      %v1663 = vsel %vm381, %v1638, 0.0
      %v1664 = vadd.f32 %v1662, %v1663
      %v1665 = vsel %vm381, %v1639, 0.0
      %v1666 = vadd.f32 %v1664, %v1665
      %v1667 = vsel %vm381, %v1640, 0.0
      %v1668 = vadd.f32 %v1666, %v1667
      %v1669 = vsel %vm381, %v1641, 0.0
      %v1670 = vadd.f32 %v1668, %v1669
      %v1671 = vsel %vm381, %v1642, 0.0
      %v1672 = vadd.f32 %v1670, %v1671
      %v1673 = vsel %vm381, %v1643, 0.0
      %v1674 = vadd.f32 %v1672, %v1673
      %v1675 = vrot.slane %v1674, 4
      %v1676 = vadd.f32 %v1674, %v1675
      %v1677 = vrot.slane %v1676, 2
      %v1678 = vadd.f32 %v1676, %v1677
      %v1679 = vrot.slane %v1678, 1
      %v1680 = vadd.f32 %v1678, %v1679
      %v1681 = vmul.f32 %v1680, 0.0078125
      %v1682 = vadd.f32 %v1681, 1e-05
      %v1683 = vrsqrt.pop %v1682
      %v1684 = vmul.f32 %v1612, %v1683
      %v1685 = vmul.f32 %v1613, %v1683
      %v1686 = vmul.f32 %v1614, %v1683
      %v1687 = vmul.f32 %v1615, %v1683
      %v1688 = vmul.f32 %v1616, %v1683
      %v1689 = vmul.f32 %v1617, %v1683
      %v1690 = vmul.f32 %v1618, %v1683
      %v1691 = vmul.f32 %v1619, %v1683
      %v1692 = vmul.f32 %v1620, %v1683
      %v1693 = vmul.f32 %v1621, %v1683
      %v1694 = vmul.f32 %v1622, %v1683
      %v1695 = vmul.f32 %v1623, %v1683
      %v1696 = vmul.f32 %v1624, %v1683
      %v1697 = vmul.f32 %v1625, %v1683
      %v1698 = vmul.f32 %v1626, %v1683
      %v1699 = vmul.f32 %v1627, %v1683
      %v1700 = vmax.f32 %v1684, 0.0
      %v1701 = vmax.f32 %v1685, 0.0
      %v1702 = vmax.f32 %v1686, 0.0
      %v1703 = vmax.f32 %v1687, 0.0
      %v1704 = vmax.f32 %v1688, 0.0
      %v1705 = vmax.f32 %v1689, 0.0
      %v1706 = vmax.f32 %v1690, 0.0
      %v1707 = vmax.f32 %v1691, 0.0
      %v1708 = vmax.f32 %v1692, 0.0
      %v1709 = vmax.f32 %v1693, 0.0
      %v1710 = vmax.f32 %v1694, 0.0
      %v1711 = vmax.f32 %v1695, 0.0
      %v1712 = vmax.f32 %v1696, 0.0
      %v1713 = vmax.f32 %v1697, 0.0
      %v1714 = vmax.f32 %v1698, 0.0
      %v1715 = vmax.f32 %v1699, 0.0
      %1716 = vst.msk [vmem:[%s544 + $0x1] sm:$0xff] %vm381, %v1700
      %1717 = vst.msk [vmem:[%s544 + $0x11] sm:$0xff] %vm381, %v1701
      %1718 = vst.msk [vmem:[%s544 + $0x21] sm:$0xff] %vm381, %v1702
      %1719 = vst.msk [vmem:[%s544 + $0x31] sm:$0xff] %vm381, %v1703
      %1720 = vst.msk [vmem:[%s544 + $0x41] sm:$0xff] %vm381, %v1704
      %1721 = vst.msk [vmem:[%s544 + $0x51] sm:$0xff] %vm381, %v1705
      %1722 = vst.msk [vmem:[%s544 + $0x61] sm:$0xff] %vm381, %v1706
      %1723 = vst.msk [vmem:[%s544 + $0x71] sm:$0xff] %vm381, %v1707
      %1724 = vst.msk [vmem:[%s544 + $0xa1] sm:$0xff] %vm381, %v1708
      %1725 = vst.msk [vmem:[%s544 + $0xb1] sm:$0xff] %vm381, %v1709
      %1726 = vst.msk [vmem:[%s544 + $0xc1] sm:$0xff] %vm381, %v1710
      %1727 = vst.msk [vmem:[%s544 + $0xd1] sm:$0xff] %vm381, %v1711
      %1728 = vst.msk [vmem:[%s544 + $0xe1] sm:$0xff] %vm381, %v1712
      %1729 = vst.msk [vmem:[%s544 + $0xf1] sm:$0xff] %vm381, %v1713
      %1730 = vst.msk [vmem:[%s544 + $0x101] sm:$0xff] %vm381, %v1714
      %1731 = vst.msk [vmem:[%s544 + $0x111] sm:$0xff] %vm381, %v1715
      %v1732 = vld [vmem:[#allocation2] sm:$0xff]
      %v1733 = vld [vmem:[#allocation2 + $0x10] sm:$0xff]
      %v1734 = vld [vmem:[#allocation2 + $0x20] sm:$0xff]
      %v1735 = vld [vmem:[#allocation2 + $0x30] sm:$0xff]
      %v1736 = vld [vmem:[#allocation2 + $0x40] sm:$0xff]
      %v1737 = vld [vmem:[#allocation2 + $0x50] sm:$0xff]
      %v1738 = vld [vmem:[#allocation2 + $0x60] sm:$0xff]
      %v1739 = vld [vmem:[#allocation2 + $0x70] sm:$0xff]
      %v1740 = vld [vmem:[#allocation2 + $0xa0] sm:$0xff]
      %v1741 = vld [vmem:[#allocation2 + $0xb0] sm:$0xff]
      %v1742 = vld [vmem:[#allocation2 + $0xc0] sm:$0xff]
      %v1743 = vld [vmem:[#allocation2 + $0xd0] sm:$0xff]
      %v1744 = vld [vmem:[#allocation2 + $0xe0] sm:$0xff]
      %v1745 = vld [vmem:[#allocation2 + $0xf0] sm:$0xff]
      %v1746 = vld [vmem:[#allocation2 + $0x100] sm:$0xff]
      %v1747 = vld [vmem:[#allocation2 + $0x110] sm:$0xff]
      %v1748 = vld [vmem:[#allocation2 + $0x1] sm:$0xff]
      %v1749 = vld [vmem:[#allocation2 + $0x11] sm:$0xff]
      %v1750 = vld [vmem:[#allocation2 + $0x21] sm:$0xff]
      %v1751 = vld [vmem:[#allocation2 + $0x31] sm:$0xff]
      %v1752 = vld [vmem:[#allocation2 + $0x41] sm:$0xff]
      %v1753 = vld [vmem:[#allocation2 + $0x51] sm:$0xff]
      %v1754 = vld [vmem:[#allocation2 + $0x61] sm:$0xff]
      %v1755 = vld [vmem:[#allocation2 + $0x71] sm:$0xff]
      %v1756 = vld [vmem:[#allocation2 + $0xa1] sm:$0xff]
      %v1757 = vld [vmem:[#allocation2 + $0xb1] sm:$0xff]
      %v1758 = vld [vmem:[#allocation2 + $0xc1] sm:$0xff]
      %v1759 = vld [vmem:[#allocation2 + $0xd1] sm:$0xff]
      %v1760 = vld [vmem:[#allocation2 + $0xe1] sm:$0xff]
      %v1761 = vld [vmem:[#allocation2 + $0xf1] sm:$0xff]
      %v1762 = vld [vmem:[#allocation2 + $0x101] sm:$0xff]
      %v1763 = vld [vmem:[#allocation2 + $0x111] sm:$0xff]
      %v1764 = vld [vmem:[#allocation2 + $0x2] sm:$0xff]
      %v1765 = vld [vmem:[#allocation2 + $0x12] sm:$0xff]
      %v1766 = vld [vmem:[#allocation2 + $0x22] sm:$0xff]
      %v1767 = vld [vmem:[#allocation2 + $0x32] sm:$0xff]
      %v1768 = vld [vmem:[#allocation2 + $0x42] sm:$0xff]
      %v1769 = vld [vmem:[#allocation2 + $0x52] sm:$0xff]
      %v1770 = vld [vmem:[#allocation2 + $0x62] sm:$0xff]
      %v1771 = vld [vmem:[#allocation2 + $0x72] sm:$0xff]
      %v1772 = vld [vmem:[#allocation2 + $0xa2] sm:$0xff]
      %v1773 = vld [vmem:[#allocation2 + $0xb2] sm:$0xff]
      %v1774 = vld [vmem:[#allocation2 + $0xc2] sm:$0xff]
      %v1775 = vld [vmem:[#allocation2 + $0xd2] sm:$0xff]
      %v1776 = vld [vmem:[#allocation2 + $0xe2] sm:$0xff]
      %v1777 = vld [vmem:[#allocation2 + $0xf2] sm:$0xff]
      %v1778 = vld [vmem:[#allocation2 + $0x102] sm:$0xff]
      %v1779 = vld [vmem:[#allocation2 + $0x112] sm:$0xff]
      %v1780 = vld [vmem:[%s544] sm:$0xff]
      %v1781 = vld [vmem:[%s544 + $0x10] sm:$0xff]
      %v1782 = vld [vmem:[%s544 + $0x20] sm:$0xff]
      %v1783 = vld [vmem:[%s544 + $0x30] sm:$0xff]
      %v1784 = vld [vmem:[%s544 + $0x40] sm:$0xff]
      %v1785 = vld [vmem:[%s544 + $0x50] sm:$0xff]
      %v1786 = vld [vmem:[%s544 + $0x60] sm:$0xff]
      %v1787 = vld [vmem:[%s544 + $0x70] sm:$0xff]
      %v1788 = vld [vmem:[%s544 + $0xa0] sm:$0xff]
      %v1789 = vld [vmem:[%s544 + $0xb0] sm:$0xff]
      %v1790 = vld [vmem:[%s544 + $0xc0] sm:$0xff]
      %v1791 = vld [vmem:[%s544 + $0xd0] sm:$0xff]
      %v1792 = vld [vmem:[%s544 + $0xe0] sm:$0xff]
      %v1793 = vld [vmem:[%s544 + $0xf0] sm:$0xff]
      %v1794 = vld [vmem:[%s544 + $0x100] sm:$0xff]
      %v1795 = vld [vmem:[%s544 + $0x110] sm:$0xff]
      %v1796 = vld [vmem:[%s544 + $0x1] sm:$0xff]
      %v1797 = vld [vmem:[%s544 + $0x11] sm:$0xff]
      %v1798 = vld [vmem:[%s544 + $0x21] sm:$0xff]
      %v1799 = vld [vmem:[%s544 + $0x31] sm:$0xff]
      %v1800 = vld [vmem:[%s544 + $0x41] sm:$0xff]
      %v1801 = vld [vmem:[%s544 + $0x51] sm:$0xff]
      %v1802 = vld [vmem:[%s544 + $0x61] sm:$0xff]
      %v1803 = vld [vmem:[%s544 + $0x71] sm:$0xff]
      %v1804 = vld [vmem:[%s544 + $0xa1] sm:$0xff]
      %v1805 = vld [vmem:[%s544 + $0xb1] sm:$0xff]
      %v1806 = vld [vmem:[%s544 + $0xc1] sm:$0xff]
      %v1807 = vld [vmem:[%s544 + $0xd1] sm:$0xff]
      %v1808 = vld [vmem:[%s544 + $0xe1] sm:$0xff]
      %v1809 = vld [vmem:[%s544 + $0xf1] sm:$0xff]
      %v1810 = vld [vmem:[%s544 + $0x101] sm:$0xff]
      %v1811 = vld [vmem:[%s544 + $0x111] sm:$0xff]
      %v1812 = vld [vmem:[%s544 + $0x2] sm:$0xff]
      %v1813 = vld [vmem:[%s544 + $0x12] sm:$0xff]
      %v1814 = vld [vmem:[%s544 + $0x22] sm:$0xff]
      %v1815 = vld [vmem:[%s544 + $0x32] sm:$0xff]
      %v1816 = vld [vmem:[%s544 + $0x42] sm:$0xff]
      %v1817 = vld [vmem:[%s544 + $0x52] sm:$0xff]
      %v1818 = vld [vmem:[%s544 + $0x62] sm:$0xff]
      %v1819 = vld [vmem:[%s544 + $0x72] sm:$0xff]
      %v1820 = vld [vmem:[%s544 + $0xa2] sm:$0xff]
      %v1821 = vld [vmem:[%s544 + $0xb2] sm:$0xff]
      %v1822 = vld [vmem:[%s544 + $0xc2] sm:$0xff]
      %v1823 = vld [vmem:[%s544 + $0xd2] sm:$0xff]
      %v1824 = vld [vmem:[%s544 + $0xe2] sm:$0xff]
      %v1825 = vld [vmem:[%s544 + $0xf2] sm:$0xff]
      %v1826 = vld [vmem:[%s544 + $0x102] sm:$0xff]
      %v1827 = vld [vmem:[%s544 + $0x112] sm:$0xff]
      %v1828 = vld [vmem:[%s657] sm:$0xff]
      %v1829 = vld [vmem:[%s657 + $0x10] sm:$0xff]
      %v1830 = vld [vmem:[%s657 + $0x20] sm:$0xff]
      %v1831 = vld [vmem:[%s657 + $0x30] sm:$0xff]
      %v1832 = vld [vmem:[%s657 + $0x40] sm:$0xff]
      %v1833 = vld [vmem:[%s657 + $0x50] sm:$0xff]
      %v1834 = vld [vmem:[%s657 + $0x60] sm:$0xff]
      %v1835 = vld [vmem:[%s657 + $0x70] sm:$0xff]
      %v1836 = vld [vmem:[%s657 + $0xa0] sm:$0xff]
      %v1837 = vld [vmem:[%s657 + $0xb0] sm:$0xff]
      %v1838 = vld [vmem:[%s657 + $0xc0] sm:$0xff]
      %v1839 = vld [vmem:[%s657 + $0xd0] sm:$0xff]
      %v1840 = vld [vmem:[%s657 + $0xe0] sm:$0xff]
      %v1841 = vld [vmem:[%s657 + $0xf0] sm:$0xff]
      %v1842 = vld [vmem:[%s657 + $0x100] sm:$0xff]
      %v1843 = vld [vmem:[%s657 + $0x110] sm:$0xff]
      %v1844 = vld [vmem:[%s657 + $0x1] sm:$0xff]
      %v1845 = vld [vmem:[%s657 + $0x11] sm:$0xff]
      %v1846 = vld [vmem:[%s657 + $0x21] sm:$0xff]
      %v1847 = vld [vmem:[%s657 + $0x31] sm:$0xff]
      %v1848 = vld [vmem:[%s657 + $0x41] sm:$0xff]
      %v1849 = vld [vmem:[%s657 + $0x51] sm:$0xff]
      %v1850 = vld [vmem:[%s657 + $0x61] sm:$0xff]
      %v1851 = vld [vmem:[%s657 + $0x71] sm:$0xff]
      %v1852 = vld [vmem:[%s657 + $0xa1] sm:$0xff]
      %v1853 = vld [vmem:[%s657 + $0xb1] sm:$0xff]
      %v1854 = vld [vmem:[%s657 + $0xc1] sm:$0xff]
      %v1855 = vld [vmem:[%s657 + $0xd1] sm:$0xff]
      %v1856 = vld [vmem:[%s657 + $0xe1] sm:$0xff]
      %v1857 = vld [vmem:[%s657 + $0xf1] sm:$0xff]
      %v1858 = vld [vmem:[%s657 + $0x101] sm:$0xff]
      %v1859 = vld [vmem:[%s657 + $0x111] sm:$0xff]
      %v1860 = vld [vmem:[%s657 + $0x2] sm:$0xff]
      %v1861 = vld [vmem:[%s657 + $0x12] sm:$0xff]
      %v1862 = vld [vmem:[%s657 + $0x22] sm:$0xff]
      %v1863 = vld [vmem:[%s657 + $0x32] sm:$0xff]
      %v1864 = vld [vmem:[%s657 + $0x42] sm:$0xff]
      %v1865 = vld [vmem:[%s657 + $0x52] sm:$0xff]
      %v1866 = vld [vmem:[%s657 + $0x62] sm:$0xff]
      %v1867 = vld [vmem:[%s657 + $0x72] sm:$0xff]
      %v1868 = vld [vmem:[%s657 + $0xa2] sm:$0xff]
      %v1869 = vld [vmem:[%s657 + $0xb2] sm:$0xff]
      %v1870 = vld [vmem:[%s657 + $0xc2] sm:$0xff]
      %v1871 = vld [vmem:[%s657 + $0xd2] sm:$0xff]
      %v1872 = vld [vmem:[%s657 + $0xe2] sm:$0xff]
      %v1873 = vld [vmem:[%s657 + $0xf2] sm:$0xff]
      %v1874 = vld [vmem:[%s657 + $0x102] sm:$0xff]
      %v1875 = vld [vmem:[%s657 + $0x112] sm:$0xff]
      %1892 = vrot.lane.b32.xlu0 %v1748, 32
      %v1893 = vpop.permute.xlu0 %1892
      %1894 = vrot.lane.b32.xlu0 %v1749, 32
      %v1895 = vpop.permute.xlu0 %1894
      %1896 = vrot.lane.b32.xlu0 %v1750, 32
      %v1897 = vpop.permute.xlu0 %1896
      %1898 = vrot.lane.b32.xlu0 %v1751, 32
      %v1899 = vpop.permute.xlu0 %1898
      %1900 = vrot.lane.b32.xlu0 %v1752, 32
      %v1901 = vpop.permute.xlu0 %1900
      %1902 = vrot.lane.b32.xlu0 %v1753, 32
      %v1903 = vpop.permute.xlu0 %1902
      %1904 = vrot.lane.b32.xlu0 %v1754, 32
      %v1905 = vpop.permute.xlu0 %1904
      %1906 = vrot.lane.b32.xlu0 %v1755, 32
      %v1907 = vpop.permute.xlu0 %1906
      %1908 = vrot.lane.b32.xlu0 %v1756, 32
      %v1909 = vpop.permute.xlu0 %1908
      %1910 = vrot.lane.b32.xlu0 %v1757, 32
      %v1911 = vpop.permute.xlu0 %1910
      %1912 = vrot.lane.b32.xlu0 %v1758, 32
      %v1913 = vpop.permute.xlu0 %1912
      %1914 = vrot.lane.b32.xlu0 %v1759, 32
      %v1915 = vpop.permute.xlu0 %1914
      %1916 = vrot.lane.b32.xlu0 %v1760, 32
      %v1917 = vpop.permute.xlu0 %1916
      %1918 = vrot.lane.b32.xlu0 %v1761, 32
      %v1919 = vpop.permute.xlu0 %1918
      %1920 = vrot.lane.b32.xlu0 %v1762, 32
      %v1921 = vpop.permute.xlu0 %1920
      %1922 = vrot.lane.b32.xlu0 %v1763, 32
      %v1923 = vpop.permute.xlu0 %1922
      %1956 = vrot.lane.b32.xlu0 %v1764, 64
      %v1957 = vpop.permute.xlu0 %1956
      %1958 = vrot.lane.b32.xlu0 %v1765, 64
      %v1959 = vpop.permute.xlu0 %1958
      %1960 = vrot.lane.b32.xlu0 %v1766, 64
      %v1961 = vpop.permute.xlu0 %1960
      %1962 = vrot.lane.b32.xlu0 %v1767, 64
      %v1963 = vpop.permute.xlu0 %1962
      %1964 = vrot.lane.b32.xlu0 %v1768, 64
      %v1965 = vpop.permute.xlu0 %1964
      %1966 = vrot.lane.b32.xlu0 %v1769, 64
      %v1967 = vpop.permute.xlu0 %1966
      %1968 = vrot.lane.b32.xlu0 %v1770, 64
      %v1969 = vpop.permute.xlu0 %1968
      %1970 = vrot.lane.b32.xlu0 %v1771, 64
      %v1971 = vpop.permute.xlu0 %1970
      %1972 = vrot.lane.b32.xlu0 %v1772, 64
      %v1973 = vpop.permute.xlu0 %1972
      %1974 = vrot.lane.b32.xlu0 %v1773, 64
      %v1975 = vpop.permute.xlu0 %1974
      %1976 = vrot.lane.b32.xlu0 %v1774, 64
      %v1977 = vpop.permute.xlu0 %1976
      %1978 = vrot.lane.b32.xlu0 %v1775, 64
      %v1979 = vpop.permute.xlu0 %1978
      %1980 = vrot.lane.b32.xlu0 %v1776, 64
      %v1981 = vpop.permute.xlu0 %1980
      %1982 = vrot.lane.b32.xlu0 %v1777, 64
      %v1983 = vpop.permute.xlu0 %1982
      %1984 = vrot.lane.b32.xlu0 %v1778, 64
      %v1985 = vpop.permute.xlu0 %1984
      %1986 = vrot.lane.b32.xlu0 %v1779, 64
      %v1987 = vpop.permute.xlu0 %1986
      %2020 = vrot.lane.b32.xlu0 %v1780, 96
      %v2021 = vpop.permute.xlu0 %2020
      %2022 = vrot.lane.b32.xlu0 %v1781, 96
      %v2023 = vpop.permute.xlu0 %2022
      %2024 = vrot.lane.b32.xlu0 %v1782, 96
      %v2025 = vpop.permute.xlu0 %2024
      %2026 = vrot.lane.b32.xlu0 %v1783, 96
      %v2027 = vpop.permute.xlu0 %2026
      %2028 = vrot.lane.b32.xlu0 %v1784, 96
      %v2029 = vpop.permute.xlu0 %2028
      %2030 = vrot.lane.b32.xlu0 %v1785, 96
      %v2031 = vpop.permute.xlu0 %2030
      %2032 = vrot.lane.b32.xlu0 %v1786, 96
      %v2033 = vpop.permute.xlu0 %2032
      %2034 = vrot.lane.b32.xlu0 %v1787, 96
      %v2035 = vpop.permute.xlu0 %2034
      %2036 = vrot.lane.b32.xlu0 %v1788, 96
      %v2037 = vpop.permute.xlu0 %2036
      %2038 = vrot.lane.b32.xlu0 %v1789, 96
      %v2039 = vpop.permute.xlu0 %2038
      %2040 = vrot.lane.b32.xlu0 %v1790, 96
      %v2041 = vpop.permute.xlu0 %2040
      %2042 = vrot.lane.b32.xlu0 %v1791, 96
      %v2043 = vpop.permute.xlu0 %2042
      %2044 = vrot.lane.b32.xlu0 %v1792, 96
      %v2045 = vpop.permute.xlu0 %2044
      %2046 = vrot.lane.b32.xlu0 %v1793, 96
      %v2047 = vpop.permute.xlu0 %2046
      %2048 = vrot.lane.b32.xlu0 %v1794, 96
      %v2049 = vpop.permute.xlu0 %2048
      %2050 = vrot.lane.b32.xlu0 %v1795, 96
      %v2051 = vpop.permute.xlu0 %2050
      %2084 = vrot.lane.b32.xlu0 %v1812, 32
      %v2085 = vpop.permute.xlu0 %2084
      %2086 = vrot.lane.b32.xlu0 %v1813, 32
      %v2087 = vpop.permute.xlu0 %2086
      %2088 = vrot.lane.b32.xlu0 %v1814, 32
      %v2089 = vpop.permute.xlu0 %2088
      %2090 = vrot.lane.b32.xlu0 %v1815, 32
      %v2091 = vpop.permute.xlu0 %2090
      %2092 = vrot.lane.b32.xlu0 %v1816, 32
      %v2093 = vpop.permute.xlu0 %2092
      %2094 = vrot.lane.b32.xlu0 %v1817, 32
      %v2095 = vpop.permute.xlu0 %2094
      %2096 = vrot.lane.b32.xlu0 %v1818, 32
      %v2097 = vpop.permute.xlu0 %2096
      %2098 = vrot.lane.b32.xlu0 %v1819, 32
      %v2099 = vpop.permute.xlu0 %2098
      %2100 = vrot.lane.b32.xlu0 %v1820, 32
      %v2101 = vpop.permute.xlu0 %2100
      %2102 = vrot.lane.b32.xlu0 %v1821, 32
      %v2103 = vpop.permute.xlu0 %2102
      %2104 = vrot.lane.b32.xlu0 %v1822, 32
      %v2105 = vpop.permute.xlu0 %2104
      %2106 = vrot.lane.b32.xlu0 %v1823, 32
      %v2107 = vpop.permute.xlu0 %2106
      %2108 = vrot.lane.b32.xlu0 %v1824, 32
      %v2109 = vpop.permute.xlu0 %2108
      %2110 = vrot.lane.b32.xlu0 %v1825, 32
      %v2111 = vpop.permute.xlu0 %2110
      %2112 = vrot.lane.b32.xlu0 %v1826, 32
      %v2113 = vpop.permute.xlu0 %2112
      %2114 = vrot.lane.b32.xlu0 %v1827, 32
      %v2115 = vpop.permute.xlu0 %2114
      %2148 = vrot.lane.b32.xlu0 %v1828, 64
      %v2149 = vpop.permute.xlu0 %2148
      %2150 = vrot.lane.b32.xlu0 %v1829, 64
      %v2151 = vpop.permute.xlu0 %2150
      %2152 = vrot.lane.b32.xlu0 %v1830, 64
      %v2153 = vpop.permute.xlu0 %2152
      %2154 = vrot.lane.b32.xlu0 %v1831, 64
      %v2155 = vpop.permute.xlu0 %2154
      %2156 = vrot.lane.b32.xlu0 %v1832, 64
      %v2157 = vpop.permute.xlu0 %2156
      %2158 = vrot.lane.b32.xlu0 %v1833, 64
      %v2159 = vpop.permute.xlu0 %2158
      %2160 = vrot.lane.b32.xlu0 %v1834, 64
      %v2161 = vpop.permute.xlu0 %2160
      %2162 = vrot.lane.b32.xlu0 %v1835, 64
      %v2163 = vpop.permute.xlu0 %2162
      %2164 = vrot.lane.b32.xlu0 %v1836, 64
      %v2165 = vpop.permute.xlu0 %2164
      %2166 = vrot.lane.b32.xlu0 %v1837, 64
      %v2167 = vpop.permute.xlu0 %2166
      %2168 = vrot.lane.b32.xlu0 %v1838, 64
      %v2169 = vpop.permute.xlu0 %2168
      %2170 = vrot.lane.b32.xlu0 %v1839, 64
      %v2171 = vpop.permute.xlu0 %2170
      %2172 = vrot.lane.b32.xlu0 %v1840, 64
      %v2173 = vpop.permute.xlu0 %2172
      %2174 = vrot.lane.b32.xlu0 %v1841, 64
      %v2175 = vpop.permute.xlu0 %2174
      %2176 = vrot.lane.b32.xlu0 %v1842, 64
      %v2177 = vpop.permute.xlu0 %2176
      %2178 = vrot.lane.b32.xlu0 %v1843, 64
      %v2179 = vpop.permute.xlu0 %2178
      %2212 = vrot.lane.b32.xlu0 %v1844, 96
      %v2213 = vpop.permute.xlu0 %2212
      %2214 = vrot.lane.b32.xlu0 %v1845, 96
      %v2215 = vpop.permute.xlu0 %2214
      %2216 = vrot.lane.b32.xlu0 %v1846, 96
      %v2217 = vpop.permute.xlu0 %2216
      %2218 = vrot.lane.b32.xlu0 %v1847, 96
      %v2219 = vpop.permute.xlu0 %2218
      %2220 = vrot.lane.b32.xlu0 %v1848, 96
      %v2221 = vpop.permute.xlu0 %2220
      %2222 = vrot.lane.b32.xlu0 %v1849, 96
      %v2223 = vpop.permute.xlu0 %2222
      %2224 = vrot.lane.b32.xlu0 %v1850, 96
      %v2225 = vpop.permute.xlu0 %2224
      %2226 = vrot.lane.b32.xlu0 %v1851, 96
      %v2227 = vpop.permute.xlu0 %2226
      %2228 = vrot.lane.b32.xlu0 %v1852, 96
      %v2229 = vpop.permute.xlu0 %2228
      %2230 = vrot.lane.b32.xlu0 %v1853, 96
      %v2231 = vpop.permute.xlu0 %2230
      %2232 = vrot.lane.b32.xlu0 %v1854, 96
      %v2233 = vpop.permute.xlu0 %2232
      %2234 = vrot.lane.b32.xlu0 %v1855, 96
      %v2235 = vpop.permute.xlu0 %2234
      %2236 = vrot.lane.b32.xlu0 %v1856, 96
      %v2237 = vpop.permute.xlu0 %2236
      %2238 = vrot.lane.b32.xlu0 %v1857, 96
      %v2239 = vpop.permute.xlu0 %2238
      %2240 = vrot.lane.b32.xlu0 %v1858, 96
      %v2241 = vpop.permute.xlu0 %2240
      %2242 = vrot.lane.b32.xlu0 %v1859, 96
      %v2243 = vpop.permute.xlu0 %2242
      %v2260 = vsel %vm381, %v1732, %v1893
      %v2261 = vsel %vm381, %v1733, %v1895
      %v2262 = vsel %vm381, %v1734, %v1897
      %v2263 = vsel %vm381, %v1735, %v1899
      %v2264 = vsel %vm381, %v1736, %v1901
      %v2265 = vsel %vm381, %v1737, %v1903
      %v2266 = vsel %vm381, %v1738, %v1905
      %v2267 = vsel %vm381, %v1739, %v1907
      %v2268 = vsel %vm381, %v1740, %v1909
      %v2269 = vsel %vm381, %v1741, %v1911
      %v2270 = vsel %vm381, %v1742, %v1913
      %v2271 = vsel %vm381, %v1743, %v1915
      %v2272 = vsel %vm381, %v1744, %v1917
      %v2273 = vsel %vm381, %v1745, %v1919
      %v2274 = vsel %vm381, %v1746, %v1921
      %v2275 = vsel %vm381, %v1747, %v1923
      %v2276 = vsel %vm1106, %v2260, %v1957
      %v2277 = vsel %vm1106, %v2261, %v1959
      %v2278 = vsel %vm1106, %v2262, %v1961
      %v2279 = vsel %vm1106, %v2263, %v1963
      %v2280 = vsel %vm1106, %v2264, %v1965
      %v2281 = vsel %vm1106, %v2265, %v1967
      %v2282 = vsel %vm1106, %v2266, %v1969
      %v2283 = vsel %vm1106, %v2267, %v1971
      %v2284 = vsel %vm1106, %v2268, %v1973
      %v2285 = vsel %vm1106, %v2269, %v1975
      %v2286 = vsel %vm1106, %v2270, %v1977
      %v2287 = vsel %vm1106, %v2271, %v1979
      %v2288 = vsel %vm1106, %v2272, %v1981
      %v2289 = vsel %vm1106, %v2273, %v1983
      %v2290 = vsel %vm1106, %v2274, %v1985
      %v2291 = vsel %vm1106, %v2275, %v1987
      %v2292 = vsel %vm1123, %v2276, %v2021
      %v2293 = vsel %vm1123, %v2277, %v2023
      %v2294 = vsel %vm1123, %v2278, %v2025
      %v2295 = vsel %vm1123, %v2279, %v2027
      %v2296 = vsel %vm1123, %v2280, %v2029
      %v2297 = vsel %vm1123, %v2281, %v2031
      %v2298 = vsel %vm1123, %v2282, %v2033
      %v2299 = vsel %vm1123, %v2283, %v2035
      %v2300 = vsel %vm1123, %v2284, %v2037
      %v2301 = vsel %vm1123, %v2285, %v2039
      %v2302 = vsel %vm1123, %v2286, %v2041
      %v2303 = vsel %vm1123, %v2287, %v2043
      %v2304 = vsel %vm1123, %v2288, %v2045
      %v2305 = vsel %vm1123, %v2289, %v2047
      %v2306 = vsel %vm1123, %v2290, %v2049
      %v2307 = vsel %vm1123, %v2291, %v2051
      %v2308 = vsel %vm381, %v1796, %v2085
      %v2309 = vsel %vm381, %v1797, %v2087
      %v2310 = vsel %vm381, %v1798, %v2089
      %v2311 = vsel %vm381, %v1799, %v2091
      %v2312 = vsel %vm381, %v1800, %v2093
      %v2313 = vsel %vm381, %v1801, %v2095
      %v2314 = vsel %vm381, %v1802, %v2097
      %v2315 = vsel %vm381, %v1803, %v2099
      %v2316 = vsel %vm381, %v1804, %v2101
      %v2317 = vsel %vm381, %v1805, %v2103
      %v2318 = vsel %vm381, %v1806, %v2105
      %v2319 = vsel %vm381, %v1807, %v2107
      %v2320 = vsel %vm381, %v1808, %v2109
      %v2321 = vsel %vm381, %v1809, %v2111
      %v2322 = vsel %vm381, %v1810, %v2113
      %v2323 = vsel %vm381, %v1811, %v2115
      %v2324 = vsel %vm1106, %v2308, %v2149
      %v2325 = vsel %vm1106, %v2309, %v2151
      %v2326 = vsel %vm1106, %v2310, %v2153
      %v2327 = vsel %vm1106, %v2311, %v2155
      %v2328 = vsel %vm1106, %v2312, %v2157
      %v2329 = vsel %vm1106, %v2313, %v2159
      %v2330 = vsel %vm1106, %v2314, %v2161
      %v2331 = vsel %vm1106, %v2315, %v2163
      %v2332 = vsel %vm1106, %v2316, %v2165
      %v2333 = vsel %vm1106, %v2317, %v2167
      %v2334 = vsel %vm1106, %v2318, %v2169
      %v2335 = vsel %vm1106, %v2319, %v2171
      %v2336 = vsel %vm1106, %v2320, %v2173
      %v2337 = vsel %vm1106, %v2321, %v2175
      %v2338 = vsel %vm1106, %v2322, %v2177
      %v2339 = vsel %vm1106, %v2323, %v2179
      %v2340 = vsel %vm1123, %v2324, %v2213
      %v2341 = vsel %vm1123, %v2325, %v2215
      %v2342 = vsel %vm1123, %v2326, %v2217
      %v2343 = vsel %vm1123, %v2327, %v2219
      %v2344 = vsel %vm1123, %v2328, %v2221
      %v2345 = vsel %vm1123, %v2329, %v2223
      %v2346 = vsel %vm1123, %v2330, %v2225
      %v2347 = vsel %vm1123, %v2331, %v2227
      %v2348 = vsel %vm1123, %v2332, %v2229
      %v2349 = vsel %vm1123, %v2333, %v2231
      %v2350 = vsel %vm1123, %v2334, %v2233
      %v2351 = vsel %vm1123, %v2335, %v2235
      %v2352 = vsel %vm1123, %v2336, %v2237
      %v2353 = vsel %vm1123, %v2337, %v2239
      %v2354 = vsel %vm1123, %v2338, %v2241
      %v2355 = vsel %vm1123, %v2339, %v2243
      %v2356 = vpack.c.bf16 %v2293, %v2292
      %v2357 = vpack.c.bf16 %v2341, %v2340
      %v2358 = vpack.c.bf16 %v1861, %v1860
      %v2359 = vpack.c.bf16 %v2295, %v2294
      %v2360 = vpack.c.bf16 %v2343, %v2342
      %v2361 = vpack.c.bf16 %v1863, %v1862
      %v2362 = vpack.c.bf16 %v2297, %v2296
      %v2363 = vpack.c.bf16 %v2345, %v2344
      %v2364 = vpack.c.bf16 %v1865, %v1864
      %v2365 = vpack.c.bf16 %v2299, %v2298
      %v2366 = vpack.c.bf16 %v2347, %v2346
      %v2367 = vpack.c.bf16 %v1867, %v1866
      %v2368 = vpack.c.bf16 %v2301, %v2300
      %v2369 = vpack.c.bf16 %v2349, %v2348
      %v2370 = vpack.c.bf16 %v1869, %v1868
      %v2371 = vpack.c.bf16 %v2303, %v2302
      %v2372 = vpack.c.bf16 %v2351, %v2350
      %v2373 = vpack.c.bf16 %v1871, %v1870
      %v2374 = vpack.c.bf16 %v2305, %v2304
      %v2375 = vpack.c.bf16 %v2353, %v2352
      %v2376 = vpack.c.bf16 %v1873, %v1872
      %v2377 = vpack.c.bf16 %v2307, %v2306
      %v2378 = vpack.c.bf16 %v2355, %v2354
      %v2379 = vpack.c.bf16 %v1875, %v1874
      %v2380 = vld [vmem:[%s4] sm:$0xf]
      %v2381 = vld [vmem:[%s4 + $0x4] sm:$0xf]
      %v2382 = vld [vmem:[%s4 + $0x8] sm:$0xf]
      %v2383 = vld [vmem:[%s4 + $0xc] sm:$0xf]
      %v2384 = vld [vmem:[%s4 + $0x10] sm:$0xf]
      %v2385 = vld [vmem:[%s4 + $0x14] sm:$0xf]
      %v2386 = vld [vmem:[%s4 + $0x18] sm:$0xf]
      %v2387 = vld [vmem:[%s4 + $0x1c] sm:$0xf]
      %v2388 = vld [vmem:[%s4 + $0x20] sm:$0xf]
      %v2389 = vld [vmem:[%s4 + $0x24] sm:$0xf]
      %v2390 = vld [vmem:[%s4 + $0x28] sm:$0xf]
      %v2391 = vld [vmem:[%s4 + $0x2c] sm:$0xf]
      %v2392 = vld [vmem:[%s4 + $0x30] sm:$0xf]
      %v2393 = vld [vmem:[%s4 + $0x34] sm:$0xf]
      %v2394 = vld [vmem:[%s4 + $0x38] sm:$0xf]
      %v2395 = vld [vmem:[%s4 + $0x3c] sm:$0xf]
      %v2396 = vld [vmem:[%s4 + $0x40] sm:$0xf]
      %v2397 = vld [vmem:[%s4 + $0x44] sm:$0xf]
      %v2398 = vld [vmem:[%s4 + $0x48] sm:$0xf]
      %v2399 = vld [vmem:[%s4 + $0x4c] sm:$0xf]
      %v2400 = vld [vmem:[%s4 + $0x50] sm:$0xf]
      %v2401 = vld [vmem:[%s4 + $0x54] sm:$0xf]
      %v2402 = vld [vmem:[%s4 + $0x58] sm:$0xf]
      %v2403 = vld [vmem:[%s4 + $0x5c] sm:$0xf]
      %v2404 = vld [vmem:[%s4 + $0x60] sm:$0xf]
      %v2405 = vld [vmem:[%s4 + $0x64] sm:$0xf]
      %v2406 = vld [vmem:[%s4 + $0x68] sm:$0xf]
      %v2407 = vld [vmem:[%s4 + $0x6c] sm:$0xf]
      %v2408 = vld [vmem:[%s4 + $0x70] sm:$0xf]
      %v2409 = vld [vmem:[%s4 + $0x74] sm:$0xf]
      %v2410 = vld [vmem:[%s4 + $0x78] sm:$0xf]
      %v2411 = vld [vmem:[%s4 + $0x7c] sm:$0xf]
      %v2412 = vld [vmem:[%s4 + $0x80] sm:$0xf]
      %v2413 = vld [vmem:[%s4 + $0x84] sm:$0xf]
      %v2414 = vld [vmem:[%s4 + $0x88] sm:$0xf]
      %v2415 = vld [vmem:[%s4 + $0x8c] sm:$0xf]
      %v2452 = vunpack.c.l.b16 %v2380
      %v2453 = vunpack.c.l.b16 %v2381
      %v2454 = vunpack.c.l.b16 %v2382
      %v2455 = vunpack.c.l.b16 %v2383
      %v2456 = vunpack.c.l.b16 %v2384
      %v2457 = vunpack.c.l.b16 %v2385
      %v2458 = vunpack.c.l.b16 %v2386
      %v2459 = vunpack.c.l.b16 %v2387
      %v2460 = vunpack.c.l.b16 %v2388
      %v2461 = vunpack.c.l.b16 %v2389
      %v2462 = vunpack.c.l.b16 %v2390
      %v2463 = vunpack.c.l.b16 %v2391
      %v2464 = vunpack.c.l.b16 %v2392
      %v2465 = vunpack.c.l.b16 %v2393
      %v2466 = vunpack.c.l.b16 %v2394
      %v2467 = vunpack.c.l.b16 %v2395
      %v2468 = vunpack.c.l.b16 %v2396
      %v2469 = vunpack.c.l.b16 %v2397
      %v2470 = vunpack.c.l.b16 %v2398
      %v2471 = vunpack.c.l.b16 %v2399
      %v2472 = vunpack.c.l.b16 %v2400
      %v2473 = vunpack.c.l.b16 %v2401
      %v2474 = vunpack.c.l.b16 %v2402
      %v2475 = vunpack.c.l.b16 %v2403
      %v2476 = vunpack.c.l.b16 %v2404
      %v2477 = vunpack.c.l.b16 %v2405
      %v2478 = vunpack.c.l.b16 %v2406
      %v2479 = vunpack.c.l.b16 %v2407
      %v2480 = vunpack.c.l.b16 %v2408
      %v2481 = vunpack.c.l.b16 %v2409
      %v2482 = vunpack.c.l.b16 %v2410
      %v2483 = vunpack.c.l.b16 %v2411
      %v2484 = vunpack.c.l.b16 %v2412
      %v2485 = vunpack.c.l.b16 %v2413
      %v2486 = vunpack.c.l.b16 %v2414
      %v2487 = vunpack.c.l.b16 %v2415
      %v2488 = vpack.c.b16 %v2453, %v2452
      %v2489 = vpack.c.b16 %v2455, %v2454
      %v2490 = vpack.c.b16 %v2457, %v2456
      %v2491 = vpack.c.b16 %v2459, %v2458
      %v2492 = vpack.c.b16 %v2461, %v2460
      %v2493 = vpack.c.b16 %v2463, %v2462
      %v2494 = vpack.c.b16 %v2465, %v2464
      %v2495 = vpack.c.b16 %v2467, %v2466
      %v2496 = vpack.c.b16 %v2469, %v2468
      %v2497 = vpack.c.b16 %v2471, %v2470
      %v2498 = vpack.c.b16 %v2473, %v2472
      %v2499 = vpack.c.b16 %v2475, %v2474
      %v2500 = vpack.c.b16 %v2477, %v2476
      %v2501 = vpack.c.b16 %v2479, %v2478
      %v2502 = vpack.c.b16 %v2481, %v2480
      %v2503 = vpack.c.b16 %v2483, %v2482
      %v2504 = vpack.c.b16 %v2485, %v2484
      %v2505 = vpack.c.b16 %v2487, %v2486
      %v2525 = vsel %vm381, %v2358, 0
      %v2528 = vsel %vm381, %v2361, 0
      %v2531 = vsel %vm381, %v2364, 0
      %v2534 = vsel %vm381, %v2367, 0
      %v2537 = vsel %vm381, %v2370, 0
      %v2540 = vsel %vm381, %v2373, 0
      %v2543 = vsel %vm381, %v2376, 0
      %v2546 = vsel %vm381, %v2379, 0
      %2548 = vmatprep.subr.bf16.mxu0 0
      %2549 = vmatpush1.bf16.msra.mxu0 %v2488
      %2550 = vmatprep.subr.bf16.mxu0 0
      %2551 = vmatpush1.bf16.msra.mxu0 %v2489
      %2552 = vmatprep.subr.bf16.mxu0 0
      %2553 = vmatpush1.bf16.msra.mxu0 %v2490
      %2554 = vmatprep.subr.bf16.mxu0 0
      %2555 = vmatpush1.bf16.msra.mxu0 %v2491
      %2556 = vmatprep.subr.bf16.mxu0 0
      %2557 = vmatpush1.bf16.msra.mxu0 %v2492
      %2558 = vmatprep.subr.bf16.mxu0 0
      %2559 = vmatpush1.bf16.msra.mxu0 %v2493
      %2560 = vmatprep.subr.bf16.mxu0 0
      %2561 = vmatpush1.bf16.msra.mxu0 %v2494
      %2562 = vmatprep.subr.bf16.mxu0 0
      %2563 = vmatpush1.bf16.msra.mxu0 %v2495
      %2564 = vmatprep.subr.bf16.mxu0 0
      %2565 = vmatpush1.bf16.msra.mxu0 %v2496
      %2566 = vmatprep.subr.bf16.mxu0 0
      %2567 = vmatpush1.bf16.msra.mxu0 %v2497
      %2568 = vmatprep.subr.bf16.mxu0 0
      %2569 = vmatpush1.bf16.msra.mxu0 %v2498
      %2570 = vmatprep.subr.bf16.mxu0 0
      %2571 = vmatpush1.bf16.msra.mxu0 %v2499
      %2572 = vmatprep.subr.bf16.mxu0 0
      %2573 = vmatpush1.bf16.msra.mxu0 %v2500
      %2574 = vmatprep.subr.bf16.mxu0 0
      %2575 = vmatpush1.bf16.msra.mxu0 %v2501
      %2576 = vmatprep.subr.bf16.mxu0 0
      %2577 = vmatpush1.bf16.msra.mxu0 %v2502
      %2578 = vmatprep.subr.bf16.mxu0 0
      %2579 = vmatpush1.bf16.msra.mxu0 %v2503
      %2580 = vmatprep.mubr.bf16.mxu0 %v2357
      %2581 = vmatmul.mubr.bf16.gmra.mrb[0].mxu0 %v2356
      %v2582 = vpop.f32.mrb[0].mxu0
      %v2583 = vadd.f32 0.0, %v2582
      %v2584 = vpop.f32.mrb[0].mxu0
      %v2585 = vpop.f32.mrb[0].mxu0
      %v2586 = vadd.f32 0.0, %v2585
      %v2587 = vpop.f32.mrb[0].mxu0
      %2588 = vmatprep.mubr.bf16.mxu0 %v2360
      %2589 = vmatmul.mubr.bf16.gmra.mrb[0].mxu0 %v2359
      %v2590 = vpop.f32.mrb[0].mxu0
      %v2591 = vadd.f32 0.0, %v2590
      %v2592 = vpop.f32.mrb[0].mxu0
      %v2593 = vpop.f32.mrb[0].mxu0
      %v2594 = vadd.f32 0.0, %v2593
      %v2595 = vpop.f32.mrb[0].mxu0
      %2596 = vmatprep.mubr.bf16.mxu0 %v2363
      %2597 = vmatmul.mubr.bf16.gmra.mrb[0].mxu0 %v2362
      %v2598 = vpop.f32.mrb[0].mxu0
      %v2599 = vadd.f32 0.0, %v2598
      %v2600 = vpop.f32.mrb[0].mxu0
      %v2601 = vpop.f32.mrb[0].mxu0
      %v2602 = vadd.f32 0.0, %v2601
      %v2603 = vpop.f32.mrb[0].mxu0
      %2604 = vmatprep.mubr.bf16.mxu0 %v2366
      %2605 = vmatmul.mubr.bf16.gmra.mrb[0].mxu0 %v2365
      %v2606 = vpop.f32.mrb[0].mxu0
      %v2607 = vadd.f32 0.0, %v2606
      %v2608 = vpop.f32.mrb[0].mxu0
      %v2609 = vpop.f32.mrb[0].mxu0
      %v2610 = vadd.f32 0.0, %v2609
      %v2611 = vpop.f32.mrb[0].mxu0
      %2612 = vmatprep.mubr.bf16.mxu0 %v2369
      %2613 = vmatmul.mubr.bf16.gmra.mrb[0].mxu0 %v2368
      %v2614 = vpop.f32.mrb[0].mxu0
      %v2615 = vadd.f32 0.0, %v2614
      %v2616 = vpop.f32.mrb[0].mxu0
      %v2617 = vpop.f32.mrb[0].mxu0
      %v2618 = vadd.f32 0.0, %v2617
      %v2619 = vpop.f32.mrb[0].mxu0
      %2620 = vmatprep.mubr.bf16.mxu0 %v2372
      %2621 = vmatmul.mubr.bf16.gmra.mrb[0].mxu0 %v2371
      %v2622 = vpop.f32.mrb[0].mxu0
      %v2623 = vadd.f32 0.0, %v2622
      %v2624 = vpop.f32.mrb[0].mxu0
      %v2625 = vpop.f32.mrb[0].mxu0
      %v2626 = vadd.f32 0.0, %v2625
      %v2627 = vpop.f32.mrb[0].mxu0
      %2628 = vmatprep.mubr.bf16.mxu0 %v2375
      %2629 = vmatmul.mubr.bf16.gmra.mrb[0].mxu0 %v2374
      %v2630 = vpop.f32.mrb[0].mxu0
      %v2631 = vadd.f32 0.0, %v2630
      %v2632 = vpop.f32.mrb[0].mxu0
      %v2633 = vpop.f32.mrb[0].mxu0
      %v2634 = vadd.f32 0.0, %v2633
      %v2635 = vpop.f32.mrb[0].mxu0
      %2636 = vmatprep.mubr.bf16.mxu0 %v2378
      %2637 = vmatmul.mubr.bf16.gmra.mrb[0].mxu0 %v2377
      %v2638 = vpop.f32.mrb[0].mxu0
      %v2639 = vadd.f32 0.0, %v2638
      %v2640 = vpop.f32.mrb[0].mxu0
      %v2641 = vpop.f32.mrb[0].mxu0
      %v2642 = vadd.f32 0.0, %v2641
      %v2643 = vpop.f32.mrb[0].mxu0
      %2644 = vdwg.mxu0
      %2645 = vmatprep.subr.bf16.mxu0 0
      %2646 = vmatpush1.bf16.msra.mxu0 %v2504
      %2647 = vmatprep.subr.bf16.mxu0 0
      %2648 = vmatpush1.bf16.msra.mxu0 %v2505
      %2649 = vmatprep.subr.bf16.mxu0 0
      %2650 = vmatpush1.bf16.msra.mxu0 0
      %2651 = vmatprep.subr.bf16.mxu0 0
      %2652 = vmatpush1.bf16.msra.mxu0 0
      %2653 = vmatprep.subr.bf16.mxu0 0
      %2654 = vmatpush1.bf16.msra.mxu0 0
      %2655 = vmatprep.subr.bf16.mxu0 0
      %2656 = vmatpush1.bf16.msra.mxu0 0
      %2657 = vmatprep.subr.bf16.mxu0 0
      %2658 = vmatpush1.bf16.msra.mxu0 0
      %2659 = vmatprep.subr.bf16.mxu0 0
      %2660 = vmatpush1.bf16.msra.mxu0 0
      %2661 = vmatprep.subr.bf16.mxu0 0
      %2662 = vmatpush1.bf16.msra.mxu0 0
      %2663 = vmatprep.subr.bf16.mxu0 0
      %2664 = vmatpush1.bf16.msra.mxu0 0
      %2665 = vmatprep.subr.bf16.mxu0 0
      %2666 = vmatpush1.bf16.msra.mxu0 0
      %2667 = vmatprep.subr.bf16.mxu0 0
      %2668 = vmatpush1.bf16.msra.mxu0 0
      %2669 = vmatprep.subr.bf16.mxu0 0
      %2670 = vmatpush1.bf16.msra.mxu0 0
      %2671 = vmatprep.subr.bf16.mxu0 0
      %2672 = vmatpush1.bf16.msra.mxu0 0
      %2673 = vmatprep.subr.bf16.mxu0 0
      %2674 = vmatpush1.bf16.msra.mxu0 0
      %2675 = vmatprep.subr.bf16.mxu0 0
      %2676 = vmatpush1.bf16.msra.mxu0 0
      %2677 = vmatprep.mubr.bf16.mxu0 0
      %2678 = vmatmul.mubr.bf16.gmra.mrb[0].mxu0 %v2525
      %v2679 = vpop.f32.mrb[0].mxu0
      %v2680 = vadd.f32 %v2583, %v2679
      %v2681 = vpop.f32.mrb[0].mxu0
      %v2682 = vpop.f32.mrb[0].mxu0
      %v2683 = vadd.f32 %v2586, %v2682
      %v2684 = vpop.f32.mrb[0].mxu0
      %2685 = vmatprep.mubr.bf16.mxu0 0
      %2686 = vmatmul.mubr.bf16.gmra.mrb[0].mxu0 %v2528
      %v2687 = vpop.f32.mrb[0].mxu0
      %v2688 = vadd.f32 %v2591, %v2687
      %v2689 = vpop.f32.mrb[0].mxu0
      %v2690 = vpop.f32.mrb[0].mxu0
      %v2691 = vadd.f32 %v2594, %v2690
      %v2692 = vpop.f32.mrb[0].mxu0
      %2693 = vmatprep.mubr.bf16.mxu0 0
      %2694 = vmatmul.mubr.bf16.gmra.mrb[0].mxu0 %v2531
      %v2695 = vpop.f32.mrb[0].mxu0
      %v2696 = vadd.f32 %v2599, %v2695
      %v2697 = vpop.f32.mrb[0].mxu0
      %v2698 = vpop.f32.mrb[0].mxu0
      %v2699 = vadd.f32 %v2602, %v2698
      %v2700 = vpop.f32.mrb[0].mxu0
      %2701 = vmatprep.mubr.bf16.mxu0 0
      %2702 = vmatmul.mubr.bf16.gmra.mrb[0].mxu0 %v2534
      %v2703 = vpop.f32.mrb[0].mxu0
      %v2704 = vadd.f32 %v2607, %v2703
      %v2705 = vpop.f32.mrb[0].mxu0
      %v2706 = vpop.f32.mrb[0].mxu0
      %v2707 = vadd.f32 %v2610, %v2706
      %v2708 = vpop.f32.mrb[0].mxu0
      %2709 = vmatprep.mubr.bf16.mxu0 0
      %2710 = vmatmul.mubr.bf16.gmra.mrb[0].mxu0 %v2537
      %v2711 = vpop.f32.mrb[0].mxu0
      %v2712 = vadd.f32 %v2615, %v2711
      %v2713 = vpop.f32.mrb[0].mxu0
      %v2714 = vpop.f32.mrb[0].mxu0
      %v2715 = vadd.f32 %v2618, %v2714
      %v2716 = vpop.f32.mrb[0].mxu0
      %2717 = vmatprep.mubr.bf16.mxu0 0
      %2718 = vmatmul.mubr.bf16.gmra.mrb[0].mxu0 %v2540
      %v2719 = vpop.f32.mrb[0].mxu0
      %v2720 = vadd.f32 %v2623, %v2719
      %v2721 = vpop.f32.mrb[0].mxu0
      %v2722 = vpop.f32.mrb[0].mxu0
      %v2723 = vadd.f32 %v2626, %v2722
      %v2724 = vpop.f32.mrb[0].mxu0
      %2725 = vmatprep.mubr.bf16.mxu0 0
      %2726 = vmatmul.mubr.bf16.gmra.mrb[0].mxu0 %v2543
      %v2727 = vpop.f32.mrb[0].mxu0
      %v2728 = vadd.f32 %v2631, %v2727
      %v2729 = vpop.f32.mrb[0].mxu0
      %v2730 = vpop.f32.mrb[0].mxu0
      %v2731 = vadd.f32 %v2634, %v2730
      %v2732 = vpop.f32.mrb[0].mxu0
      %2733 = vmatprep.mubr.bf16.mxu0 0
      %2734 = vmatmul.mubr.bf16.gmra.mrb[0].mxu0 %v2546
      %v2735 = vpop.f32.mrb[0].mxu0
      %v2736 = vadd.f32 %v2639, %v2735
      %v2737 = vpop.f32.mrb[0].mxu0
      %v2738 = vpop.f32.mrb[0].mxu0
      %v2739 = vadd.f32 %v2642, %v2738
      %v2740 = vpop.f32.mrb[0].mxu0
      %2741 = vdwg.mxu0
      %v2742 = vsel %vm381, %v2680, 0.0
      %v2743 = vsel %vm381, %v2683, 0.0
      %v2744 = vadd.f32 %v2742, %v2743
      %v2745 = vsel %vm381, %v2688, 0.0
      %v2746 = vadd.f32 %v2744, %v2745
      %v2747 = vsel %vm381, %v2691, 0.0
      %v2748 = vadd.f32 %v2746, %v2747
      %v2749 = vsel %vm381, %v2696, 0.0
      %v2750 = vadd.f32 %v2748, %v2749
      %v2751 = vsel %vm381, %v2699, 0.0
      %v2752 = vadd.f32 %v2750, %v2751
      %v2753 = vsel %vm381, %v2704, 0.0
      %v2754 = vadd.f32 %v2752, %v2753
      %v2755 = vsel %vm381, %v2707, 0.0
      %v2756 = vadd.f32 %v2754, %v2755
      %v2757 = vsel %vm381, %v2712, 0.0
      %v2758 = vadd.f32 %v2756, %v2757
      %v2759 = vsel %vm381, %v2715, 0.0
      %v2760 = vadd.f32 %v2758, %v2759
      %v2761 = vsel %vm381, %v2720, 0.0
      %v2762 = vadd.f32 %v2760, %v2761
      %v2763 = vsel %vm381, %v2723, 0.0
      %v2764 = vadd.f32 %v2762, %v2763
      %v2765 = vsel %vm381, %v2728, 0.0
      %v2766 = vadd.f32 %v2764, %v2765
      %v2767 = vsel %vm381, %v2731, 0.0
      %v2768 = vadd.f32 %v2766, %v2767
      %v2769 = vsel %vm381, %v2736, 0.0
      %v2770 = vadd.f32 %v2768, %v2769
      %v2771 = vsel %vm381, %v2739, 0.0
      %v2772 = vadd.f32 %v2770, %v2771
      %v2773 = vrot.slane %v2772, 4
      %v2774 = vadd.f32 %v2772, %v2773
      %v2775 = vrot.slane %v2774, 2
      %v2776 = vadd.f32 %v2774, %v2775
      %v2777 = vrot.slane %v2776, 1
      %v2778 = vadd.f32 %v2776, %v2777
      %v2779 = vmul.f32 %v2778, 0.0078125
      %v2780 = vsub.f32 %v2680, %v2779
      %v2781 = vsub.f32 %v2683, %v2779
      %v2782 = vsub.f32 %v2688, %v2779
      %v2783 = vsub.f32 %v2691, %v2779
      %v2784 = vsub.f32 %v2696, %v2779
      %v2785 = vsub.f32 %v2699, %v2779
      %v2786 = vsub.f32 %v2704, %v2779
      %v2787 = vsub.f32 %v2707, %v2779
      %v2788 = vsub.f32 %v2712, %v2779
      %v2789 = vsub.f32 %v2715, %v2779
      %v2790 = vsub.f32 %v2720, %v2779
      %v2791 = vsub.f32 %v2723, %v2779
      %v2792 = vsub.f32 %v2728, %v2779
      %v2793 = vsub.f32 %v2731, %v2779
      %v2794 = vsub.f32 %v2736, %v2779
      %v2795 = vsub.f32 %v2739, %v2779
      %v2796 = vmul.f32 %v2780, %v2780
      %v2797 = vmul.f32 %v2781, %v2781
      %v2798 = vmul.f32 %v2782, %v2782
      %v2799 = vmul.f32 %v2783, %v2783
      %v2800 = vmul.f32 %v2784, %v2784
      %v2801 = vmul.f32 %v2785, %v2785
      %v2802 = vmul.f32 %v2786, %v2786
      %v2803 = vmul.f32 %v2787, %v2787
      %v2804 = vmul.f32 %v2788, %v2788
      %v2805 = vmul.f32 %v2789, %v2789
      %v2806 = vmul.f32 %v2790, %v2790
      %v2807 = vmul.f32 %v2791, %v2791
      %v2808 = vmul.f32 %v2792, %v2792
      %v2809 = vmul.f32 %v2793, %v2793
      %v2810 = vmul.f32 %v2794, %v2794
      %v2811 = vmul.f32 %v2795, %v2795
      %v2812 = vsel %vm381, %v2796, 0.0
      %v2813 = vsel %vm381, %v2797, 0.0
      %v2814 = vadd.f32 %v2812, %v2813
      %v2815 = vsel %vm381, %v2798, 0.0
      %v2816 = vadd.f32 %v2814, %v2815
      %v2817 = vsel %vm381, %v2799, 0.0
      %v2818 = vadd.f32 %v2816, %v2817
      %v2819 = vsel %vm381, %v2800, 0.0
      %v2820 = vadd.f32 %v2818, %v2819
      %v2821 = vsel %vm381, %v2801, 0.0
      %v2822 = vadd.f32 %v2820, %v2821
      %v2823 = vsel %vm381, %v2802, 0.0
      %v2824 = vadd.f32 %v2822, %v2823
      %v2825 = vsel %vm381, %v2803, 0.0
      %v2826 = vadd.f32 %v2824, %v2825
      %v2827 = vsel %vm381, %v2804, 0.0
      %v2828 = vadd.f32 %v2826, %v2827
      %v2829 = vsel %vm381, %v2805, 0.0
      %v2830 = vadd.f32 %v2828, %v2829
      %v2831 = vsel %vm381, %v2806, 0.0
      %v2832 = vadd.f32 %v2830, %v2831
      %v2833 = vsel %vm381, %v2807, 0.0
      %v2834 = vadd.f32 %v2832, %v2833
      %v2835 = vsel %vm381, %v2808, 0.0
      %v2836 = vadd.f32 %v2834, %v2835
      %v2837 = vsel %vm381, %v2809, 0.0
      %v2838 = vadd.f32 %v2836, %v2837
      %v2839 = vsel %vm381, %v2810, 0.0
      %v2840 = vadd.f32 %v2838, %v2839
      %v2841 = vsel %vm381, %v2811, 0.0
      %v2842 = vadd.f32 %v2840, %v2841
      %v2843 = vrot.slane %v2842, 4
      %v2844 = vadd.f32 %v2842, %v2843
      %v2845 = vrot.slane %v2844, 2
      %v2846 = vadd.f32 %v2844, %v2845
      %v2847 = vrot.slane %v2846, 1
      %v2848 = vadd.f32 %v2846, %v2847
      %v2849 = vmul.f32 %v2848, 0.0078125
      %v2850 = vadd.f32 %v2849, 1e-05
      %v2851 = vrsqrt.pop %v2850
      %v2852 = vmul.f32 %v2780, %v2851
      %v2853 = vmul.f32 %v2781, %v2851
      %v2854 = vmul.f32 %v2782, %v2851
      %v2855 = vmul.f32 %v2783, %v2851
      %v2856 = vmul.f32 %v2784, %v2851
      %v2857 = vmul.f32 %v2785, %v2851
      %v2858 = vmul.f32 %v2786, %v2851
      %v2859 = vmul.f32 %v2787, %v2851
      %v2860 = vmul.f32 %v2788, %v2851
      %v2861 = vmul.f32 %v2789, %v2851
      %v2862 = vmul.f32 %v2790, %v2851
      %v2863 = vmul.f32 %v2791, %v2851
      %v2864 = vmul.f32 %v2792, %v2851
      %v2865 = vmul.f32 %v2793, %v2851
      %v2866 = vmul.f32 %v2794, %v2851
      %v2867 = vmul.f32 %v2795, %v2851
      %v2868 = vadd.f32 %v2852, %v441
      %v2869 = vadd.f32 %v2853, %v444
      %v2870 = vadd.f32 %v2854, %v449
      %v2871 = vadd.f32 %v2855, %v452
      %v2872 = vadd.f32 %v2856, %v457
      %v2873 = vadd.f32 %v2857, %v460
      %v2874 = vadd.f32 %v2858, %v465
      %v2875 = vadd.f32 %v2859, %v468
      %v2876 = vadd.f32 %v2860, %v473
      %v2877 = vadd.f32 %v2861, %v476
      %v2878 = vadd.f32 %v2862, %v481
      %v2879 = vadd.f32 %v2863, %v484
      %v2880 = vadd.f32 %v2864, %v489
      %v2881 = vadd.f32 %v2865, %v492
      %v2882 = vadd.f32 %v2866, %v497
      %v2883 = vadd.f32 %v2867, %v500
      %v2884 = vmax.f32 %v2868, 0.0
      %v2885 = vmax.f32 %v2869, 0.0
      %v2886 = vmax.f32 %v2870, 0.0
      %v2887 = vmax.f32 %v2871, 0.0
      %v2888 = vmax.f32 %v2872, 0.0
      %v2889 = vmax.f32 %v2873, 0.0
      %v2890 = vmax.f32 %v2874, 0.0
      %v2891 = vmax.f32 %v2875, 0.0
      %v2892 = vmax.f32 %v2876, 0.0
      %v2893 = vmax.f32 %v2877, 0.0
      %v2894 = vmax.f32 %v2878, 0.0
      %v2895 = vmax.f32 %v2879, 0.0
      %v2896 = vmax.f32 %v2880, 0.0
      %v2897 = vmax.f32 %v2881, 0.0
      %v2898 = vmax.f32 %v2882, 0.0
      %v2899 = vmax.f32 %v2883, 0.0
      %v2900 = vpack.c.bf16 %v2885, %v2884
      %v2901 = vpack.c.bf16 %v2887, %v2886
      %v2902 = vpack.c.bf16 %v2889, %v2888
      %v2903 = vpack.c.bf16 %v2891, %v2890
      %v2904 = vpack.c.bf16 %v2893, %v2892
      %v2905 = vpack.c.bf16 %v2895, %v2894
      %v2906 = vpack.c.bf16 %v2897, %v2896
      %v2907 = vpack.c.bf16 %v2899, %v2898
      %v2908 = vld [vmem:[%s5] sm:$0xf]
      %v2909 = vld [vmem:[%s5 + $0x4] sm:$0xf]
      %v2910 = vld [vmem:[%s5 + $0x8] sm:$0xf]
      %v2911 = vld [vmem:[%s5 + $0xc] sm:$0xf]
      %v2912 = vld [vmem:[%s6] sm:$0x1]
      %v2914 = vlaneseq
      %v2915 = vshrl.u32 %v2914, 7
      %v2916 = vsub.s32 0, %v2915
      %v2917 = vrot.slane %v2912, %v2916
      %v2923 = vunpack.c.l.b16 %v2908
      %v2924 = vunpack.c.l.b16 %v2909
      %v2925 = vunpack.c.l.b16 %v2910
      %v2926 = vunpack.c.l.b16 %v2911
      %v2927 = vpack.c.b16 %v2924, %v2923
      %v2928 = vpack.c.b16 %v2926, %v2925
      %v2932 = vsel %vm381, %v2900, 0
      %v2935 = vsel %vm381, %v2901, 0
      %v2938 = vsel %vm381, %v2902, 0
      %v2941 = vsel %vm381, %v2903, 0
      %v2944 = vsel %vm381, %v2904, 0
      %v2947 = vsel %vm381, %v2905, 0
      %v2950 = vsel %vm381, %v2906, 0
      %v2953 = vsel %vm381, %v2907, 0
      %2955 = vmatprep.subr.bf16.mxu0 0
      %2956 = vmatpush1.bf16.msra.mxu0 %v2927
      %2957 = vmatprep.subr.bf16.mxu0 0
      %2958 = vmatpush1.bf16.msra.mxu0 %v2928
      %2959 = vmatprep.subr.bf16.mxu0 0
      %2960 = vmatpush1.bf16.msra.mxu0 0
      %2961 = vmatprep.subr.bf16.mxu0 0
      %2962 = vmatpush1.bf16.msra.mxu0 0
      %2963 = vmatprep.subr.bf16.mxu0 0
      %2964 = vmatpush1.bf16.msra.mxu0 0
      %2965 = vmatprep.subr.bf16.mxu0 0
      %2966 = vmatpush1.bf16.msra.mxu0 0
      %2967 = vmatprep.subr.bf16.mxu0 0
      %2968 = vmatpush1.bf16.msra.mxu0 0
      %2969 = vmatprep.subr.bf16.mxu0 0
      %2970 = vmatpush1.bf16.msra.mxu0 0
      %2971 = vmatprep.subr.bf16.mxu0 0
      %2972 = vmatpush1.bf16.msra.mxu0 0
      %2973 = vmatprep.subr.bf16.mxu0 0
      %2974 = vmatpush1.bf16.msra.mxu0 0
      %2975 = vmatprep.subr.bf16.mxu0 0
      %2976 = vmatpush1.bf16.msra.mxu0 0
      %2977 = vmatprep.subr.bf16.mxu0 0
      %2978 = vmatpush1.bf16.msra.mxu0 0
      %2979 = vmatprep.subr.bf16.mxu0 0
      %2980 = vmatpush1.bf16.msra.mxu0 0
      %2981 = vmatprep.subr.bf16.mxu0 0
      %2982 = vmatpush1.bf16.msra.mxu0 0
      %2983 = vmatprep.subr.bf16.mxu0 0
      %2984 = vmatpush1.bf16.msra.mxu0 0
      %2985 = vmatprep.subr.bf16.mxu0 0
      %2986 = vmatpush1.bf16.msra.mxu0 0
      %2987 = vmatprep.mubr.bf16.mxu0 0
      %2988 = vmatmul.mubr.bf16.gmra.mrb[0].mxu0 %v2932
      %v2989 = vpop.f32.mrb[0].mxu0
      %v2990 = vadd.f32 %v2917, %v2989
      %v2991 = vpop.f32.mrb[0].mxu0
      %v2992 = vpop.f32.mrb[0].mxu0
      %v2993 = vadd.f32 %v2917, %v2992
      %v2994 = vpop.f32.mrb[0].mxu0
      %2995 = vmatprep.mubr.bf16.mxu0 0
      %2996 = vmatmul.mubr.bf16.gmra.mrb[0].mxu0 %v2935
      %v2997 = vpop.f32.mrb[0].mxu0
      %v2998 = vadd.f32 %v2917, %v2997
      %v2999 = vpop.f32.mrb[0].mxu0
      %v3000 = vpop.f32.mrb[0].mxu0
      %v3001 = vadd.f32 %v2917, %v3000
      %v3002 = vpop.f32.mrb[0].mxu0
      %3003 = vmatprep.mubr.bf16.mxu0 0
      %3004 = vmatmul.mubr.bf16.gmra.mrb[0].mxu0 %v2938
      %v3005 = vpop.f32.mrb[0].mxu0
      %v3006 = vadd.f32 %v2917, %v3005
      %v3007 = vpop.f32.mrb[0].mxu0
      %v3008 = vpop.f32.mrb[0].mxu0
      %v3009 = vadd.f32 %v2917, %v3008
      %v3010 = vpop.f32.mrb[0].mxu0
      %3011 = vmatprep.mubr.bf16.mxu0 0
      %3012 = vmatmul.mubr.bf16.gmra.mrb[0].mxu0 %v2941
      %v3013 = vpop.f32.mrb[0].mxu0
      %v3014 = vadd.f32 %v2917, %v3013
      %v3015 = vpop.f32.mrb[0].mxu0
      %v3016 = vpop.f32.mrb[0].mxu0
      %v3017 = vadd.f32 %v2917, %v3016
      %v3018 = vpop.f32.mrb[0].mxu0
      %3019 = vmatprep.mubr.bf16.mxu0 0
      %3020 = vmatmul.mubr.bf16.gmra.mrb[0].mxu0 %v2944
      %v3021 = vpop.f32.mrb[0].mxu0
      %v3022 = vadd.f32 %v2917, %v3021
      %v3023 = vpop.f32.mrb[0].mxu0
      %v3024 = vpop.f32.mrb[0].mxu0
      %v3025 = vadd.f32 %v2917, %v3024
      %v3026 = vpop.f32.mrb[0].mxu0
      %3027 = vmatprep.mubr.bf16.mxu0 0
      %3028 = vmatmul.mubr.bf16.gmra.mrb[0].mxu0 %v2947
      %v3029 = vpop.f32.mrb[0].mxu0
      %v3030 = vadd.f32 %v2917, %v3029
      %v3031 = vpop.f32.mrb[0].mxu0
      %v3032 = vpop.f32.mrb[0].mxu0
      %v3033 = vadd.f32 %v2917, %v3032
      %v3034 = vpop.f32.mrb[0].mxu0
      %3035 = vmatprep.mubr.bf16.mxu0 0
      %3036 = vmatmul.mubr.bf16.gmra.mrb[0].mxu0 %v2950
      %v3037 = vpop.f32.mrb[0].mxu0
      %v3038 = vadd.f32 %v2917, %v3037
      %v3039 = vpop.f32.mrb[0].mxu0
      %v3040 = vpop.f32.mrb[0].mxu0
      %v3041 = vadd.f32 %v2917, %v3040
      %v3042 = vpop.f32.mrb[0].mxu0
      %3043 = vmatprep.mubr.bf16.mxu0 0
      %3044 = vmatmul.mubr.bf16.gmra.mrb[0].mxu0 %v2953
      %v3045 = vpop.f32.mrb[0].mxu0
      %v3046 = vadd.f32 %v2917, %v3045
      %v3047 = vpop.f32.mrb[0].mxu0
      %v3048 = vpop.f32.mrb[0].mxu0
      %v3049 = vadd.f32 %v2917, %v3048
      %v3050 = vpop.f32.mrb[0].mxu0
      %3051 = vdwg.mxu0
      %v3052 = vmax.f32 %v2990, 0.0
      %v3053 = vmax.f32 %v2993, 0.0
      %v3054 = vmax.f32 %v2998, 0.0
      %v3055 = vmax.f32 %v3001, 0.0
      %v3056 = vmax.f32 %v3006, 0.0
      %v3057 = vmax.f32 %v3009, 0.0
      %v3058 = vmax.f32 %v3014, 0.0
      %v3059 = vmax.f32 %v3017, 0.0
      %v3060 = vmax.f32 %v3022, 0.0
      %v3061 = vmax.f32 %v3025, 0.0
      %v3062 = vmax.f32 %v3030, 0.0
      %v3063 = vmax.f32 %v3033, 0.0
      %v3064 = vmax.f32 %v3038, 0.0
      %v3065 = vmax.f32 %v3041, 0.0
      %v3066 = vmax.f32 %v3046, 0.0
      %v3067 = vmax.f32 %v3049, 0.0
      %3068 = vst.msk [vmem:[%s544 + $0x1] sm:$0xff] %vm381, %v2884
      %3069 = vst.msk [vmem:[%s544 + $0x11] sm:$0xff] %vm381, %v2885
      %3070 = vst.msk [vmem:[%s544 + $0x21] sm:$0xff] %vm381, %v2886
      %3071 = vst.msk [vmem:[%s544 + $0x31] sm:$0xff] %vm381, %v2887
      %3072 = vst.msk [vmem:[%s544 + $0x41] sm:$0xff] %vm381, %v2888
      %3073 = vst.msk [vmem:[%s544 + $0x51] sm:$0xff] %vm381, %v2889
      %3074 = vst.msk [vmem:[%s544 + $0x61] sm:$0xff] %vm381, %v2890
      %3075 = vst.msk [vmem:[%s544 + $0x71] sm:$0xff] %vm381, %v2891
      %3076 = vst.msk [vmem:[%s544 + $0xa1] sm:$0xff] %vm381, %v2892
      %3077 = vst.msk [vmem:[%s544 + $0xb1] sm:$0xff] %vm381, %v2893
      %3078 = vst.msk [vmem:[%s544 + $0xc1] sm:$0xff] %vm381, %v2894
      %3079 = vst.msk [vmem:[%s544 + $0xd1] sm:$0xff] %vm381, %v2895
      %3080 = vst.msk [vmem:[%s544 + $0xe1] sm:$0xff] %vm381, %v2896
      %3081 = vst.msk [vmem:[%s544 + $0xf1] sm:$0xff] %vm381, %v2897
      %3082 = vst.msk [vmem:[%s544 + $0x101] sm:$0xff] %vm381, %v2898
      %3083 = vst.msk [vmem:[%s544 + $0x111] sm:$0xff] %vm381, %v2899
      %v3084 = vld [vmem:[#allocation2] sm:$0xff]
      %v3085 = vld [vmem:[#allocation2 + $0x10] sm:$0xff]
      %v3086 = vld [vmem:[#allocation2 + $0x20] sm:$0xff]
      %v3087 = vld [vmem:[#allocation2 + $0x30] sm:$0xff]
      %v3088 = vld [vmem:[#allocation2 + $0x40] sm:$0xff]
      %v3089 = vld [vmem:[#allocation2 + $0x50] sm:$0xff]
      %v3090 = vld [vmem:[#allocation2 + $0x60] sm:$0xff]
      %v3091 = vld [vmem:[#allocation2 + $0x70] sm:$0xff]
      %v3092 = vld [vmem:[#allocation2 + $0xa0] sm:$0xff]
      %v3093 = vld [vmem:[#allocation2 + $0xb0] sm:$0xff]
      %v3094 = vld [vmem:[#allocation2 + $0xc0] sm:$0xff]
      %v3095 = vld [vmem:[#allocation2 + $0xd0] sm:$0xff]
      %v3096 = vld [vmem:[#allocation2 + $0xe0] sm:$0xff]
      %v3097 = vld [vmem:[#allocation2 + $0xf0] sm:$0xff]
      %v3098 = vld [vmem:[#allocation2 + $0x100] sm:$0xff]
      %v3099 = vld [vmem:[#allocation2 + $0x110] sm:$0xff]
      %v3100 = vld [vmem:[#allocation2 + $0x1] sm:$0xff]
      %v3101 = vld [vmem:[#allocation2 + $0x11] sm:$0xff]
      %v3102 = vld [vmem:[#allocation2 + $0x21] sm:$0xff]
      %v3103 = vld [vmem:[#allocation2 + $0x31] sm:$0xff]
      %v3104 = vld [vmem:[#allocation2 + $0x41] sm:$0xff]
      %v3105 = vld [vmem:[#allocation2 + $0x51] sm:$0xff]
      %v3106 = vld [vmem:[#allocation2 + $0x61] sm:$0xff]
      %v3107 = vld [vmem:[#allocation2 + $0x71] sm:$0xff]
      %v3108 = vld [vmem:[#allocation2 + $0xa1] sm:$0xff]
      %v3109 = vld [vmem:[#allocation2 + $0xb1] sm:$0xff]
      %v3110 = vld [vmem:[#allocation2 + $0xc1] sm:$0xff]
      %v3111 = vld [vmem:[#allocation2 + $0xd1] sm:$0xff]
      %v3112 = vld [vmem:[#allocation2 + $0xe1] sm:$0xff]
      %v3113 = vld [vmem:[#allocation2 + $0xf1] sm:$0xff]
      %v3114 = vld [vmem:[#allocation2 + $0x101] sm:$0xff]
      %v3115 = vld [vmem:[#allocation2 + $0x111] sm:$0xff]
      %v3116 = vld [vmem:[#allocation2 + $0x2] sm:$0xff]
      %v3117 = vld [vmem:[#allocation2 + $0x12] sm:$0xff]
      %v3118 = vld [vmem:[#allocation2 + $0x22] sm:$0xff]
      %v3119 = vld [vmem:[#allocation2 + $0x32] sm:$0xff]
      %v3120 = vld [vmem:[#allocation2 + $0x42] sm:$0xff]
      %v3121 = vld [vmem:[#allocation2 + $0x52] sm:$0xff]
      %v3122 = vld [vmem:[#allocation2 + $0x62] sm:$0xff]
      %v3123 = vld [vmem:[#allocation2 + $0x72] sm:$0xff]
      %v3124 = vld [vmem:[#allocation2 + $0xa2] sm:$0xff]
      %v3125 = vld [vmem:[#allocation2 + $0xb2] sm:$0xff]
      %v3126 = vld [vmem:[#allocation2 + $0xc2] sm:$0xff]
      %v3127 = vld [vmem:[#allocation2 + $0xd2] sm:$0xff]
      %v3128 = vld [vmem:[#allocation2 + $0xe2] sm:$0xff]
      %v3129 = vld [vmem:[#allocation2 + $0xf2] sm:$0xff]
      %v3130 = vld [vmem:[#allocation2 + $0x102] sm:$0xff]
      %v3131 = vld [vmem:[#allocation2 + $0x112] sm:$0xff]
      %v3132 = vld [vmem:[%s544] sm:$0xff]
      %v3133 = vld [vmem:[%s544 + $0x10] sm:$0xff]
      %v3134 = vld [vmem:[%s544 + $0x20] sm:$0xff]
      %v3135 = vld [vmem:[%s544 + $0x30] sm:$0xff]
      %v3136 = vld [vmem:[%s544 + $0x40] sm:$0xff]
      %v3137 = vld [vmem:[%s544 + $0x50] sm:$0xff]
      %v3138 = vld [vmem:[%s544 + $0x60] sm:$0xff]
      %v3139 = vld [vmem:[%s544 + $0x70] sm:$0xff]
      %v3140 = vld [vmem:[%s544 + $0xa0] sm:$0xff]
      %v3141 = vld [vmem:[%s544 + $0xb0] sm:$0xff]
      %v3142 = vld [vmem:[%s544 + $0xc0] sm:$0xff]
      %v3143 = vld [vmem:[%s544 + $0xd0] sm:$0xff]
      %v3144 = vld [vmem:[%s544 + $0xe0] sm:$0xff]
      %v3145 = vld [vmem:[%s544 + $0xf0] sm:$0xff]
      %v3146 = vld [vmem:[%s544 + $0x100] sm:$0xff]
      %v3147 = vld [vmem:[%s544 + $0x110] sm:$0xff]
      %v3148 = vld [vmem:[%s544 + $0x1] sm:$0xff]
      %v3149 = vld [vmem:[%s544 + $0x11] sm:$0xff]
      %v3150 = vld [vmem:[%s544 + $0x21] sm:$0xff]
      %v3151 = vld [vmem:[%s544 + $0x31] sm:$0xff]
      %v3152 = vld [vmem:[%s544 + $0x41] sm:$0xff]
      %v3153 = vld [vmem:[%s544 + $0x51] sm:$0xff]
      %v3154 = vld [vmem:[%s544 + $0x61] sm:$0xff]
      %v3155 = vld [vmem:[%s544 + $0x71] sm:$0xff]
      %v3156 = vld [vmem:[%s544 + $0xa1] sm:$0xff]
      %v3157 = vld [vmem:[%s544 + $0xb1] sm:$0xff]
      %v3158 = vld [vmem:[%s544 + $0xc1] sm:$0xff]
      %v3159 = vld [vmem:[%s544 + $0xd1] sm:$0xff]
      %v3160 = vld [vmem:[%s544 + $0xe1] sm:$0xff]
      %v3161 = vld [vmem:[%s544 + $0xf1] sm:$0xff]
      %v3162 = vld [vmem:[%s544 + $0x101] sm:$0xff]
      %v3163 = vld [vmem:[%s544 + $0x111] sm:$0xff]
      %v3164 = vld [vmem:[%s544 + $0x2] sm:$0xff]
      %v3165 = vld [vmem:[%s544 + $0x12] sm:$0xff]
      %v3166 = vld [vmem:[%s544 + $0x22] sm:$0xff]
      %v3167 = vld [vmem:[%s544 + $0x32] sm:$0xff]
      %v3168 = vld [vmem:[%s544 + $0x42] sm:$0xff]
      %v3169 = vld [vmem:[%s544 + $0x52] sm:$0xff]
      %v3170 = vld [vmem:[%s544 + $0x62] sm:$0xff]
      %v3171 = vld [vmem:[%s544 + $0x72] sm:$0xff]
      %v3172 = vld [vmem:[%s544 + $0xa2] sm:$0xff]
      %v3173 = vld [vmem:[%s544 + $0xb2] sm:$0xff]
      %v3174 = vld [vmem:[%s544 + $0xc2] sm:$0xff]
      %v3175 = vld [vmem:[%s544 + $0xd2] sm:$0xff]
      %v3176 = vld [vmem:[%s544 + $0xe2] sm:$0xff]
      %v3177 = vld [vmem:[%s544 + $0xf2] sm:$0xff]
      %v3178 = vld [vmem:[%s544 + $0x102] sm:$0xff]
      %v3179 = vld [vmem:[%s544 + $0x112] sm:$0xff]
      %v3180 = vld [vmem:[%s657] sm:$0xff]
      %v3181 = vld [vmem:[%s657 + $0x10] sm:$0xff]
      %v3182 = vld [vmem:[%s657 + $0x20] sm:$0xff]
      %v3183 = vld [vmem:[%s657 + $0x30] sm:$0xff]
      %v3184 = vld [vmem:[%s657 + $0x40] sm:$0xff]
      %v3185 = vld [vmem:[%s657 + $0x50] sm:$0xff]
      %v3186 = vld [vmem:[%s657 + $0x60] sm:$0xff]
      %v3187 = vld [vmem:[%s657 + $0x70] sm:$0xff]
      %v3188 = vld [vmem:[%s657 + $0xa0] sm:$0xff]
      %v3189 = vld [vmem:[%s657 + $0xb0] sm:$0xff]
      %v3190 = vld [vmem:[%s657 + $0xc0] sm:$0xff]
      %v3191 = vld [vmem:[%s657 + $0xd0] sm:$0xff]
      %v3192 = vld [vmem:[%s657 + $0xe0] sm:$0xff]
      %v3193 = vld [vmem:[%s657 + $0xf0] sm:$0xff]
      %v3194 = vld [vmem:[%s657 + $0x100] sm:$0xff]
      %v3195 = vld [vmem:[%s657 + $0x110] sm:$0xff]
      %v3196 = vld [vmem:[%s657 + $0x1] sm:$0xff]
      %v3197 = vld [vmem:[%s657 + $0x11] sm:$0xff]
      %v3198 = vld [vmem:[%s657 + $0x21] sm:$0xff]
      %v3199 = vld [vmem:[%s657 + $0x31] sm:$0xff]
      %v3200 = vld [vmem:[%s657 + $0x41] sm:$0xff]
      %v3201 = vld [vmem:[%s657 + $0x51] sm:$0xff]
      %v3202 = vld [vmem:[%s657 + $0x61] sm:$0xff]
      %v3203 = vld [vmem:[%s657 + $0x71] sm:$0xff]
      %v3204 = vld [vmem:[%s657 + $0xa1] sm:$0xff]
      %v3205 = vld [vmem:[%s657 + $0xb1] sm:$0xff]
      %v3206 = vld [vmem:[%s657 + $0xc1] sm:$0xff]
      %v3207 = vld [vmem:[%s657 + $0xd1] sm:$0xff]
      %v3208 = vld [vmem:[%s657 + $0xe1] sm:$0xff]
      %v3209 = vld [vmem:[%s657 + $0xf1] sm:$0xff]
      %v3210 = vld [vmem:[%s657 + $0x101] sm:$0xff]
      %v3211 = vld [vmem:[%s657 + $0x111] sm:$0xff]
      %v3212 = vld [vmem:[%s657 + $0x2] sm:$0xff]
      %v3213 = vld [vmem:[%s657 + $0x12] sm:$0xff]
      %v3214 = vld [vmem:[%s657 + $0x22] sm:$0xff]
      %v3215 = vld [vmem:[%s657 + $0x32] sm:$0xff]
      %v3216 = vld [vmem:[%s657 + $0x42] sm:$0xff]
      %v3217 = vld [vmem:[%s657 + $0x52] sm:$0xff]
      %v3218 = vld [vmem:[%s657 + $0x62] sm:$0xff]
      %v3219 = vld [vmem:[%s657 + $0x72] sm:$0xff]
      %v3220 = vld [vmem:[%s657 + $0xa2] sm:$0xff]
      %v3221 = vld [vmem:[%s657 + $0xb2] sm:$0xff]
      %v3222 = vld [vmem:[%s657 + $0xc2] sm:$0xff]
      %v3223 = vld [vmem:[%s657 + $0xd2] sm:$0xff]
      %v3224 = vld [vmem:[%s657 + $0xe2] sm:$0xff]
      %v3225 = vld [vmem:[%s657 + $0xf2] sm:$0xff]
      %v3226 = vld [vmem:[%s657 + $0x102] sm:$0xff]
      %v3227 = vld [vmem:[%s657 + $0x112] sm:$0xff]
      %3244 = vrot.lane.b32.xlu0 %v3100, 32
      %v3245 = vpop.permute.xlu0 %3244
      %3246 = vrot.lane.b32.xlu0 %v3101, 32
      %v3247 = vpop.permute.xlu0 %3246
      %3248 = vrot.lane.b32.xlu0 %v3102, 32
      %v3249 = vpop.permute.xlu0 %3248
      %3250 = vrot.lane.b32.xlu0 %v3103, 32
      %v3251 = vpop.permute.xlu0 %3250
      %3252 = vrot.lane.b32.xlu0 %v3104, 32
      %v3253 = vpop.permute.xlu0 %3252
      %3254 = vrot.lane.b32.xlu0 %v3105, 32
      %v3255 = vpop.permute.xlu0 %3254
      %3256 = vrot.lane.b32.xlu0 %v3106, 32
      %v3257 = vpop.permute.xlu0 %3256
      %3258 = vrot.lane.b32.xlu0 %v3107, 32
      %v3259 = vpop.permute.xlu0 %3258
      %3260 = vrot.lane.b32.xlu0 %v3108, 32
      %v3261 = vpop.permute.xlu0 %3260
      %3262 = vrot.lane.b32.xlu0 %v3109, 32
      %v3263 = vpop.permute.xlu0 %3262
      %3264 = vrot.lane.b32.xlu0 %v3110, 32
      %v3265 = vpop.permute.xlu0 %3264
      %3266 = vrot.lane.b32.xlu0 %v3111, 32
      %v3267 = vpop.permute.xlu0 %3266
      %3268 = vrot.lane.b32.xlu0 %v3112, 32
      %v3269 = vpop.permute.xlu0 %3268
      %3270 = vrot.lane.b32.xlu0 %v3113, 32
      %v3271 = vpop.permute.xlu0 %3270
      %3272 = vrot.lane.b32.xlu0 %v3114, 32
      %v3273 = vpop.permute.xlu0 %3272
      %3274 = vrot.lane.b32.xlu0 %v3115, 32
      %v3275 = vpop.permute.xlu0 %3274
      %3308 = vrot.lane.b32.xlu0 %v3116, 64
      %v3309 = vpop.permute.xlu0 %3308
      %3310 = vrot.lane.b32.xlu0 %v3117, 64
      %v3311 = vpop.permute.xlu0 %3310
      %3312 = vrot.lane.b32.xlu0 %v3118, 64
      %v3313 = vpop.permute.xlu0 %3312
      %3314 = vrot.lane.b32.xlu0 %v3119, 64
      %v3315 = vpop.permute.xlu0 %3314
      %3316 = vrot.lane.b32.xlu0 %v3120, 64
      %v3317 = vpop.permute.xlu0 %3316
      %3318 = vrot.lane.b32.xlu0 %v3121, 64
      %v3319 = vpop.permute.xlu0 %3318
      %3320 = vrot.lane.b32.xlu0 %v3122, 64
      %v3321 = vpop.permute.xlu0 %3320
      %3322 = vrot.lane.b32.xlu0 %v3123, 64
      %v3323 = vpop.permute.xlu0 %3322
      %3324 = vrot.lane.b32.xlu0 %v3124, 64
      %v3325 = vpop.permute.xlu0 %3324
      %3326 = vrot.lane.b32.xlu0 %v3125, 64
      %v3327 = vpop.permute.xlu0 %3326
      %3328 = vrot.lane.b32.xlu0 %v3126, 64
      %v3329 = vpop.permute.xlu0 %3328
      %3330 = vrot.lane.b32.xlu0 %v3127, 64
      %v3331 = vpop.permute.xlu0 %3330
      %3332 = vrot.lane.b32.xlu0 %v3128, 64
      %v3333 = vpop.permute.xlu0 %3332
      %3334 = vrot.lane.b32.xlu0 %v3129, 64
      %v3335 = vpop.permute.xlu0 %3334
      %3336 = vrot.lane.b32.xlu0 %v3130, 64
      %v3337 = vpop.permute.xlu0 %3336
      %3338 = vrot.lane.b32.xlu0 %v3131, 64
      %v3339 = vpop.permute.xlu0 %3338
      %3372 = vrot.lane.b32.xlu0 %v3132, 96
      %v3373 = vpop.permute.xlu0 %3372
      %3374 = vrot.lane.b32.xlu0 %v3133, 96
      %v3375 = vpop.permute.xlu0 %3374
      %3376 = vrot.lane.b32.xlu0 %v3134, 96
      %v3377 = vpop.permute.xlu0 %3376
      %3378 = vrot.lane.b32.xlu0 %v3135, 96
      %v3379 = vpop.permute.xlu0 %3378
      %3380 = vrot.lane.b32.xlu0 %v3136, 96
      %v3381 = vpop.permute.xlu0 %3380
      %3382 = vrot.lane.b32.xlu0 %v3137, 96
      %v3383 = vpop.permute.xlu0 %3382
      %3384 = vrot.lane.b32.xlu0 %v3138, 96
      %v3385 = vpop.permute.xlu0 %3384
      %3386 = vrot.lane.b32.xlu0 %v3139, 96
      %v3387 = vpop.permute.xlu0 %3386
      %3388 = vrot.lane.b32.xlu0 %v3140, 96
      %v3389 = vpop.permute.xlu0 %3388
      %3390 = vrot.lane.b32.xlu0 %v3141, 96
      %v3391 = vpop.permute.xlu0 %3390
      %3392 = vrot.lane.b32.xlu0 %v3142, 96
      %v3393 = vpop.permute.xlu0 %3392
      %3394 = vrot.lane.b32.xlu0 %v3143, 96
      %v3395 = vpop.permute.xlu0 %3394
      %3396 = vrot.lane.b32.xlu0 %v3144, 96
      %v3397 = vpop.permute.xlu0 %3396
      %3398 = vrot.lane.b32.xlu0 %v3145, 96
      %v3399 = vpop.permute.xlu0 %3398
      %3400 = vrot.lane.b32.xlu0 %v3146, 96
      %v3401 = vpop.permute.xlu0 %3400
      %3402 = vrot.lane.b32.xlu0 %v3147, 96
      %v3403 = vpop.permute.xlu0 %3402
      %3436 = vrot.lane.b32.xlu0 %v3164, 32
      %v3437 = vpop.permute.xlu0 %3436
      %3438 = vrot.lane.b32.xlu0 %v3165, 32
      %v3439 = vpop.permute.xlu0 %3438
      %3440 = vrot.lane.b32.xlu0 %v3166, 32
      %v3441 = vpop.permute.xlu0 %3440
      %3442 = vrot.lane.b32.xlu0 %v3167, 32
      %v3443 = vpop.permute.xlu0 %3442
      %3444 = vrot.lane.b32.xlu0 %v3168, 32
      %v3445 = vpop.permute.xlu0 %3444
      %3446 = vrot.lane.b32.xlu0 %v3169, 32
      %v3447 = vpop.permute.xlu0 %3446
      %3448 = vrot.lane.b32.xlu0 %v3170, 32
      %v3449 = vpop.permute.xlu0 %3448
      %3450 = vrot.lane.b32.xlu0 %v3171, 32
      %v3451 = vpop.permute.xlu0 %3450
      %3452 = vrot.lane.b32.xlu0 %v3172, 32
      %v3453 = vpop.permute.xlu0 %3452
      %3454 = vrot.lane.b32.xlu0 %v3173, 32
      %v3455 = vpop.permute.xlu0 %3454
      %3456 = vrot.lane.b32.xlu0 %v3174, 32
      %v3457 = vpop.permute.xlu0 %3456
      %3458 = vrot.lane.b32.xlu0 %v3175, 32
      %v3459 = vpop.permute.xlu0 %3458
      %3460 = vrot.lane.b32.xlu0 %v3176, 32
      %v3461 = vpop.permute.xlu0 %3460
      %3462 = vrot.lane.b32.xlu0 %v3177, 32
      %v3463 = vpop.permute.xlu0 %3462
      %3464 = vrot.lane.b32.xlu0 %v3178, 32
      %v3465 = vpop.permute.xlu0 %3464
      %3466 = vrot.lane.b32.xlu0 %v3179, 32
      %v3467 = vpop.permute.xlu0 %3466
      %3500 = vrot.lane.b32.xlu0 %v3180, 64
      %v3501 = vpop.permute.xlu0 %3500
      %3502 = vrot.lane.b32.xlu0 %v3181, 64
      %v3503 = vpop.permute.xlu0 %3502
      %3504 = vrot.lane.b32.xlu0 %v3182, 64
      %v3505 = vpop.permute.xlu0 %3504
      %3506 = vrot.lane.b32.xlu0 %v3183, 64
      %v3507 = vpop.permute.xlu0 %3506
      %3508 = vrot.lane.b32.xlu0 %v3184, 64
      %v3509 = vpop.permute.xlu0 %3508
      %3510 = vrot.lane.b32.xlu0 %v3185, 64
      %v3511 = vpop.permute.xlu0 %3510
      %3512 = vrot.lane.b32.xlu0 %v3186, 64
      %v3513 = vpop.permute.xlu0 %3512
      %3514 = vrot.lane.b32.xlu0 %v3187, 64
      %v3515 = vpop.permute.xlu0 %3514
      %3516 = vrot.lane.b32.xlu0 %v3188, 64
      %v3517 = vpop.permute.xlu0 %3516
      %3518 = vrot.lane.b32.xlu0 %v3189, 64
      %v3519 = vpop.permute.xlu0 %3518
      %3520 = vrot.lane.b32.xlu0 %v3190, 64
      %v3521 = vpop.permute.xlu0 %3520
      %3522 = vrot.lane.b32.xlu0 %v3191, 64
      %v3523 = vpop.permute.xlu0 %3522
      %3524 = vrot.lane.b32.xlu0 %v3192, 64
      %v3525 = vpop.permute.xlu0 %3524
      %3526 = vrot.lane.b32.xlu0 %v3193, 64
      %v3527 = vpop.permute.xlu0 %3526
      %3528 = vrot.lane.b32.xlu0 %v3194, 64
      %v3529 = vpop.permute.xlu0 %3528
      %3530 = vrot.lane.b32.xlu0 %v3195, 64
      %v3531 = vpop.permute.xlu0 %3530
      %3564 = vrot.lane.b32.xlu0 %v3196, 96
      %v3565 = vpop.permute.xlu0 %3564
      %3566 = vrot.lane.b32.xlu0 %v3197, 96
      %v3567 = vpop.permute.xlu0 %3566
      %3568 = vrot.lane.b32.xlu0 %v3198, 96
      %v3569 = vpop.permute.xlu0 %3568
      %3570 = vrot.lane.b32.xlu0 %v3199, 96
      %v3571 = vpop.permute.xlu0 %3570
      %3572 = vrot.lane.b32.xlu0 %v3200, 96
      %v3573 = vpop.permute.xlu0 %3572
      %3574 = vrot.lane.b32.xlu0 %v3201, 96
      %v3575 = vpop.permute.xlu0 %3574
      %3576 = vrot.lane.b32.xlu0 %v3202, 96
      %v3577 = vpop.permute.xlu0 %3576
      %3578 = vrot.lane.b32.xlu0 %v3203, 96
      %v3579 = vpop.permute.xlu0 %3578
      %3580 = vrot.lane.b32.xlu0 %v3204, 96
      %v3581 = vpop.permute.xlu0 %3580
      %3582 = vrot.lane.b32.xlu0 %v3205, 96
      %v3583 = vpop.permute.xlu0 %3582
      %3584 = vrot.lane.b32.xlu0 %v3206, 96
      %v3585 = vpop.permute.xlu0 %3584
      %3586 = vrot.lane.b32.xlu0 %v3207, 96
      %v3587 = vpop.permute.xlu0 %3586
      %3588 = vrot.lane.b32.xlu0 %v3208, 96
      %v3589 = vpop.permute.xlu0 %3588
      %3590 = vrot.lane.b32.xlu0 %v3209, 96
      %v3591 = vpop.permute.xlu0 %3590
      %3592 = vrot.lane.b32.xlu0 %v3210, 96
      %v3593 = vpop.permute.xlu0 %3592
      %3594 = vrot.lane.b32.xlu0 %v3211, 96
      %v3595 = vpop.permute.xlu0 %3594
      %v3612 = vsel %vm381, %v3084, %v3245
      %v3613 = vsel %vm381, %v3085, %v3247
      %v3614 = vsel %vm381, %v3086, %v3249
      %v3615 = vsel %vm381, %v3087, %v3251
      %v3616 = vsel %vm381, %v3088, %v3253
      %v3617 = vsel %vm381, %v3089, %v3255
      %v3618 = vsel %vm381, %v3090, %v3257
      %v3619 = vsel %vm381, %v3091, %v3259
      %v3620 = vsel %vm381, %v3092, %v3261
      %v3621 = vsel %vm381, %v3093, %v3263
      %v3622 = vsel %vm381, %v3094, %v3265
      %v3623 = vsel %vm381, %v3095, %v3267
      %v3624 = vsel %vm381, %v3096, %v3269
      %v3625 = vsel %vm381, %v3097, %v3271
      %v3626 = vsel %vm381, %v3098, %v3273
      %v3627 = vsel %vm381, %v3099, %v3275
      %v3628 = vsel %vm1106, %v3612, %v3309
      %v3629 = vsel %vm1106, %v3613, %v3311
      %v3630 = vsel %vm1106, %v3614, %v3313
      %v3631 = vsel %vm1106, %v3615, %v3315
      %v3632 = vsel %vm1106, %v3616, %v3317
      %v3633 = vsel %vm1106, %v3617, %v3319
      %v3634 = vsel %vm1106, %v3618, %v3321
      %v3635 = vsel %vm1106, %v3619, %v3323
      %v3636 = vsel %vm1106, %v3620, %v3325
      %v3637 = vsel %vm1106, %v3621, %v3327
      %v3638 = vsel %vm1106, %v3622, %v3329
      %v3639 = vsel %vm1106, %v3623, %v3331
      %v3640 = vsel %vm1106, %v3624, %v3333
      %v3641 = vsel %vm1106, %v3625, %v3335
      %v3642 = vsel %vm1106, %v3626, %v3337
      %v3643 = vsel %vm1106, %v3627, %v3339
      %v3644 = vsel %vm1123, %v3628, %v3373
      %v3645 = vsel %vm1123, %v3629, %v3375
      %v3646 = vsel %vm1123, %v3630, %v3377
      %v3647 = vsel %vm1123, %v3631, %v3379
      %v3648 = vsel %vm1123, %v3632, %v3381
      %v3649 = vsel %vm1123, %v3633, %v3383
      %v3650 = vsel %vm1123, %v3634, %v3385
      %v3651 = vsel %vm1123, %v3635, %v3387
      %v3652 = vsel %vm1123, %v3636, %v3389
      %v3653 = vsel %vm1123, %v3637, %v3391
      %v3654 = vsel %vm1123, %v3638, %v3393
      %v3655 = vsel %vm1123, %v3639, %v3395
      %v3656 = vsel %vm1123, %v3640, %v3397
      %v3657 = vsel %vm1123, %v3641, %v3399
      %v3658 = vsel %vm1123, %v3642, %v3401
      %v3659 = vsel %vm1123, %v3643, %v3403
      %v3660 = vsel %vm381, %v3148, %v3437
      %v3661 = vsel %vm381, %v3149, %v3439
      %v3662 = vsel %vm381, %v3150, %v3441
      %v3663 = vsel %vm381, %v3151, %v3443
      %v3664 = vsel %vm381, %v3152, %v3445
      %v3665 = vsel %vm381, %v3153, %v3447
      %v3666 = vsel %vm381, %v3154, %v3449
      %v3667 = vsel %vm381, %v3155, %v3451
      %v3668 = vsel %vm381, %v3156, %v3453
      %v3669 = vsel %vm381, %v3157, %v3455
      %v3670 = vsel %vm381, %v3158, %v3457
      %v3671 = vsel %vm381, %v3159, %v3459
      %v3672 = vsel %vm381, %v3160, %v3461
      %v3673 = vsel %vm381, %v3161, %v3463
      %v3674 = vsel %vm381, %v3162, %v3465
      %v3675 = vsel %vm381, %v3163, %v3467
      %v3676 = vsel %vm1106, %v3660, %v3501
      %v3677 = vsel %vm1106, %v3661, %v3503
      %v3678 = vsel %vm1106, %v3662, %v3505
      %v3679 = vsel %vm1106, %v3663, %v3507
      %v3680 = vsel %vm1106, %v3664, %v3509
      %v3681 = vsel %vm1106, %v3665, %v3511
      %v3682 = vsel %vm1106, %v3666, %v3513
      %v3683 = vsel %vm1106, %v3667, %v3515
      %v3684 = vsel %vm1106, %v3668, %v3517
      %v3685 = vsel %vm1106, %v3669, %v3519
      %v3686 = vsel %vm1106, %v3670, %v3521
      %v3687 = vsel %vm1106, %v3671, %v3523
      %v3688 = vsel %vm1106, %v3672, %v3525
      %v3689 = vsel %vm1106, %v3673, %v3527
      %v3690 = vsel %vm1106, %v3674, %v3529
      %v3691 = vsel %vm1106, %v3675, %v3531
      %v3692 = vsel %vm1123, %v3676, %v3565
      %v3693 = vsel %vm1123, %v3677, %v3567
      %v3694 = vsel %vm1123, %v3678, %v3569
      %v3695 = vsel %vm1123, %v3679, %v3571
      %v3696 = vsel %vm1123, %v3680, %v3573
      %v3697 = vsel %vm1123, %v3681, %v3575
      %v3698 = vsel %vm1123, %v3682, %v3577
      %v3699 = vsel %vm1123, %v3683, %v3579
      %v3700 = vsel %vm1123, %v3684, %v3581
      %v3701 = vsel %vm1123, %v3685, %v3583
      %v3702 = vsel %vm1123, %v3686, %v3585
      %v3703 = vsel %vm1123, %v3687, %v3587
      %v3704 = vsel %vm1123, %v3688, %v3589
      %v3705 = vsel %vm1123, %v3689, %v3591
      %v3706 = vsel %vm1123, %v3690, %v3593
      %v3707 = vsel %vm1123, %v3691, %v3595
      %v3708 = vpack.c.bf16 %v3645, %v3644
      %v3709 = vpack.c.bf16 %v3693, %v3692
      %v3710 = vpack.c.bf16 %v3213, %v3212
      %v3711 = vpack.c.bf16 %v3647, %v3646
      %v3712 = vpack.c.bf16 %v3695, %v3694
      %v3713 = vpack.c.bf16 %v3215, %v3214
      %v3714 = vpack.c.bf16 %v3649, %v3648
      %v3715 = vpack.c.bf16 %v3697, %v3696
      %v3716 = vpack.c.bf16 %v3217, %v3216
      %v3717 = vpack.c.bf16 %v3651, %v3650
      %v3718 = vpack.c.bf16 %v3699, %v3698
      %v3719 = vpack.c.bf16 %v3219, %v3218
      %v3720 = vpack.c.bf16 %v3653, %v3652
      %v3721 = vpack.c.bf16 %v3701, %v3700
      %v3722 = vpack.c.bf16 %v3221, %v3220
      %v3723 = vpack.c.bf16 %v3655, %v3654
      %v3724 = vpack.c.bf16 %v3703, %v3702
      %v3725 = vpack.c.bf16 %v3223, %v3222
      %v3726 = vpack.c.bf16 %v3657, %v3656
      %v3727 = vpack.c.bf16 %v3705, %v3704
      %v3728 = vpack.c.bf16 %v3225, %v3224
      %v3729 = vpack.c.bf16 %v3659, %v3658
      %v3730 = vpack.c.bf16 %v3707, %v3706
      %v3731 = vpack.c.bf16 %v3227, %v3226
      %v3732 = vld [vmem:[%s7] sm:$0xf]
      %v3733 = vld [vmem:[%s7 + $0x4] sm:$0xf]
      %v3734 = vld [vmem:[%s7 + $0x8] sm:$0xf]
      %v3735 = vld [vmem:[%s7 + $0xc] sm:$0xf]
      %v3736 = vld [vmem:[%s7 + $0x10] sm:$0xf]
      %v3737 = vld [vmem:[%s7 + $0x14] sm:$0xf]
      %v3738 = vld [vmem:[%s7 + $0x18] sm:$0xf]
      %v3739 = vld [vmem:[%s7 + $0x1c] sm:$0xf]
      %v3740 = vld [vmem:[%s7 + $0x20] sm:$0xf]
      %v3741 = vld [vmem:[%s7 + $0x24] sm:$0xf]
      %v3742 = vld [vmem:[%s7 + $0x28] sm:$0xf]
      %v3743 = vld [vmem:[%s7 + $0x2c] sm:$0xf]
      %v3744 = vld [vmem:[%s7 + $0x30] sm:$0xf]
      %v3745 = vld [vmem:[%s7 + $0x34] sm:$0xf]
      %v3746 = vld [vmem:[%s7 + $0x38] sm:$0xf]
      %v3747 = vld [vmem:[%s7 + $0x3c] sm:$0xf]
      %v3748 = vld [vmem:[%s7 + $0x40] sm:$0xf]
      %v3749 = vld [vmem:[%s7 + $0x44] sm:$0xf]
      %v3750 = vld [vmem:[%s7 + $0x48] sm:$0xf]
      %v3751 = vld [vmem:[%s7 + $0x4c] sm:$0xf]
      %v3752 = vld [vmem:[%s7 + $0x50] sm:$0xf]
      %v3753 = vld [vmem:[%s7 + $0x54] sm:$0xf]
      %v3754 = vld [vmem:[%s7 + $0x58] sm:$0xf]
      %v3755 = vld [vmem:[%s7 + $0x5c] sm:$0xf]
      %v3756 = vld [vmem:[%s7 + $0x60] sm:$0xf]
      %v3757 = vld [vmem:[%s7 + $0x64] sm:$0xf]
      %v3758 = vld [vmem:[%s7 + $0x68] sm:$0xf]
      %v3759 = vld [vmem:[%s7 + $0x6c] sm:$0xf]
      %v3760 = vld [vmem:[%s7 + $0x70] sm:$0xf]
      %v3761 = vld [vmem:[%s7 + $0x74] sm:$0xf]
      %v3762 = vld [vmem:[%s7 + $0x78] sm:$0xf]
      %v3763 = vld [vmem:[%s7 + $0x7c] sm:$0xf]
      %v3764 = vld [vmem:[%s7 + $0x80] sm:$0xf]
      %v3765 = vld [vmem:[%s7 + $0x84] sm:$0xf]
      %v3766 = vld [vmem:[%s7 + $0x88] sm:$0xf]
      %v3767 = vld [vmem:[%s7 + $0x8c] sm:$0xf]
      %v3768 = vld [vmem:[%s8] sm:$0x1]
      %v3770 = vlaneseq
      %v3771 = vshrl.u32 %v3770, 7
      %v3772 = vsub.s32 0, %v3771
      %v3773 = vrot.slane %v3768, %v3772
      %v3811 = vunpack.c.l.b16 %v3732
      %v3812 = vunpack.c.l.b16 %v3733
      %v3813 = vunpack.c.l.b16 %v3734
      %v3814 = vunpack.c.l.b16 %v3735
      %v3815 = vunpack.c.l.b16 %v3736
      %v3816 = vunpack.c.l.b16 %v3737
      %v3817 = vunpack.c.l.b16 %v3738
      %v3818 = vunpack.c.l.b16 %v3739
      %v3819 = vunpack.c.l.b16 %v3740
      %v3820 = vunpack.c.l.b16 %v3741
      %v3821 = vunpack.c.l.b16 %v3742
      %v3822 = vunpack.c.l.b16 %v3743
      %v3823 = vunpack.c.l.b16 %v3744
      %v3824 = vunpack.c.l.b16 %v3745
      %v3825 = vunpack.c.l.b16 %v3746
      %v3826 = vunpack.c.l.b16 %v3747
      %v3827 = vunpack.c.l.b16 %v3748
      %v3828 = vunpack.c.l.b16 %v3749
      %v3829 = vunpack.c.l.b16 %v3750
      %v3830 = vunpack.c.l.b16 %v3751
      %v3831 = vunpack.c.l.b16 %v3752
      %v3832 = vunpack.c.l.b16 %v3753
      %v3833 = vunpack.c.l.b16 %v3754
      %v3834 = vunpack.c.l.b16 %v3755
      %v3835 = vunpack.c.l.b16 %v3756
      %v3836 = vunpack.c.l.b16 %v3757
      %v3837 = vunpack.c.l.b16 %v3758
      %v3838 = vunpack.c.l.b16 %v3759
      %v3839 = vunpack.c.l.b16 %v3760
      %v3840 = vunpack.c.l.b16 %v3761
      %v3841 = vunpack.c.l.b16 %v3762
      %v3842 = vunpack.c.l.b16 %v3763
      %v3843 = vunpack.c.l.b16 %v3764
      %v3844 = vunpack.c.l.b16 %v3765
      %v3845 = vunpack.c.l.b16 %v3766
      %v3846 = vunpack.c.l.b16 %v3767
      %v3847 = vpack.c.b16 %v3812, %v3811
      %v3848 = vpack.c.b16 %v3814, %v3813
      %v3849 = vpack.c.b16 %v3816, %v3815
      %v3850 = vpack.c.b16 %v3818, %v3817
      %v3851 = vpack.c.b16 %v3820, %v3819
      %v3852 = vpack.c.b16 %v3822, %v3821
      %v3853 = vpack.c.b16 %v3824, %v3823
      %v3854 = vpack.c.b16 %v3826, %v3825
      %v3855 = vpack.c.b16 %v3828, %v3827
      %v3856 = vpack.c.b16 %v3830, %v3829
      %v3857 = vpack.c.b16 %v3832, %v3831
      %v3858 = vpack.c.b16 %v3834, %v3833
      %v3859 = vpack.c.b16 %v3836, %v3835
      %v3860 = vpack.c.b16 %v3838, %v3837
      %v3861 = vpack.c.b16 %v3840, %v3839
      %v3862 = vpack.c.b16 %v3842, %v3841
      %v3863 = vpack.c.b16 %v3844, %v3843
      %v3864 = vpack.c.b16 %v3846, %v3845
      %v3884 = vsel %vm381, %v3710, 0
      %v3887 = vsel %vm381, %v3713, 0
      %v3890 = vsel %vm381, %v3716, 0
      %v3893 = vsel %vm381, %v3719, 0
      %v3896 = vsel %vm381, %v3722, 0
      %v3899 = vsel %vm381, %v3725, 0
      %v3902 = vsel %vm381, %v3728, 0
      %v3905 = vsel %vm381, %v3731, 0
      %3907 = vmatprep.subr.bf16.mxu0 0
      %3908 = vmatpush1.bf16.msra.mxu0 %v3847
      %3909 = vmatprep.subr.bf16.mxu0 0
      %3910 = vmatpush1.bf16.msra.mxu0 %v3848
      %3911 = vmatprep.subr.bf16.mxu0 0
      %3912 = vmatpush1.bf16.msra.mxu0 %v3849
      %3913 = vmatprep.subr.bf16.mxu0 0
      %3914 = vmatpush1.bf16.msra.mxu0 %v3850
      %3915 = vmatprep.subr.bf16.mxu0 0
      %3916 = vmatpush1.bf16.msra.mxu0 %v3851
      %3917 = vmatprep.subr.bf16.mxu0 0
      %3918 = vmatpush1.bf16.msra.mxu0 %v3852
      %3919 = vmatprep.subr.bf16.mxu0 0
      %3920 = vmatpush1.bf16.msra.mxu0 %v3853
      %3921 = vmatprep.subr.bf16.mxu0 0
      %3922 = vmatpush1.bf16.msra.mxu0 %v3854
      %3923 = vmatprep.subr.bf16.mxu0 0
      %3924 = vmatpush1.bf16.msra.mxu0 %v3855
      %3925 = vmatprep.subr.bf16.mxu0 0
      %3926 = vmatpush1.bf16.msra.mxu0 %v3856
      %3927 = vmatprep.subr.bf16.mxu0 0
      %3928 = vmatpush1.bf16.msra.mxu0 %v3857
      %3929 = vmatprep.subr.bf16.mxu0 0
      %3930 = vmatpush1.bf16.msra.mxu0 %v3858
      %3931 = vmatprep.subr.bf16.mxu0 0
      %3932 = vmatpush1.bf16.msra.mxu0 %v3859
      %3933 = vmatprep.subr.bf16.mxu0 0
      %3934 = vmatpush1.bf16.msra.mxu0 %v3860
      %3935 = vmatprep.subr.bf16.mxu0 0
      %3936 = vmatpush1.bf16.msra.mxu0 %v3861
      %3937 = vmatprep.subr.bf16.mxu0 0
      %3938 = vmatpush1.bf16.msra.mxu0 %v3862
      %3939 = vmatprep.mubr.bf16.mxu0 %v3709
      %3940 = vmatmul.mubr.bf16.gmra.mrb[0].mxu0 %v3708
      %v3941 = vpop.f32.mrb[0].mxu0
      %v3942 = vadd.f32 %v3773, %v3941
      %v3943 = vpop.f32.mrb[0].mxu0
      %v3944 = vpop.f32.mrb[0].mxu0
      %v3945 = vadd.f32 %v3773, %v3944
      %v3946 = vpop.f32.mrb[0].mxu0
      %3947 = vmatprep.mubr.bf16.mxu0 %v3712
      %3948 = vmatmul.mubr.bf16.gmra.mrb[0].mxu0 %v3711
      %v3949 = vpop.f32.mrb[0].mxu0
      %v3950 = vadd.f32 %v3773, %v3949
      %v3951 = vpop.f32.mrb[0].mxu0
      %v3952 = vpop.f32.mrb[0].mxu0
      %v3953 = vadd.f32 %v3773, %v3952
      %v3954 = vpop.f32.mrb[0].mxu0
      %3955 = vmatprep.mubr.bf16.mxu0 %v3715
      %3956 = vmatmul.mubr.bf16.gmra.mrb[0].mxu0 %v3714
      %v3957 = vpop.f32.mrb[0].mxu0
      %v3958 = vadd.f32 %v3773, %v3957
      %v3959 = vpop.f32.mrb[0].mxu0
      %v3960 = vpop.f32.mrb[0].mxu0
      %v3961 = vadd.f32 %v3773, %v3960
      %v3962 = vpop.f32.mrb[0].mxu0
      %3963 = vmatprep.mubr.bf16.mxu0 %v3718
      %3964 = vmatmul.mubr.bf16.gmra.mrb[0].mxu0 %v3717
      %v3965 = vpop.f32.mrb[0].mxu0
      %v3966 = vadd.f32 %v3773, %v3965
      %v3967 = vpop.f32.mrb[0].mxu0
      %v3968 = vpop.f32.mrb[0].mxu0
      %v3969 = vadd.f32 %v3773, %v3968
      %v3970 = vpop.f32.mrb[0].mxu0
      %3971 = vmatprep.mubr.bf16.mxu0 %v3721
      %3972 = vmatmul.mubr.bf16.gmra.mrb[0].mxu0 %v3720
      %v3973 = vpop.f32.mrb[0].mxu0
      %v3974 = vadd.f32 %v3773, %v3973
      %v3975 = vpop.f32.mrb[0].mxu0
      %v3976 = vpop.f32.mrb[0].mxu0
      %v3977 = vadd.f32 %v3773, %v3976
      %v3978 = vpop.f32.mrb[0].mxu0
      %3979 = vmatprep.mubr.bf16.mxu0 %v3724
      %3980 = vmatmul.mubr.bf16.gmra.mrb[0].mxu0 %v3723
      %v3981 = vpop.f32.mrb[0].mxu0
      %v3982 = vadd.f32 %v3773, %v3981
      %v3983 = vpop.f32.mrb[0].mxu0
      %v3984 = vpop.f32.mrb[0].mxu0
      %v3985 = vadd.f32 %v3773, %v3984
      %v3986 = vpop.f32.mrb[0].mxu0
      %3987 = vmatprep.mubr.bf16.mxu0 %v3727
      %3988 = vmatmul.mubr.bf16.gmra.mrb[0].mxu0 %v3726
      %v3989 = vpop.f32.mrb[0].mxu0
      %v3990 = vadd.f32 %v3773, %v3989
      %v3991 = vpop.f32.mrb[0].mxu0
      %v3992 = vpop.f32.mrb[0].mxu0
      %v3993 = vadd.f32 %v3773, %v3992
      %v3994 = vpop.f32.mrb[0].mxu0
      %3995 = vmatprep.mubr.bf16.mxu0 %v3730
      %3996 = vmatmul.mubr.bf16.gmra.mrb[0].mxu0 %v3729
      %v3997 = vpop.f32.mrb[0].mxu0
      %v3998 = vadd.f32 %v3773, %v3997
      %v3999 = vpop.f32.mrb[0].mxu0
      %v4000 = vpop.f32.mrb[0].mxu0
      %v4001 = vadd.f32 %v3773, %v4000
      %v4002 = vpop.f32.mrb[0].mxu0
      %4003 = vdwg.mxu0
      %4004 = vmatprep.subr.bf16.mxu0 0
      %4005 = vmatpush1.bf16.msra.mxu0 %v3863
      %4006 = vmatprep.subr.bf16.mxu0 0
      %4007 = vmatpush1.bf16.msra.mxu0 %v3864
      %4008 = vmatprep.subr.bf16.mxu0 0
      %4009 = vmatpush1.bf16.msra.mxu0 0
      %4010 = vmatprep.subr.bf16.mxu0 0
      %4011 = vmatpush1.bf16.msra.mxu0 0
      %4012 = vmatprep.subr.bf16.mxu0 0
      %4013 = vmatpush1.bf16.msra.mxu0 0
      %4014 = vmatprep.subr.bf16.mxu0 0
      %4015 = vmatpush1.bf16.msra.mxu0 0
      %4016 = vmatprep.subr.bf16.mxu0 0
      %4017 = vmatpush1.bf16.msra.mxu0 0
      %4018 = vmatprep.subr.bf16.mxu0 0
      %4019 = vmatpush1.bf16.msra.mxu0 0
      %4020 = vmatprep.subr.bf16.mxu0 0
      %4021 = vmatpush1.bf16.msra.mxu0 0
      %4022 = vmatprep.subr.bf16.mxu0 0
      %4023 = vmatpush1.bf16.msra.mxu0 0
      %4024 = vmatprep.subr.bf16.mxu0 0
      %4025 = vmatpush1.bf16.msra.mxu0 0
      %4026 = vmatprep.subr.bf16.mxu0 0
      %4027 = vmatpush1.bf16.msra.mxu0 0
      %4028 = vmatprep.subr.bf16.mxu0 0
      %4029 = vmatpush1.bf16.msra.mxu0 0
      %4030 = vmatprep.subr.bf16.mxu0 0
      %4031 = vmatpush1.bf16.msra.mxu0 0
      %4032 = vmatprep.subr.bf16.mxu0 0
      %4033 = vmatpush1.bf16.msra.mxu0 0
      %4034 = vmatprep.subr.bf16.mxu0 0
      %4035 = vmatpush1.bf16.msra.mxu0 0
      %4036 = vmatprep.mubr.bf16.mxu0 0
      %4037 = vmatmul.mubr.bf16.gmra.mrb[0].mxu0 %v3884
      %v4038 = vpop.f32.mrb[0].mxu0
      %v4039 = vadd.f32 %v3942, %v4038
      %v4040 = vpop.f32.mrb[0].mxu0
      %v4041 = vpop.f32.mrb[0].mxu0
      %v4042 = vadd.f32 %v3945, %v4041
      %v4043 = vpop.f32.mrb[0].mxu0
      %4044 = vmatprep.mubr.bf16.mxu0 0
      %4045 = vmatmul.mubr.bf16.gmra.mrb[0].mxu0 %v3887
      %v4046 = vpop.f32.mrb[0].mxu0
      %v4047 = vadd.f32 %v3950, %v4046
      %v4048 = vpop.f32.mrb[0].mxu0
      %v4049 = vpop.f32.mrb[0].mxu0
      %v4050 = vadd.f32 %v3953, %v4049
      %v4051 = vpop.f32.mrb[0].mxu0
      %4052 = vmatprep.mubr.bf16.mxu0 0
      %4053 = vmatmul.mubr.bf16.gmra.mrb[0].mxu0 %v3890
      %v4054 = vpop.f32.mrb[0].mxu0
      %v4055 = vadd.f32 %v3958, %v4054
      %v4056 = vpop.f32.mrb[0].mxu0
      %v4057 = vpop.f32.mrb[0].mxu0
      %v4058 = vadd.f32 %v3961, %v4057
      %v4059 = vpop.f32.mrb[0].mxu0
      %4060 = vmatprep.mubr.bf16.mxu0 0
      %4061 = vmatmul.mubr.bf16.gmra.mrb[0].mxu0 %v3893
      %v4062 = vpop.f32.mrb[0].mxu0
      %v4063 = vadd.f32 %v3966, %v4062
      %v4064 = vpop.f32.mrb[0].mxu0
      %v4065 = vpop.f32.mrb[0].mxu0
      %v4066 = vadd.f32 %v3969, %v4065
      %v4067 = vpop.f32.mrb[0].mxu0
      %4068 = vmatprep.mubr.bf16.mxu0 0
      %4069 = vmatmul.mubr.bf16.gmra.mrb[0].mxu0 %v3896
      %v4070 = vpop.f32.mrb[0].mxu0
      %v4071 = vadd.f32 %v3974, %v4070
      %v4072 = vpop.f32.mrb[0].mxu0
      %v4073 = vpop.f32.mrb[0].mxu0
      %v4074 = vadd.f32 %v3977, %v4073
      %v4075 = vpop.f32.mrb[0].mxu0
      %4076 = vmatprep.mubr.bf16.mxu0 0
      %4077 = vmatmul.mubr.bf16.gmra.mrb[0].mxu0 %v3899
      %v4078 = vpop.f32.mrb[0].mxu0
      %v4079 = vadd.f32 %v3982, %v4078
      %v4080 = vpop.f32.mrb[0].mxu0
      %v4081 = vpop.f32.mrb[0].mxu0
      %v4082 = vadd.f32 %v3985, %v4081
      %v4083 = vpop.f32.mrb[0].mxu0
      %4084 = vmatprep.mubr.bf16.mxu0 0
      %4085 = vmatmul.mubr.bf16.gmra.mrb[0].mxu0 %v3902
      %v4086 = vpop.f32.mrb[0].mxu0
      %v4087 = vadd.f32 %v3990, %v4086
      %v4088 = vpop.f32.mrb[0].mxu0
      %v4089 = vpop.f32.mrb[0].mxu0
      %v4090 = vadd.f32 %v3993, %v4089
      %v4091 = vpop.f32.mrb[0].mxu0
      %4092 = vmatprep.mubr.bf16.mxu0 0
      %4093 = vmatmul.mubr.bf16.gmra.mrb[0].mxu0 %v3905
      %v4094 = vpop.f32.mrb[0].mxu0
      %v4095 = vadd.f32 %v3998, %v4094
      %v4096 = vpop.f32.mrb[0].mxu0
      %v4097 = vpop.f32.mrb[0].mxu0
      %v4098 = vadd.f32 %v4001, %v4097
      %v4099 = vpop.f32.mrb[0].mxu0
      %4100 = vdwg.mxu0
      %v4101 = vmax.f32 %v4039, 0.0
      %v4102 = vmax.f32 %v4042, 0.0
      %v4103 = vmax.f32 %v4047, 0.0
      %v4104 = vmax.f32 %v4050, 0.0
      %v4105 = vmax.f32 %v4055, 0.0
      %v4106 = vmax.f32 %v4058, 0.0
      %v4107 = vmax.f32 %v4063, 0.0
      %v4108 = vmax.f32 %v4066, 0.0
      %v4109 = vmax.f32 %v4071, 0.0
      %v4110 = vmax.f32 %v4074, 0.0
      %v4111 = vmax.f32 %v4079, 0.0
      %v4112 = vmax.f32 %v4082, 0.0
      %v4113 = vmax.f32 %v4087, 0.0
      %v4114 = vmax.f32 %v4090, 0.0
      %v4115 = vmax.f32 %v4095, 0.0
      %v4116 = vmax.f32 %v4098, 0.0
      %v4117 = vmul.f32 %v3052, 0.17677669
      %v4118 = vmul.f32 %v3053, 0.17677669
      %v4119 = vmul.f32 %v3054, 0.17677669
      %v4120 = vmul.f32 %v3055, 0.17677669
      %v4121 = vmul.f32 %v3056, 0.17677669
      %v4122 = vmul.f32 %v3057, 0.17677669
      %v4123 = vmul.f32 %v3058, 0.17677669
      %v4124 = vmul.f32 %v3059, 0.17677669
      %v4125 = vmul.f32 %v3060, 0.17677669
      %v4126 = vmul.f32 %v3061, 0.17677669
      %v4127 = vmul.f32 %v3062, 0.17677669
      %v4128 = vmul.f32 %v3063, 0.17677669
      %v4129 = vmul.f32 %v3064, 0.17677669
      %v4130 = vmul.f32 %v3065, 0.17677669
      %v4131 = vmul.f32 %v3066, 0.17677669
      %v4132 = vmul.f32 %v3067, 0.17677669
      %v4133 = vpack.c.bf16 %v4118, %v4117
      %v4134 = vpack.c.bf16 %v4120, %v4119
      %v4135 = vpack.c.bf16 %v4122, %v4121
      %v4136 = vpack.c.bf16 %v4124, %v4123
      %v4137 = vpack.c.bf16 %v4126, %v4125
      %v4138 = vpack.c.bf16 %v4128, %v4127
      %v4139 = vpack.c.bf16 %v4130, %v4129
      %v4140 = vpack.c.bf16 %v4132, %v4131
      %v4141 = vpack.c.bf16 %v4102, %v4101
      %v4142 = vpack.c.bf16 %v4104, %v4103
      %v4143 = vpack.c.bf16 %v4106, %v4105
      %v4144 = vpack.c.bf16 %v4108, %v4107
      %v4145 = vpack.c.bf16 %v4110, %v4109
      %v4146 = vpack.c.bf16 %v4112, %v4111
      %v4147 = vpack.c.bf16 %v4114, %v4113
      %v4148 = vpack.c.bf16 %v4116, %v4115
      %v4150 = vsel %vm381, %v4133, 0
      %v4153 = vsel %vm381, %v4134, 0
      %v4156 = vsel %vm381, %v4135, 0
      %v4159 = vsel %vm381, %v4136, 0
      %v4162 = vsel %vm381, %v4141, 0
      %v4165 = vsel %vm381, %v4142, 0
      %v4168 = vsel %vm381, %v4143, 0
      %v4171 = vsel %vm381, %v4144, 0
      %4173 = vmatprep.subr.bf16.mxu0 0
      %4174 = vmatpush1.bf16.xpose.msra.mxu0 %v4162
      %4175 = vmatprep.subr.bf16.mxu0 0
      %4176 = vmatpush1.bf16.xpose.msra.mxu0 %v4165
      %4177 = vmatprep.subr.bf16.mxu0 0
      %4178 = vmatpush1.bf16.xpose.msra.mxu0 %v4168
      %4179 = vmatprep.subr.bf16.mxu0 0
      %4180 = vmatpush1.bf16.xpose.msra.mxu0 %v4171
      %4181 = vmatprep.subr.bf16.mxu0 0
      %4182 = vmatpush1.bf16.xpose.msra.mxu0 0
      %4183 = vmatprep.subr.bf16.mxu0 0
      %4184 = vmatpush1.bf16.xpose.msra.mxu0 0
      %4185 = vmatprep.subr.bf16.mxu0 0
      %4186 = vmatpush1.bf16.xpose.msra.mxu0 0
      %4187 = vmatprep.subr.bf16.mxu0 0
      %4188 = vmatpush1.bf16.xpose.msra.mxu0 0
      %4189 = vmatprep.subr.bf16.mxu0 0
      %4190 = vmatpush1.bf16.xpose.msra.mxu0 0
      %4191 = vmatprep.subr.bf16.mxu0 0
      %4192 = vmatpush1.bf16.xpose.msra.mxu0 0
      %4193 = vmatprep.subr.bf16.mxu0 0
      %4194 = vmatpush1.bf16.xpose.msra.mxu0 0
      %4195 = vmatprep.subr.bf16.mxu0 0
      %4196 = vmatpush1.bf16.xpose.msra.mxu0 0
      %4197 = vmatprep.subr.bf16.mxu0 0
      %4198 = vmatpush1.bf16.xpose.msra.mxu0 0
      %4199 = vmatprep.subr.bf16.mxu0 0
      %4200 = vmatpush1.bf16.xpose.msra.mxu0 0
      %4201 = vmatprep.subr.bf16.mxu0 0
      %4202 = vmatpush1.bf16.xpose.msra.mxu0 0
      %4203 = vmatprep.subr.bf16.mxu0 0
      %4204 = vmatpush1.bf16.xpose.msra.mxu0 0
      %4205 = vmatprep.mubr.bf16.mxu0 0
      %4206 = vmatmul.mubr.bf16.gmra.mrb[0].mxu0 %v4150
      %v4207 = vpop.f32.mrb[0].mxu0
      %v4208 = vadd.f32 0.0, %v4207
      %v4209 = vpop.f32.mrb[0].mxu0
      %v4210 = vpop.f32.mrb[0].mxu0
      %v4211 = vadd.f32 0.0, %v4210
      %v4212 = vpop.f32.mrb[0].mxu0
      %4213 = vmatprep.mubr.bf16.mxu0 0
      %4214 = vmatmul.mubr.bf16.gmra.mrb[0].mxu0 %v4153
      %v4215 = vpop.f32.mrb[0].mxu0
      %v4216 = vadd.f32 0.0, %v4215
      %v4217 = vpop.f32.mrb[0].mxu0
      %v4218 = vpop.f32.mrb[0].mxu0
      %v4219 = vadd.f32 0.0, %v4218
      %v4220 = vpop.f32.mrb[0].mxu0
      %4221 = vmatprep.mubr.bf16.mxu0 0
      %4222 = vmatmul.mubr.bf16.gmra.mrb[0].mxu0 %v4156
      %v4223 = vpop.f32.mrb[0].mxu0
      %v4224 = vadd.f32 0.0, %v4223
      %v4225 = vpop.f32.mrb[0].mxu0
      %v4226 = vpop.f32.mrb[0].mxu0
      %v4227 = vadd.f32 0.0, %v4226
      %v4228 = vpop.f32.mrb[0].mxu0
      %4229 = vmatprep.mubr.bf16.mxu0 0
      %4230 = vmatmul.mubr.bf16.gmra.mrb[0].mxu0 %v4159
      %v4231 = vpop.f32.mrb[0].mxu0
      %v4232 = vadd.f32 0.0, %v4231
      %v4233 = vpop.f32.mrb[0].mxu0
      %v4234 = vpop.f32.mrb[0].mxu0
      %v4235 = vadd.f32 0.0, %v4234
      %v4236 = vpop.f32.mrb[0].mxu0
      %4237 = vdwg.mxu0
      %v4239 = vsel %vm381, %v4137, 0
      %v4242 = vsel %vm381, %v4138, 0
      %v4245 = vsel %vm381, %v4139, 0
      %v4248 = vsel %vm381, %v4140, 0
      %v4251 = vsel %vm381, %v4145, 0
      %v4254 = vsel %vm381, %v4146, 0
      %v4257 = vsel %vm381, %v4147, 0
      %v4260 = vsel %vm381, %v4148, 0
      %4262 = vmatprep.subr.bf16.mxu0 0
      %4263 = vmatpush1.bf16.xpose.msra.mxu0 %v4251
      %4264 = vmatprep.subr.bf16.mxu0 0
      %4265 = vmatpush1.bf16.xpose.msra.mxu0 %v4254
      %4266 = vmatprep.subr.bf16.mxu0 0
      %4267 = vmatpush1.bf16.xpose.msra.mxu0 %v4257
      %4268 = vmatprep.subr.bf16.mxu0 0
      %4269 = vmatpush1.bf16.xpose.msra.mxu0 %v4260
      %4270 = vmatprep.subr.bf16.mxu0 0
      %4271 = vmatpush1.bf16.xpose.msra.mxu0 0
      %4272 = vmatprep.subr.bf16.mxu0 0
      %4273 = vmatpush1.bf16.xpose.msra.mxu0 0
      %4274 = vmatprep.subr.bf16.mxu0 0
      %4275 = vmatpush1.bf16.xpose.msra.mxu0 0
      %4276 = vmatprep.subr.bf16.mxu0 0
      %4277 = vmatpush1.bf16.xpose.msra.mxu0 0
      %4278 = vmatprep.subr.bf16.mxu0 0
      %4279 = vmatpush1.bf16.xpose.msra.mxu0 0
      %4280 = vmatprep.subr.bf16.mxu0 0
      %4281 = vmatpush1.bf16.xpose.msra.mxu0 0
      %4282 = vmatprep.subr.bf16.mxu0 0
      %4283 = vmatpush1.bf16.xpose.msra.mxu0 0
      %4284 = vmatprep.subr.bf16.mxu0 0
      %4285 = vmatpush1.bf16.xpose.msra.mxu0 0
      %4286 = vmatprep.subr.bf16.mxu0 0
      %4287 = vmatpush1.bf16.xpose.msra.mxu0 0
      %4288 = vmatprep.subr.bf16.mxu0 0
      %4289 = vmatpush1.bf16.xpose.msra.mxu0 0
      %4290 = vmatprep.subr.bf16.mxu0 0
      %4291 = vmatpush1.bf16.xpose.msra.mxu0 0
      %4292 = vmatprep.subr.bf16.mxu0 0
      %4293 = vmatpush1.bf16.xpose.msra.mxu0 0
      %4294 = vmatprep.mubr.bf16.mxu0 0
      %4295 = vmatmul.mubr.bf16.gmra.mrb[0].mxu0 %v4239
      %v4296 = vpop.f32.mrb[0].mxu0
      %v4297 = vadd.f32 0.0, %v4296
      %v4298 = vpop.f32.mrb[0].mxu0
      %v4299 = vpop.f32.mrb[0].mxu0
      %v4300 = vadd.f32 0.0, %v4299
      %v4301 = vpop.f32.mrb[0].mxu0
      %4302 = vmatprep.mubr.bf16.mxu0 0
      %4303 = vmatmul.mubr.bf16.gmra.mrb[0].mxu0 %v4242
      %v4304 = vpop.f32.mrb[0].mxu0
      %v4305 = vadd.f32 0.0, %v4304
      %v4306 = vpop.f32.mrb[0].mxu0
      %v4307 = vpop.f32.mrb[0].mxu0
      %v4308 = vadd.f32 0.0, %v4307
      %v4309 = vpop.f32.mrb[0].mxu0
      %4310 = vmatprep.mubr.bf16.mxu0 0
      %4311 = vmatmul.mubr.bf16.gmra.mrb[0].mxu0 %v4245
      %v4312 = vpop.f32.mrb[0].mxu0
      %v4313 = vadd.f32 0.0, %v4312
      %v4314 = vpop.f32.mrb[0].mxu0
      %v4315 = vpop.f32.mrb[0].mxu0
      %v4316 = vadd.f32 0.0, %v4315
      %v4317 = vpop.f32.mrb[0].mxu0
      %4318 = vmatprep.mubr.bf16.mxu0 0
      %4319 = vmatmul.mubr.bf16.gmra.mrb[0].mxu0 %v4248
      %v4320 = vpop.f32.mrb[0].mxu0
      %v4321 = vadd.f32 0.0, %v4320
      %v4322 = vpop.f32.mrb[0].mxu0
      %v4323 = vpop.f32.mrb[0].mxu0
      %v4324 = vadd.f32 0.0, %v4323
      %v4325 = vpop.f32.mrb[0].mxu0
      %4326 = vdwg.mxu0
      %v4327 = vsel %vm1106, %v4208, -inf
      %4328 = vmax.xlane.f32.xlu0 %v4327
      %v4329 = vpop.xlane.xlu0 %4328
      %v4330 = vsel %vm1106, %v4211, -inf
      %4331 = vmax.xlane.f32.xlu0 %v4330
      %v4332 = vpop.xlane.xlu0 %4331
      %v4333 = vsel %vm1106, %v4216, -inf
      %4334 = vmax.xlane.f32.xlu0 %v4333
      %v4335 = vpop.xlane.xlu0 %4334
      %v4336 = vsel %vm1106, %v4219, -inf
      %4337 = vmax.xlane.f32.xlu0 %v4336
      %v4338 = vpop.xlane.xlu0 %4337
      %v4339 = vsel %vm1106, %v4224, -inf
      %4340 = vmax.xlane.f32.xlu0 %v4339
      %v4341 = vpop.xlane.xlu0 %4340
      %v4342 = vsel %vm1106, %v4227, -inf
      %4343 = vmax.xlane.f32.xlu0 %v4342
      %v4344 = vpop.xlane.xlu0 %4343
      %v4345 = vsel %vm1106, %v4232, -inf
      %4346 = vmax.xlane.f32.xlu0 %v4345
      %v4347 = vpop.xlane.xlu0 %4346
      %v4348 = vsel %vm1106, %v4235, -inf
      %4349 = vmax.xlane.f32.xlu0 %v4348
      %v4350 = vpop.xlane.xlu0 %4349
      %v4351 = vsel %vm1106, %v4297, -inf
      %4352 = vmax.xlane.f32.xlu0 %v4351
      %v4353 = vpop.xlane.xlu0 %4352
      %v4354 = vsel %vm1106, %v4300, -inf
      %4355 = vmax.xlane.f32.xlu0 %v4354
      %v4356 = vpop.xlane.xlu0 %4355
      %v4357 = vsel %vm1106, %v4305, -inf
      %4358 = vmax.xlane.f32.xlu0 %v4357
      %v4359 = vpop.xlane.xlu0 %4358
      %v4360 = vsel %vm1106, %v4308, -inf
      %4361 = vmax.xlane.f32.xlu0 %v4360
      %v4362 = vpop.xlane.xlu0 %4361
      %v4363 = vsel %vm1106, %v4313, -inf
      %4364 = vmax.xlane.f32.xlu0 %v4363
      %v4365 = vpop.xlane.xlu0 %4364
      %v4366 = vsel %vm1106, %v4316, -inf
      %4367 = vmax.xlane.f32.xlu0 %v4366
      %v4368 = vpop.xlane.xlu0 %4367
      %v4369 = vsel %vm1106, %v4321, -inf
      %4370 = vmax.xlane.f32.xlu0 %v4369
      %v4371 = vpop.xlane.xlu0 %4370
      %v4372 = vsel %vm1106, %v4324, -inf
      %4373 = vmax.xlane.f32.xlu0 %v4372
      %v4374 = vpop.xlane.xlu0 %4373
      %v4375 = vsub.f32 %v4208, %v4329
      %v4376 = vsub.f32 %v4211, %v4332
      %v4377 = vsub.f32 %v4216, %v4335
      %v4378 = vsub.f32 %v4219, %v4338
      %v4379 = vsub.f32 %v4224, %v4341
      %v4380 = vsub.f32 %v4227, %v4344
      %v4381 = vsub.f32 %v4232, %v4347
      %v4382 = vsub.f32 %v4235, %v4350
      %v4383 = vsub.f32 %v4297, %v4353
      %v4384 = vsub.f32 %v4300, %v4356
      %v4385 = vsub.f32 %v4305, %v4359
      %v4386 = vsub.f32 %v4308, %v4362
      %v4387 = vsub.f32 %v4313, %v4365
      %v4388 = vsub.f32 %v4316, %v4368
      %v4389 = vsub.f32 %v4321, %v4371
      %v4390 = vsub.f32 %v4324, %v4374
      %v4391 = vmul.f32 %v4375, 1.442695
      %v4392 = vpow.pop %v4391
      %v4393 = vmul.f32 %v4376, 1.442695
      %v4394 = vpow.pop %v4393
      %v4395 = vmul.f32 %v4377, 1.442695
      %v4396 = vpow.pop %v4395
      %v4397 = vmul.f32 %v4378, 1.442695
      %v4398 = vpow.pop %v4397
      %v4399 = vmul.f32 %v4379, 1.442695
      %v4400 = vpow.pop %v4399
      %v4401 = vmul.f32 %v4380, 1.442695
      %v4402 = vpow.pop %v4401
      %v4403 = vmul.f32 %v4381, 1.442695
      %v4404 = vpow.pop %v4403
      %v4405 = vmul.f32 %v4382, 1.442695
      %v4406 = vpow.pop %v4405
      %v4407 = vmul.f32 %v4383, 1.442695
      %v4408 = vpow.pop %v4407
      %v4409 = vmul.f32 %v4384, 1.442695
      %v4410 = vpow.pop %v4409
      %v4411 = vmul.f32 %v4385, 1.442695
      %v4412 = vpow.pop %v4411
      %v4413 = vmul.f32 %v4386, 1.442695
      %v4414 = vpow.pop %v4413
      %v4415 = vmul.f32 %v4387, 1.442695
      %v4416 = vpow.pop %v4415
      %v4417 = vmul.f32 %v4388, 1.442695
      %v4418 = vpow.pop %v4417
      %v4419 = vmul.f32 %v4389, 1.442695
      %v4420 = vpow.pop %v4419
      %v4421 = vmul.f32 %v4390, 1.442695
      %v4422 = vpow.pop %v4421
      %v4423 = vsel %vm1106, %v4392, 0.0
      %4424 = vadd.xlane.f32.xlu0 %v4423
      %v4425 = vpop.xlane.xlu0 %4424
      %v4426 = vsel %vm1106, %v4394, 0.0
      %4427 = vadd.xlane.f32.xlu0 %v4426
      %v4428 = vpop.xlane.xlu0 %4427
      %v4429 = vsel %vm1106, %v4396, 0.0
      %4430 = vadd.xlane.f32.xlu0 %v4429
      %v4431 = vpop.xlane.xlu0 %4430
      %v4432 = vsel %vm1106, %v4398, 0.0
      %4433 = vadd.xlane.f32.xlu0 %v4432
      %v4434 = vpop.xlane.xlu0 %4433
      %v4435 = vsel %vm1106, %v4400, 0.0
      %4436 = vadd.xlane.f32.xlu0 %v4435
      %v4437 = vpop.xlane.xlu0 %4436
      %v4438 = vsel %vm1106, %v4402, 0.0
      %4439 = vadd.xlane.f32.xlu0 %v4438
      %v4440 = vpop.xlane.xlu0 %4439
      %v4441 = vsel %vm1106, %v4404, 0.0
      %4442 = vadd.xlane.f32.xlu0 %v4441
      %v4443 = vpop.xlane.xlu0 %4442
      %v4444 = vsel %vm1106, %v4406, 0.0
      %4445 = vadd.xlane.f32.xlu0 %v4444
      %v4446 = vpop.xlane.xlu0 %4445
      %v4447 = vsel %vm1106, %v4408, 0.0
      %4448 = vadd.xlane.f32.xlu0 %v4447
      %v4449 = vpop.xlane.xlu0 %4448
      %v4450 = vsel %vm1106, %v4410, 0.0
      %4451 = vadd.xlane.f32.xlu0 %v4450
      %v4452 = vpop.xlane.xlu0 %4451
      %v4453 = vsel %vm1106, %v4412, 0.0
      %4454 = vadd.xlane.f32.xlu0 %v4453
      %v4455 = vpop.xlane.xlu0 %4454
      %v4456 = vsel %vm1106, %v4414, 0.0
      %4457 = vadd.xlane.f32.xlu0 %v4456
      %v4458 = vpop.xlane.xlu0 %4457
      %v4459 = vsel %vm1106, %v4416, 0.0
      %4460 = vadd.xlane.f32.xlu0 %v4459
      %v4461 = vpop.xlane.xlu0 %4460
      %v4462 = vsel %vm1106, %v4418, 0.0
      %4463 = vadd.xlane.f32.xlu0 %v4462
      %v4464 = vpop.xlane.xlu0 %4463
      %v4465 = vsel %vm1106, %v4420, 0.0
      %4466 = vadd.xlane.f32.xlu0 %v4465
      %v4467 = vpop.xlane.xlu0 %4466
      %v4468 = vsel %vm1106, %v4422, 0.0
      %4469 = vadd.xlane.f32.xlu0 %v4468
      %v4470 = vpop.xlane.xlu0 %4469
      %v4471 = vrcp.pop %v4425
      %v4472 = vrcp.pop %v4428
      %v4473 = vrcp.pop %v4431
      %v4474 = vrcp.pop %v4434
      %v4475 = vrcp.pop %v4437
      %v4476 = vrcp.pop %v4440
      %v4477 = vrcp.pop %v4443
      %v4478 = vrcp.pop %v4446
      %v4479 = vrcp.pop %v4449
      %v4480 = vrcp.pop %v4452
      %v4481 = vrcp.pop %v4455
      %v4482 = vrcp.pop %v4458
      %v4483 = vrcp.pop %v4461
      %v4484 = vrcp.pop %v4464
      %v4485 = vrcp.pop %v4467
      %v4486 = vrcp.pop %v4470
      %v4487 = vmul.f32 %v4392, %v4471
      %v4488 = vmul.f32 %v4394, %v4472
      %v4489 = vmul.f32 %v4396, %v4473
      %v4490 = vmul.f32 %v4398, %v4474
      %v4491 = vmul.f32 %v4400, %v4475
      %v4492 = vmul.f32 %v4402, %v4476
      %v4493 = vmul.f32 %v4404, %v4477
      %v4494 = vmul.f32 %v4406, %v4478
      %v4495 = vmul.f32 %v4408, %v4479
      %v4496 = vmul.f32 %v4410, %v4480
      %v4497 = vmul.f32 %v4412, %v4481
      %v4498 = vmul.f32 %v4414, %v4482
      %v4499 = vmul.f32 %v4416, %v4483
      %v4500 = vmul.f32 %v4418, %v4484
      %v4501 = vmul.f32 %v4420, %v4485
      %v4502 = vmul.f32 %v4422, %v4486
      %v4503 = vpack.c.bf16 %v4488, %v4487
      %v4504 = vpack.c.bf16 %v4490, %v4489
      %v4505 = vpack.c.bf16 %v4492, %v4491
      %v4506 = vpack.c.bf16 %v4494, %v4493
      %v4507 = vpack.c.bf16 %v4496, %v4495
      %v4508 = vpack.c.bf16 %v4498, %v4497
      %v4509 = vpack.c.bf16 %v4500, %v4499
      %v4510 = vpack.c.bf16 %v4502, %v4501
      %4515 = vrot.lane.b32.xlu0 %v4141, 96
      %v4516 = vpop.permute.xlu0 %4515
      %4517 = vrot.lane.b32.xlu0 %v4142, 96
      %v4518 = vpop.permute.xlu0 %4517
      %4519 = vrot.lane.b32.xlu0 %v4143, 96
      %v4520 = vpop.permute.xlu0 %4519
      %4521 = vrot.lane.b32.xlu0 %v4144, 96
      %v4522 = vpop.permute.xlu0 %4521
      %v4528 = vsel %vm1106, %v4503, 0
      %v4531 = vsel %vm1106, %v4504, 0
      %v4534 = vsel %vm1106, %v4505, 0
      %v4537 = vsel %vm1106, %v4506, 0
      %4539 = vmatprep.subr.bf16.mxu0 0
      %4540 = vmatpush1.bf16.msra.mxu0 %v4516
      %4541 = vmatprep.subr.bf16.mxu0 0
      %4542 = vmatpush1.bf16.msra.mxu0 %v4518
      %4543 = vmatprep.subr.bf16.mxu0 0
      %4544 = vmatpush1.bf16.msra.mxu0 %v4520
      %4545 = vmatprep.subr.bf16.mxu0 0
      %4546 = vmatpush1.bf16.msra.mxu0 %v4522
      %4547 = vmatprep.subr.bf16.mxu0 0
      %4548 = vmatpush1.bf16.msra.mxu0 0
      %4549 = vmatprep.subr.bf16.mxu0 0
      %4550 = vmatpush1.bf16.msra.mxu0 0
      %4551 = vmatprep.subr.bf16.mxu0 0
      %4552 = vmatpush1.bf16.msra.mxu0 0
      %4553 = vmatprep.subr.bf16.mxu0 0
      %4554 = vmatpush1.bf16.msra.mxu0 0
      %4555 = vmatprep.subr.bf16.mxu0 0
      %4556 = vmatpush1.bf16.msra.mxu0 0
      %4557 = vmatprep.subr.bf16.mxu0 0
      %4558 = vmatpush1.bf16.msra.mxu0 0
      %4559 = vmatprep.subr.bf16.mxu0 0
      %4560 = vmatpush1.bf16.msra.mxu0 0
      %4561 = vmatprep.subr.bf16.mxu0 0
      %4562 = vmatpush1.bf16.msra.mxu0 0
      %4563 = vmatprep.subr.bf16.mxu0 0
      %4564 = vmatpush1.bf16.msra.mxu0 0
      %4565 = vmatprep.subr.bf16.mxu0 0
      %4566 = vmatpush1.bf16.msra.mxu0 0
      %4567 = vmatprep.subr.bf16.mxu0 0
      %4568 = vmatpush1.bf16.msra.mxu0 0
      %4569 = vmatprep.subr.bf16.mxu0 0
      %4570 = vmatpush1.bf16.msra.mxu0 0
      %4571 = vmatprep.mubr.bf16.mxu0 0
      %4572 = vmatmul.mubr.bf16.gmra.mrb[0].mxu0 %v4528
      %v4573 = vpop.f32.mrb[0].mxu0
      %v4574 = vadd.f32 0.0, %v4573
      %v4575 = vpop.f32.mrb[0].mxu0
      %v4576 = vpop.f32.mrb[0].mxu0
      %v4577 = vadd.f32 0.0, %v4576
      %v4578 = vpop.f32.mrb[0].mxu0
      %4579 = vmatprep.mubr.bf16.mxu0 0
      %4580 = vmatmul.mubr.bf16.gmra.mrb[0].mxu0 %v4531
      %v4581 = vpop.f32.mrb[0].mxu0
      %v4582 = vadd.f32 0.0, %v4581
      %v4583 = vpop.f32.mrb[0].mxu0
      %v4584 = vpop.f32.mrb[0].mxu0
      %v4585 = vadd.f32 0.0, %v4584
      %v4586 = vpop.f32.mrb[0].mxu0
      %4587 = vmatprep.mubr.bf16.mxu0 0
      %4588 = vmatmul.mubr.bf16.gmra.mrb[0].mxu0 %v4534
      %v4589 = vpop.f32.mrb[0].mxu0
      %v4590 = vadd.f32 0.0, %v4589
      %v4591 = vpop.f32.mrb[0].mxu0
      %v4592 = vpop.f32.mrb[0].mxu0
      %v4593 = vadd.f32 0.0, %v4592
      %v4594 = vpop.f32.mrb[0].mxu0
      %4595 = vmatprep.mubr.bf16.mxu0 0
      %4596 = vmatmul.mubr.bf16.gmra.mrb[0].mxu0 %v4537
      %v4597 = vpop.f32.mrb[0].mxu0
      %v4598 = vadd.f32 0.0, %v4597
      %v4599 = vpop.f32.mrb[0].mxu0
      %v4600 = vpop.f32.mrb[0].mxu0
      %v4601 = vadd.f32 0.0, %v4600
      %v4602 = vpop.f32.mrb[0].mxu0
      %4603 = vdwg.mxu0
      %4608 = vrot.lane.b32.xlu0 %v4145, 96
      %v4609 = vpop.permute.xlu0 %4608
      %4610 = vrot.lane.b32.xlu0 %v4146, 96
      %v4611 = vpop.permute.xlu0 %4610
      %4612 = vrot.lane.b32.xlu0 %v4147, 96
      %v4613 = vpop.permute.xlu0 %4612
      %4614 = vrot.lane.b32.xlu0 %v4148, 96
      %v4615 = vpop.permute.xlu0 %4614
      %v4621 = vsel %vm1106, %v4507, 0
      %v4624 = vsel %vm1106, %v4508, 0
      %v4627 = vsel %vm1106, %v4509, 0
      %v4630 = vsel %vm1106, %v4510, 0
      %4632 = vmatprep.subr.bf16.mxu0 0
      %4633 = vmatpush1.bf16.msra.mxu0 %v4609
      %4634 = vmatprep.subr.bf16.mxu0 0
      %4635 = vmatpush1.bf16.msra.mxu0 %v4611
      %4636 = vmatprep.subr.bf16.mxu0 0
      %4637 = vmatpush1.bf16.msra.mxu0 %v4613
      %4638 = vmatprep.subr.bf16.mxu0 0
      %4639 = vmatpush1.bf16.msra.mxu0 %v4615
      %4640 = vmatprep.subr.bf16.mxu0 0
      %4641 = vmatpush1.bf16.msra.mxu0 0
      %4642 = vmatprep.subr.bf16.mxu0 0
      %4643 = vmatpush1.bf16.msra.mxu0 0
      %4644 = vmatprep.subr.bf16.mxu0 0
      %4645 = vmatpush1.bf16.msra.mxu0 0
      %4646 = vmatprep.subr.bf16.mxu0 0
      %4647 = vmatpush1.bf16.msra.mxu0 0
      %4648 = vmatprep.subr.bf16.mxu0 0
      %4649 = vmatpush1.bf16.msra.mxu0 0
      %4650 = vmatprep.subr.bf16.mxu0 0
      %4651 = vmatpush1.bf16.msra.mxu0 0
      %4652 = vmatprep.subr.bf16.mxu0 0
      %4653 = vmatpush1.bf16.msra.mxu0 0
      %4654 = vmatprep.subr.bf16.mxu0 0
      %4655 = vmatpush1.bf16.msra.mxu0 0
      %4656 = vmatprep.subr.bf16.mxu0 0
      %4657 = vmatpush1.bf16.msra.mxu0 0
      %4658 = vmatprep.subr.bf16.mxu0 0
      %4659 = vmatpush1.bf16.msra.mxu0 0
      %4660 = vmatprep.subr.bf16.mxu0 0
      %4661 = vmatpush1.bf16.msra.mxu0 0
      %4662 = vmatprep.subr.bf16.mxu0 0
      %4663 = vmatpush1.bf16.msra.mxu0 0
      %4664 = vmatprep.mubr.bf16.mxu0 0
      %4665 = vmatmul.mubr.bf16.gmra.mrb[0].mxu0 %v4621
      %v4666 = vpop.f32.mrb[0].mxu0
      %v4667 = vadd.f32 0.0, %v4666
      %v4668 = vpop.f32.mrb[0].mxu0
      %v4669 = vpop.f32.mrb[0].mxu0
      %v4670 = vadd.f32 0.0, %v4669
      %v4671 = vpop.f32.mrb[0].mxu0
      %4672 = vmatprep.mubr.bf16.mxu0 0
      %4673 = vmatmul.mubr.bf16.gmra.mrb[0].mxu0 %v4624
      %v4674 = vpop.f32.mrb[0].mxu0
      %v4675 = vadd.f32 0.0, %v4674
      %v4676 = vpop.f32.mrb[0].mxu0
      %v4677 = vpop.f32.mrb[0].mxu0
      %v4678 = vadd.f32 0.0, %v4677
      %v4679 = vpop.f32.mrb[0].mxu0
      %4680 = vmatprep.mubr.bf16.mxu0 0
      %4681 = vmatmul.mubr.bf16.gmra.mrb[0].mxu0 %v4627
      %v4682 = vpop.f32.mrb[0].mxu0
      %v4683 = vadd.f32 0.0, %v4682
      %v4684 = vpop.f32.mrb[0].mxu0
      %v4685 = vpop.f32.mrb[0].mxu0
      %v4686 = vadd.f32 0.0, %v4685
      %v4687 = vpop.f32.mrb[0].mxu0
      %4688 = vmatprep.mubr.bf16.mxu0 0
      %4689 = vmatmul.mubr.bf16.gmra.mrb[0].mxu0 %v4630
      %v4690 = vpop.f32.mrb[0].mxu0
      %v4691 = vadd.f32 0.0, %v4690
      %v4692 = vpop.f32.mrb[0].mxu0
      %v4693 = vpop.f32.mrb[0].mxu0
      %v4694 = vadd.f32 0.0, %v4693
      %v4695 = vpop.f32.mrb[0].mxu0
      %4696 = vdwg.mxu0
      %v4697 = vadd.f32 %v4574, %v2884
      %v4698 = vadd.f32 %v4577, %v2885
      %v4699 = vadd.f32 %v4582, %v2886
      %v4700 = vadd.f32 %v4585, %v2887
      %v4701 = vadd.f32 %v4590, %v2888
      %v4702 = vadd.f32 %v4593, %v2889
      %v4703 = vadd.f32 %v4598, %v2890
      %v4704 = vadd.f32 %v4601, %v2891
      %v4705 = vadd.f32 %v4667, %v2892
      %v4706 = vadd.f32 %v4670, %v2893
      %v4707 = vadd.f32 %v4675, %v2894
      %v4708 = vadd.f32 %v4678, %v2895
      %v4709 = vadd.f32 %v4683, %v2896
      %v4710 = vadd.f32 %v4686, %v2897
      %v4711 = vadd.f32 %v4691, %v2898
      %v4712 = vadd.f32 %v4694, %v2899
      %v4713 = vsel %vm381, %v4697, 0.0
      %v4714 = vsel %vm381, %v4698, 0.0
      %v4715 = vadd.f32 %v4713, %v4714
      %v4716 = vsel %vm381, %v4699, 0.0
      %v4717 = vadd.f32 %v4715, %v4716
      %v4718 = vsel %vm381, %v4700, 0.0
      %v4719 = vadd.f32 %v4717, %v4718
      %v4720 = vsel %vm381, %v4701, 0.0
      %v4721 = vadd.f32 %v4719, %v4720
      %v4722 = vsel %vm381, %v4702, 0.0
      %v4723 = vadd.f32 %v4721, %v4722
      %v4724 = vsel %vm381, %v4703, 0.0
      %v4725 = vadd.f32 %v4723, %v4724
      %v4726 = vsel %vm381, %v4704, 0.0
      %v4727 = vadd.f32 %v4725, %v4726
      %v4728 = vsel %vm381, %v4705, 0.0
      %v4729 = vadd.f32 %v4727, %v4728
      %v4730 = vsel %vm381, %v4706, 0.0
      %v4731 = vadd.f32 %v4729, %v4730
      %v4732 = vsel %vm381, %v4707, 0.0
      %v4733 = vadd.f32 %v4731, %v4732
      %v4734 = vsel %vm381, %v4708, 0.0
      %v4735 = vadd.f32 %v4733, %v4734
      %v4736 = vsel %vm381, %v4709, 0.0
      %v4737 = vadd.f32 %v4735, %v4736
      %v4738 = vsel %vm381, %v4710, 0.0
      %v4739 = vadd.f32 %v4737, %v4738
      %v4740 = vsel %vm381, %v4711, 0.0
      %v4741 = vadd.f32 %v4739, %v4740
      %v4742 = vsel %vm381, %v4712, 0.0
      %v4743 = vadd.f32 %v4741, %v4742
      %v4744 = vrot.slane %v4743, 4
      %v4745 = vadd.f32 %v4743, %v4744
      %v4746 = vrot.slane %v4745, 2
      %v4747 = vadd.f32 %v4745, %v4746
      %v4748 = vrot.slane %v4747, 1
      %v4749 = vadd.f32 %v4747, %v4748
      %v4750 = vmul.f32 %v4749, 0.0078125
      %v4751 = vsub.f32 %v4697, %v4750
      %v4752 = vsub.f32 %v4698, %v4750
      %v4753 = vsub.f32 %v4699, %v4750
      %v4754 = vsub.f32 %v4700, %v4750
      %v4755 = vsub.f32 %v4701, %v4750
      %v4756 = vsub.f32 %v4702, %v4750
      %v4757 = vsub.f32 %v4703, %v4750
      %v4758 = vsub.f32 %v4704, %v4750
      %v4759 = vsub.f32 %v4705, %v4750
      %v4760 = vsub.f32 %v4706, %v4750
      %v4761 = vsub.f32 %v4707, %v4750
      %v4762 = vsub.f32 %v4708, %v4750
      %v4763 = vsub.f32 %v4709, %v4750
      %v4764 = vsub.f32 %v4710, %v4750
      %v4765 = vsub.f32 %v4711, %v4750
      %v4766 = vsub.f32 %v4712, %v4750
      %v4767 = vmul.f32 %v4751, %v4751
      %v4768 = vmul.f32 %v4752, %v4752
      %v4769 = vmul.f32 %v4753, %v4753
      %v4770 = vmul.f32 %v4754, %v4754
      %v4771 = vmul.f32 %v4755, %v4755
      %v4772 = vmul.f32 %v4756, %v4756
      %v4773 = vmul.f32 %v4757, %v4757
      %v4774 = vmul.f32 %v4758, %v4758
      %v4775 = vmul.f32 %v4759, %v4759
      %v4776 = vmul.f32 %v4760, %v4760
      %v4777 = vmul.f32 %v4761, %v4761
      %v4778 = vmul.f32 %v4762, %v4762
      %v4779 = vmul.f32 %v4763, %v4763
      %v4780 = vmul.f32 %v4764, %v4764
      %v4781 = vmul.f32 %v4765, %v4765
      %v4782 = vmul.f32 %v4766, %v4766
      %v4783 = vsel %vm381, %v4767, 0.0
      %v4784 = vsel %vm381, %v4768, 0.0
      %v4785 = vadd.f32 %v4783, %v4784
      %v4786 = vsel %vm381, %v4769, 0.0
      %v4787 = vadd.f32 %v4785, %v4786
      %v4788 = vsel %vm381, %v4770, 0.0
      %v4789 = vadd.f32 %v4787, %v4788
      %v4790 = vsel %vm381, %v4771, 0.0
      %v4791 = vadd.f32 %v4789, %v4790
      %v4792 = vsel %vm381, %v4772, 0.0
      %v4793 = vadd.f32 %v4791, %v4792
      %v4794 = vsel %vm381, %v4773, 0.0
      %v4795 = vadd.f32 %v4793, %v4794
      %v4796 = vsel %vm381, %v4774, 0.0
      %v4797 = vadd.f32 %v4795, %v4796
      %v4798 = vsel %vm381, %v4775, 0.0
      %v4799 = vadd.f32 %v4797, %v4798
      %v4800 = vsel %vm381, %v4776, 0.0
      %v4801 = vadd.f32 %v4799, %v4800
      %v4802 = vsel %vm381, %v4777, 0.0
      %v4803 = vadd.f32 %v4801, %v4802
      %v4804 = vsel %vm381, %v4778, 0.0
      %v4805 = vadd.f32 %v4803, %v4804
      %v4806 = vsel %vm381, %v4779, 0.0
      %v4807 = vadd.f32 %v4805, %v4806
      %v4808 = vsel %vm381, %v4780, 0.0
      %v4809 = vadd.f32 %v4807, %v4808
      %v4810 = vsel %vm381, %v4781, 0.0
      %v4811 = vadd.f32 %v4809, %v4810
      %v4812 = vsel %vm381, %v4782, 0.0
      %v4813 = vadd.f32 %v4811, %v4812
      %v4814 = vrot.slane %v4813, 4
      %v4815 = vadd.f32 %v4813, %v4814
      %v4816 = vrot.slane %v4815, 2
      %v4817 = vadd.f32 %v4815, %v4816
      %v4818 = vrot.slane %v4817, 1
      %v4819 = vadd.f32 %v4817, %v4818
      %v4820 = vmul.f32 %v4819, 0.0078125
      %v4821 = vadd.f32 %v4820, 1e-05
      %v4822 = vrsqrt.pop %v4821
      %v4823 = vmul.f32 %v4751, %v4822
      %v4824 = vmul.f32 %v4752, %v4822
      %v4825 = vmul.f32 %v4753, %v4822
      %v4826 = vmul.f32 %v4754, %v4822
      %v4827 = vmul.f32 %v4755, %v4822
      %v4828 = vmul.f32 %v4756, %v4822
      %v4829 = vmul.f32 %v4757, %v4822
      %v4830 = vmul.f32 %v4758, %v4822
      %v4831 = vmul.f32 %v4759, %v4822
      %v4832 = vmul.f32 %v4760, %v4822
      %v4833 = vmul.f32 %v4761, %v4822
      %v4834 = vmul.f32 %v4762, %v4822
      %v4835 = vmul.f32 %v4763, %v4822
      %v4836 = vmul.f32 %v4764, %v4822
      %v4837 = vmul.f32 %v4765, %v4822
      %v4838 = vmul.f32 %v4766, %v4822
      %4839 = vst.msk [vmem:[%s332] sm:$0xff] %vm381, %v4823
      %4840 = vst.msk [vmem:[%s332 + $0x8] sm:$0xff] %vm381, %v4824
      %4841 = vst.msk [vmem:[%s332 + $0x10] sm:$0xff] %vm381, %v4825
      %4842 = vst.msk [vmem:[%s332 + $0x18] sm:$0xff] %vm381, %v4826
      %4843 = vst.msk [vmem:[%s332 + $0x20] sm:$0xff] %vm381, %v4827
      %4844 = vst.msk [vmem:[%s332 + $0x28] sm:$0xff] %vm381, %v4828
      %4845 = vst.msk [vmem:[%s332 + $0x30] sm:$0xff] %vm381, %v4829
      %4846 = vst.msk [vmem:[%s332 + $0x38] sm:$0xff] %vm381, %v4830
      %4847 = vst.msk [vmem:[%s332 + $0x40] sm:$0xff] %vm381, %v4831
      %4848 = vst.msk [vmem:[%s332 + $0x48] sm:$0xff] %vm381, %v4832
      %4849 = vst.msk [vmem:[%s332 + $0x50] sm:$0xff] %vm381, %v4833
      %4850 = vst.msk [vmem:[%s332 + $0x58] sm:$0xff] %vm381, %v4834
      %4851 = vst.msk [vmem:[%s332 + $0x60] sm:$0xff] %vm381, %v4835
      %4852 = vst.msk [vmem:[%s332 + $0x68] sm:$0xff] %vm381, %v4836
      %4853 = vst.msk [vmem:[%s332 + $0x70] sm:$0xff] %vm381, %v4837
      %4854 = vst.msk [vmem:[%s332 + $0x78] sm:$0xff] %vm381, %v4838
      %p4855 = scmp.lt.s32.totalorder %s20, 1
      %s4856 = scalar_select %p4855, %s20, 1
      %s4857 = smul.addr %s4856, 16
      %s4858 = smul.addr %s4857, 8
      %s4859 = scalar_lea.vmem %s9, %s4858
      // Predicated region
      $region57: #{cross_conv_attention.2} parent=55 // pred_check
        %p4860 = pneg %p232
      $region58: #{cross_conv_attention.2} parent=55 // pred_check_branch
        %4862 = sbr.rel (%p4860) target = $region60
      $region59: #{cross_conv_attention.2} parent=55 // pred_region
        _
      $region60: #{cross_conv_attention.2} parent=55 // pred_fallthru
        _
    $region56: #{cross_conv_attention.2} parent=5 // pred_fallthru
      _
    %p4863 = scmp.le.s32.totalorder 2, %s15
    // Predicated region
    $region61: #{cross_conv_attention.2} parent=5 // pred_check
      %p4864 = pneg %p4863
    $region62: #{cross_conv_attention.2} parent=5 // pred_check_branch
      %4866 = sbr.rel (%p4864) target = $region64
    $region63: #{cross_conv_attention.2} parent=5 // pred_region
      %s4867 = ssub.s32 %s15, 2
      // Predicated region
      $region65: #{cross_conv_attention.2} parent=63 // pred_check
        %p4868 = pneg %p238
      $region66: #{cross_conv_attention.2} parent=63 // pred_check_branch
        %4870 = sbr.rel (%p4868) target = $region68
      $region67: #{cross_conv_attention.2} parent=63 // pred_region
        %p4871 = scmp.lt.s32.totalorder %s21, 1
        %s4872 = scalar_select %p4871, %s21, 1
        %s4873 = smul.addr %s4872, 16
        %s4874 = smul.addr %s4873, 8
        %s4875 = scalar_lea.vmem %s9, %s4874
      $region68: #{cross_conv_attention.2} parent=63 // pred_fallthru
        _
    $region64: #{cross_conv_attention.2} parent=5 // pred_fallthru
      _
  $region6: #{cross_conv_attention.2} parent=0 // loop_footer
    %s19 = sadd.s32 1, %s15
  $region7: #{cross_conv_attention.2} parent=0 // loop_footer_branch
    %14 = sbr.rel target = $region3
  $region8: #{cross_conv_attention.2} parent=0 // loop_exit
    _

</llo_original>
